<compile_context>
chip_gen: v7x
topology: tpu7x:2x2x1
jax: 0.10.0
libtpu: 0.0.40
codegen_flags: <defaults>
</compile_context>

<pallas_src>
import jax
import jax.numpy as jnp
from jax.experimental import pallas as pl
from jax.experimental.pallas import tpu as pltpu

D_IN = 512     # input feature dim of audio_rep / text_rep
D_QK = 256     # gen_query_L1 / gen_key_L1 output dim
D_H = 512      # dense1 output dim
D_OUT = 256    # fc_out output dim


def _round_up(x, m):
    return ((x + m - 1) // m) * m


def mm_kernel(v1_ref, v2_ref,
              wq_ref, bq_ref, wk_ref, bk_ref,
              w1a_ref, w1b_ref, b1_ref,
              wo_ref, bo_ref,
              out_ref):
    v1 = v1_ref[...]                       # (TB, 512) f32
    v2 = v2_ref[...]                       # (TB, 512) f32
    tb = v1.shape[0]
    cdt = wq_ref.dtype                     # bf16 compute dtype for MXU operands

    # Stack both inputs along the sublane axis so the shared L1 projections
    # are one matmul per weight (2 MXU calls instead of 4).
    vcat = jnp.concatenate([v1, v2], axis=0).astype(cdt)        # (2*TB, 512)

    q_all = jnp.dot(vcat, wq_ref[...],
                    preferred_element_type=jnp.float32) + bq_ref[...]
    q_all = jnp.maximum(q_all, 0.0)                             # (2*TB, 256)
    k_all = jnp.dot(vcat, wk_ref[...],
                    preferred_element_type=jnp.float32) + bk_ref[...]
    k_all = jnp.maximum(k_all, 0.0)                             # (2*TB, 256)

    q1, q2 = q_all[:tb], q_all[tb:]        # static sublane slices (TB mult of 8)
    k1, k2 = k_all[:tb], k_all[tb:]

    # bmm(q[b,1,256], k[b,256,1]) == per-row dot product -> (TB, 1)
    s1 = jnp.sum(q1 * k2, axis=-1, keepdims=True)
    s2 = jnp.sum(q2 * k1, axis=-1, keepdims=True)

    # softmax over the two scores (dim=1 of the (B,2) score matrix)
    m = jnp.maximum(s1, s2)
    e1 = jnp.exp(s1 - m)
    e2 = jnp.exp(s2 - m)
    inv_denom = pl.reciprocal(e1 + e2, approx=True)   # EUP slot
    p1 = e1 * inv_denom                    # (TB, 1)
    p2 = e2 * inv_denom                    # (TB, 1)

    wtd1 = (v1 * p1).astype(cdt)           # (TB, 512)
    wtd2 = (v2 * p2).astype(cdt)           # (TB, 512)

    # dense1 on concat(wtd1, wtd2) == wtd1 @ W1[:512] + wtd2 @ W1[512:]
    h = jnp.dot(wtd1, w1a_ref[...], preferred_element_type=jnp.float32)
    h = h + jnp.dot(wtd2, w1b_ref[...], preferred_element_type=jnp.float32)
    h = jnp.maximum(h + b1_ref[...], 0.0)  # (TB, 512) f32

    # fc_out
    o = jnp.dot(h.astype(cdt), wo_ref[...],
                preferred_element_type=jnp.float32) + bo_ref[...]
    out_ref[...] = jnp.maximum(o, 0.0)     # (TB, 256)


def _const_spec(x):
    ndim = x.ndim
    return pl.BlockSpec(x.shape, lambda i: (0,) * ndim)


def mm_forward(audio_rep, text_rep, params, *, block_b=256):
    """Fused MM forward. block_b: batch tile (128 is a good v5e choice,
    256 for v6e/v7x). Batch is zero-padded to a tile multiple and the padded
    rows are sliced off before returning."""
    B = audio_rep.shape[0]
    tb = min(block_b, _round_up(B, 8))     # small batches -> single small tile
    b_pad = _round_up(B, tb)
    if b_pad != B:
        pad = b_pad - B
        audio_rep = jnp.pad(audio_rep, ((0, pad), (0, 0)))
        text_rep = jnp.pad(text_rep, ((0, pad), (0, 0)))

    weight_args = (
        params["wq"], params["bq"], params["wk"], params["bk"],
        params["w1a"], params["w1b"], params["b1"],
        params["wo"], params["bo"],
    )

    in_specs = [
        pl.BlockSpec((tb, D_IN), lambda i: (i, 0)),   # audio tile
        pl.BlockSpec((tb, D_IN), lambda i: (i, 0)),   # text tile
    ] + [_const_spec(w) for w in weight_args]          # weights: VMEM-resident

    out = pl.pallas_call(
        mm_kernel,
        out_shape=jax.ShapeDtypeStruct((b_pad, D_OUT), jnp.float32),
        grid=(pl.cdiv(b_pad, tb),),
        in_specs=in_specs,
        out_specs=pl.BlockSpec((tb, D_OUT), lambda i: (i, 0)),
        compiler_params=pltpu.CompilerParams(
            dimension_semantics=("parallel",),
            vmem_limit_bytes=32 * 1024 * 1024,
        ),
    )(audio_rep, text_rep, *weight_args)
    return out[:B]


def init_params(key, param_dtype=jnp.bfloat16):
    """Deterministic init mimicking nn.Linear default (uniform +/- 1/sqrt(fan_in)).
    Weights stored (in_features, out_features), cast to `param_dtype` (bf16 by
    default: halves weight DMA, native MXU dtype). Biases stay f32."""
    def linear(k, fan_in, fan_out):
        kw, kb = jax.random.split(k)
        bound = 1.0 / jnp.sqrt(fan_in)
        w = jax.random.uniform(kw, (fan_in, fan_out), jnp.float32, -bound, bound)
        b = jax.random.uniform(kb, (1, fan_out), jnp.float32, -bound, bound)
        return w.astype(param_dtype), b

    k_q, k_k, k_d1, k_o = jax.random.split(key, 4)
    wq, bq = linear(k_q, D_IN, D_QK)        # gen_query_L1
    wk, bk = linear(k_k, D_IN, D_QK)        # gen_key_L1
    w1, b1 = linear(k_d1, 2 * D_IN, D_H)    # dense1 (1024 -> 512)
    wo, bo = linear(k_o, D_H, D_OUT)        # fc_out (512 -> 256)
    return {
        "wq": wq, "bq": bq, "wk": wk, "bk": bk,
        "w1a": w1[:D_IN, :], "w1b": w1[D_IN:, :], "b1": b1,
        "wo": wo, "bo": bo,
    }


def mm_reference(audio_rep, text_rep, p):
    """Pure-JAX reference (same bf16 matmul operands / f32 accumulation)."""
    relu = lambda x: jnp.maximum(x, 0.0)
    cdt = p["wq"].dtype
    a = audio_rep.astype(cdt)
    t = text_rep.astype(cdt)
    q1 = relu(jnp.dot(a, p["wq"], preferred_element_type=jnp.float32) + p["bq"])
    k1 = relu(jnp.dot(a, p["wk"], preferred_element_type=jnp.float32) + p["bk"])
    q2 = relu(jnp.dot(t, p["wq"], preferred_element_type=jnp.float32) + p["bq"])
    k2 = relu(jnp.dot(t, p["wk"], preferred_element_type=jnp.float32) + p["bk"])
    s1 = jnp.sum(q1 * k2, axis=-1, keepdims=True)
    s2 = jnp.sum(q2 * k1, axis=-1, keepdims=True)
    probs = jax.nn.softmax(jnp.concatenate([s1, s2], axis=1), axis=1)
    wtd1 = (audio_rep * probs[:, 0:1]).astype(cdt)
    wtd2 = (text_rep * probs[:, 1:2]).astype(cdt)
    h = relu(jnp.dot(wtd1, p["w1a"], preferred_element_type=jnp.float32)
             + jnp.dot(wtd2, p["w1b"], preferred_element_type=jnp.float32)
             + p["b1"])
    return relu(jnp.dot(h.astype(cdt), p["wo"],
                        preferred_element_type=jnp.float32) + p["bo"])


if __name__ == "__main__":
    key = jax.random.PRNGKey(0)
    k_params, k_a, k_t = jax.random.split(key, 3)

    B = 200   # not a multiple of the tile: exercises padding + a 2-step grid
    params = init_params(k_params)
    audio_rep = jax.random.normal(k_a, (B, D_IN), jnp.float32)
    text_rep = jax.random.normal(k_t, (B, D_IN), jnp.float32)

    out = mm_forward(audio_rep, text_rep, params, block_b=128)
    out = jax.block_until_ready(out)

    ref = mm_reference(audio_rep, text_rep, params)
    assert out.shape == (B, D_OUT), out.shape
    max_err = float(jnp.max(jnp.abs(out - ref)))
    assert jnp.allclose(out, ref, atol=2e-2, rtol=2e-2), f"mismatch vs reference (max_err={max_err})"

    print("KERNEL_OK")
</pallas_src>

<mosaic_0001>
module attributes {stable_mosaic.version = 11 : i64} {
  func.func @mm_kernel(%arg0: i32, %arg1: memref<128x512xf32, #tpu.memory_space<vmem>>, %arg2: memref<128x512xf32, #tpu.memory_space<vmem>>, %arg3: memref<512x256xbf16, #tpu.memory_space<vmem>>, %arg4: memref<1x256xf32, #tpu.memory_space<vmem>>, %arg5: memref<512x256xbf16, #tpu.memory_space<vmem>>, %arg6: memref<1x256xf32, #tpu.memory_space<vmem>>, %arg7: memref<512x512xbf16, #tpu.memory_space<vmem>>, %arg8: memref<512x512xbf16, #tpu.memory_space<vmem>>, %arg9: memref<1x512xf32, #tpu.memory_space<vmem>>, %arg10: memref<512x256xbf16, #tpu.memory_space<vmem>>, %arg11: memref<1x256xf32, #tpu.memory_space<vmem>>, %arg12: memref<128x256xf32, #tpu.memory_space<vmem>>) attributes {dimension_semantics = [#tpu.dimension_semantics<parallel>], iteration_bounds = array<i64: 2>, scalar_prefetch = 0 : i64, scratch_operands = 0 : i64, tpu.core_type = #tpu.core_type<tc>, window_params = [{transform_indices = @transform_0, window_bounds = array<i64: 128, 512>}, {transform_indices = @transform_1, window_bounds = array<i64: 128, 512>}, {pipeline_mode = #tpu.pipeline_mode<synchronous>, transform_indices = @transform_2, window_bounds = array<i64: 512, 256>}, {pipeline_mode = #tpu.pipeline_mode<synchronous>, transform_indices = @transform_3, window_bounds = array<i64: 1, 256>}, {pipeline_mode = #tpu.pipeline_mode<synchronous>, transform_indices = @transform_4, window_bounds = array<i64: 512, 256>}, {pipeline_mode = #tpu.pipeline_mode<synchronous>, transform_indices = @transform_5, window_bounds = array<i64: 1, 256>}, {pipeline_mode = #tpu.pipeline_mode<synchronous>, transform_indices = @transform_6, window_bounds = array<i64: 512, 512>}, {pipeline_mode = #tpu.pipeline_mode<synchronous>, transform_indices = @transform_7, window_bounds = array<i64: 512, 512>}, {pipeline_mode = #tpu.pipeline_mode<synchronous>, transform_indices = @transform_8, window_bounds = array<i64: 1, 512>}, {pipeline_mode = #tpu.pipeline_mode<synchronous>, transform_indices = @transform_9, window_bounds = array<i64: 512, 256>}, {pipeline_mode = #tpu.pipeline_mode<synchronous>, transform_indices = @transform_10, window_bounds = array<i64: 1, 256>}, {transform_indices = @transform_11, window_bounds = array<i64: 128, 256>}]} {
    %c0 = arith.constant 0 : index
    %c0_0 = arith.constant 0 : index
    %0 = vector.load %arg1[%c0, %c0_0] : memref<128x512xf32, #tpu.memory_space<vmem>>, vector<128x512xf32>
    %c0_1 = arith.constant 0 : index
    %c0_2 = arith.constant 0 : index
    %1 = vector.load %arg2[%c0_1, %c0_2] : memref<128x512xf32, #tpu.memory_space<vmem>>, vector<128x512xf32>
    %2 = tpu.concatenate %0, %1 in 0 : vector<128x512xf32>, vector<128x512xf32> -> vector<256x512xf32>
    %3 = arith.truncf %2 : vector<256x512xf32> to vector<256x512xbf16>
    %c0_3 = arith.constant 0 : index
    %c0_4 = arith.constant 0 : index
    %4 = vector.load %arg3[%c0_3, %c0_4] : memref<512x256xbf16, #tpu.memory_space<vmem>>, vector<512x256xbf16>
    %cst = arith.constant dense<0.000000e+00> : vector<256x256xf32>
    %5 = tpu.matmul %3, %4, %cst {dimension_numbers = #tpu.dot_dimension_numbers<[1], [0], [0], [1], [0, 0, 1, 1], [], []>} : vector<256x512xbf16>, vector<512x256xbf16>, vector<256x256xf32> -> vector<256x256xf32>
    %c0_5 = arith.constant 0 : index
    %c0_6 = arith.constant 0 : index
    %6 = vector.load %arg4[%c0_5, %c0_6] : memref<1x256xf32, #tpu.memory_space<vmem>>, vector<1x256xf32>
    %7 = vector.broadcast %6 : vector<1x256xf32> to vector<256x256xf32>
    %8 = arith.addf %5, %7 : vector<256x256xf32>
    %cst_7 = arith.constant 0.000000e+00 : f32
    %9 = vector.broadcast %cst_7 : f32 to vector<256x256xf32>
    %10 = arith.maximumf %8, %9 : vector<256x256xf32>
    %c0_8 = arith.constant 0 : index
    %c0_9 = arith.constant 0 : index
    %11 = vector.load %arg5[%c0_8, %c0_9] : memref<512x256xbf16, #tpu.memory_space<vmem>>, vector<512x256xbf16>
    %cst_10 = arith.constant dense<0.000000e+00> : vector<256x256xf32>
    %12 = tpu.matmul %3, %11, %cst_10 {dimension_numbers = #tpu.dot_dimension_numbers<[1], [0], [0], [1], [0, 0, 1, 1], [], []>} : vector<256x512xbf16>, vector<512x256xbf16>, vector<256x256xf32> -> vector<256x256xf32>
    %c0_11 = arith.constant 0 : index
    %c0_12 = arith.constant 0 : index
    %13 = vector.load %arg6[%c0_11, %c0_12] : memref<1x256xf32, #tpu.memory_space<vmem>>, vector<1x256xf32>
    %14 = vector.broadcast %13 : vector<1x256xf32> to vector<256x256xf32>
    %15 = arith.addf %12, %14 : vector<256x256xf32>
    %cst_13 = arith.constant 0.000000e+00 : f32
    %16 = vector.broadcast %cst_13 : f32 to vector<256x256xf32>
    %17 = arith.maximumf %15, %16 : vector<256x256xf32>
    %18 = vector.extract_strided_slice %10 {offsets = [0, 0], sizes = [128, 256], strides = [1, 1]} : vector<256x256xf32> to vector<128x256xf32>
    %19 = vector.extract_strided_slice %10 {offsets = [128, 0], sizes = [128, 256], strides = [1, 1]} : vector<256x256xf32> to vector<128x256xf32>
    %20 = vector.extract_strided_slice %17 {offsets = [0, 0], sizes = [128, 256], strides = [1, 1]} : vector<256x256xf32> to vector<128x256xf32>
    %21 = vector.extract_strided_slice %17 {offsets = [128, 0], sizes = [128, 256], strides = [1, 1]} : vector<256x256xf32> to vector<128x256xf32>
    %22 = arith.mulf %18, %21 : vector<128x256xf32>
    %cst_14 = arith.constant dense<0.000000e+00> : vector<128xf32>
    %23 = vector.multi_reduction <add>, %22, %cst_14 [1] : vector<128x256xf32> to vector<128xf32>
    %24 = vector.shape_cast %23 : vector<128xf32> to vector<128x1xf32>
    %25 = arith.mulf %19, %20 : vector<128x256xf32>
    %cst_15 = arith.constant dense<0.000000e+00> : vector<128xf32>
    %26 = vector.multi_reduction <add>, %25, %cst_15 [1] : vector<128x256xf32> to vector<128xf32>
    %27 = vector.shape_cast %26 : vector<128xf32> to vector<128x1xf32>
    %28 = arith.maximumf %24, %27 : vector<128x1xf32>
    %29 = arith.subf %24, %28 : vector<128x1xf32>
    %30 = math.exp %29 : vector<128x1xf32>
    %31 = arith.subf %27, %28 : vector<128x1xf32>
    %32 = math.exp %31 : vector<128x1xf32>
    %33 = arith.addf %30, %32 : vector<128x1xf32>
    %34 = tpu.reciprocal %33 {approx = true} : vector<128x1xf32> -> vector<128x1xf32>
    %35 = arith.mulf %30, %34 : vector<128x1xf32>
    %36 = arith.mulf %32, %34 : vector<128x1xf32>
    %37 = vector.broadcast %35 : vector<128x1xf32> to vector<128x512xf32>
    %38 = arith.mulf %0, %37 : vector<128x512xf32>
    %39 = arith.truncf %38 : vector<128x512xf32> to vector<128x512xbf16>
    %40 = vector.broadcast %36 : vector<128x1xf32> to vector<128x512xf32>
    %41 = arith.mulf %1, %40 : vector<128x512xf32>
    %42 = arith.truncf %41 : vector<128x512xf32> to vector<128x512xbf16>
    %c0_16 = arith.constant 0 : index
    %c0_17 = arith.constant 0 : index
    %43 = vector.load %arg7[%c0_16, %c0_17] : memref<512x512xbf16, #tpu.memory_space<vmem>>, vector<512x512xbf16>
    %cst_18 = arith.constant dense<0.000000e+00> : vector<128x512xf32>
    %44 = tpu.matmul %39, %43, %cst_18 {dimension_numbers = #tpu.dot_dimension_numbers<[1], [0], [0], [1], [0, 0, 1, 1], [], []>} : vector<128x512xbf16>, vector<512x512xbf16>, vector<128x512xf32> -> vector<128x512xf32>
    %c0_19 = arith.constant 0 : index
    %c0_20 = arith.constant 0 : index
    %45 = vector.load %arg8[%c0_19, %c0_20] : memref<512x512xbf16, #tpu.memory_space<vmem>>, vector<512x512xbf16>
    %cst_21 = arith.constant dense<0.000000e+00> : vector<128x512xf32>
    %46 = tpu.matmul %42, %45, %cst_21 {dimension_numbers = #tpu.dot_dimension_numbers<[1], [0], [0], [1], [0, 0, 1, 1], [], []>} : vector<128x512xbf16>, vector<512x512xbf16>, vector<128x512xf32> -> vector<128x512xf32>
    %47 = arith.addf %44, %46 : vector<128x512xf32>
    %c0_22 = arith.constant 0 : index
    %c0_23 = arith.constant 0 : index
    %48 = vector.load %arg9[%c0_22, %c0_23] : memref<1x512xf32, #tpu.memory_space<vmem>>, vector<1x512xf32>
    %49 = vector.broadcast %48 : vector<1x512xf32> to vector<128x512xf32>
    %50 = arith.addf %47, %49 : vector<128x512xf32>
    %cst_24 = arith.constant 0.000000e+00 : f32
    %51 = vector.broadcast %cst_24 : f32 to vector<128x512xf32>
    %52 = arith.maximumf %50, %51 : vector<128x512xf32>
    %53 = arith.truncf %52 : vector<128x512xf32> to vector<128x512xbf16>
    %c0_25 = arith.constant 0 : index
    %c0_26 = arith.constant 0 : index
    %54 = vector.load %arg10[%c0_25, %c0_26] : memref<512x256xbf16, #tpu.memory_space<vmem>>, vector<512x256xbf16>
    %cst_27 = arith.constant dense<0.000000e+00> : vector<128x256xf32>
    %55 = tpu.matmul %53, %54, %cst_27 {dimension_numbers = #tpu.dot_dimension_numbers<[1], [0], [0], [1], [0, 0, 1, 1], [], []>} : vector<128x512xbf16>, vector<512x256xbf16>, vector<128x256xf32> -> vector<128x256xf32>
    %c0_28 = arith.constant 0 : index
    %c0_29 = arith.constant 0 : index
    %56 = vector.load %arg11[%c0_28, %c0_29] : memref<1x256xf32, #tpu.memory_space<vmem>>, vector<1x256xf32>
    %57 = vector.broadcast %56 : vector<1x256xf32> to vector<128x256xf32>
    %58 = arith.addf %55, %57 : vector<128x256xf32>
    %cst_30 = arith.constant 0.000000e+00 : f32
    %59 = vector.broadcast %cst_30 : f32 to vector<128x256xf32>
    %60 = arith.maximumf %58, %59 : vector<128x256xf32>
    %c0_31 = arith.constant 0 : index
    %c0_32 = arith.constant 0 : index
    %61 = vector.load %arg12[%c0_31, %c0_32] : memref<128x256xf32, #tpu.memory_space<vmem>>, vector<128x256xf32>
    tpu.vector_store %arg12[%c0_31, %c0_32], %60 {strides = array<i32>} : memref<128x256xf32, #tpu.memory_space<vmem>>, vector<128x256xf32>,
    return
  }
  func.func @transform_0(%arg0: i32) -> (i32, i32) {
    %c0_i32 = arith.constant 0 : i32
    %c0_i32_0 = arith.constant 0 : i32
    return %arg0, %c0_i32 : i32, i32
  }
  func.func @transform_1(%arg0: i32) -> (i32, i32) {
    %c0_i32 = arith.constant 0 : i32
    %c0_i32_0 = arith.constant 0 : i32
    return %arg0, %c0_i32 : i32, i32
  }
  func.func @transform_2(%arg0: i32) -> (i32, i32) {
    %c0_i32 = arith.constant 0 : i32
    %c0_i32_0 = arith.constant 0 : i32
    %c0_i32_1 = arith.constant 0 : i32
    return %c0_i32, %c0_i32_0 : i32, i32
  }
  func.func @transform_3(%arg0: i32) -> (i32, i32) {
    %c0_i32 = arith.constant 0 : i32
    %c0_i32_0 = arith.constant 0 : i32
    %c0_i32_1 = arith.constant 0 : i32
    return %c0_i32, %c0_i32_0 : i32, i32
  }
  func.func @transform_4(%arg0: i32) -> (i32, i32) {
    %c0_i32 = arith.constant 0 : i32
    %c0_i32_0 = arith.constant 0 : i32
    %c0_i32_1 = arith.constant 0 : i32
    return %c0_i32, %c0_i32_0 : i32, i32
  }
  func.func @transform_5(%arg0: i32) -> (i32, i32) {
    %c0_i32 = arith.constant 0 : i32
    %c0_i32_0 = arith.constant 0 : i32
    %c0_i32_1 = arith.constant 0 : i32
    return %c0_i32, %c0_i32_0 : i32, i32
  }
  func.func @transform_6(%arg0: i32) -> (i32, i32) {
    %c0_i32 = arith.constant 0 : i32
    %c0_i32_0 = arith.constant 0 : i32
    %c0_i32_1 = arith.constant 0 : i32
    return %c0_i32, %c0_i32_0 : i32, i32
  }
  func.func @transform_7(%arg0: i32) -> (i32, i32) {
    %c0_i32 = arith.constant 0 : i32
    %c0_i32_0 = arith.constant 0 : i32
    %c0_i32_1 = arith.constant 0 : i32
    return %c0_i32, %c0_i32_0 : i32, i32
  }
  func.func @transform_8(%arg0: i32) -> (i32, i32) {
    %c0_i32 = arith.constant 0 : i32
    %c0_i32_0 = arith.constant 0 : i32
    %c0_i32_1 = arith.constant 0 : i32
    return %c0_i32, %c0_i32_0 : i32, i32
  }
  func.func @transform_9(%arg0: i32) -> (i32, i32) {
    %c0_i32 = arith.constant 0 : i32
    %c0_i32_0 = arith.constant 0 : i32
    %c0_i32_1 = arith.constant 0 : i32
    return %c0_i32, %c0_i32_0 : i32, i32
  }
  func.func @transform_10(%arg0: i32) -> (i32, i32) {
    %c0_i32 = arith.constant 0 : i32
    %c0_i32_0 = arith.constant 0 : i32
    %c0_i32_1 = arith.constant 0 : i32
    return %c0_i32, %c0_i32_0 : i32, i32
  }
  func.func @transform_11(%arg0: i32) -> (i32, i32) {
    %c0_i32 = arith.constant 0 : i32
    %c0_i32_0 = arith.constant 0 : i32
    return %arg0, %c0_i32 : i32, i32
  }
}

</mosaic_0001>

<llo_original>
// kernel: tpu_custom_call.1
$region0: #{tpu_custom_call.1}
  #allocation0 [shape = 'u32[]', space=smem, size = 0x4, offset = 0x4, fixed_abs, tag = 'smem constant byte address 0x4 - core index']
  #allocation1 [shape = 'u32[144,128]{1,0:T(1,128)}', space=vmem, size = 0x12000, scoped, tag = 'internal scratch']
  %s0 = inlined_call_operand.hbm [shape: f32[256,512], index: 0, kind: input, shape index: {}]
  %s1 = inlined_call_operand.hbm [shape: f32[256,512], index: 1, kind: input, shape index: {}]
  %s2 = inlined_call_operand.hbm [shape: bf16[512,256], index: 2, kind: input, shape index: {}]
  %s3 = inlined_call_operand.vmem [shape: f32[1,256], index: 3, kind: input, shape index: {}]
  %s4 = inlined_call_operand.hbm [shape: bf16[512,256], index: 4, kind: input, shape index: {}]
  %s5 = inlined_call_operand.vmem [shape: f32[1,256], index: 5, kind: input, shape index: {}]
  %s6 = inlined_call_operand.hbm [shape: bf16[512,512], index: 6, kind: input, shape index: {}]
  %s7 = inlined_call_operand.hbm [shape: bf16[512,512], index: 7, kind: input, shape index: {}]
  %s8 = inlined_call_operand.vmem [shape: f32[1,512], index: 8, kind: input, shape index: {}]
  %s9 = inlined_call_operand.hbm [shape: bf16[512,256], index: 9, kind: input, shape index: {}]
  %s10 = inlined_call_operand.vmem [shape: f32[1,256], index: 10, kind: input, shape index: {}]
  %s11 = inlined_call_operand.hbm [shape: f32[256,256], index: 11, kind: output, shape index: {}]
  %s12 = sld [smem:[#allocation0]]
  $region105: #{tpu_custom_call.1} parent=0
    _
  %s14 = ssub.s32 1, %s12
  %s15 = scalar_select 0, %s14, %s12
  $region1: #{tpu_custom_call.1} parent=0
    #allocation2 [shape = 'u8[524288]{0}', space=vmem, size = 0x80000, scoped, tag = 'input window, operand 0']
    #allocation3 [shape = 's32[2]{0}', space=sflag, size = 0x8, scoped, tag = 'scoped memory for tpu_custom_call.1']
    #allocation4 [shape = 's32[2]{0}', space=sflag, size = 0x8, scoped, tag = 'scoped memory for tpu_custom_call.1']
    #allocation5 [shape = 'u8[524288]{0}', space=vmem, size = 0x80000, scoped, tag = 'input window, operand 1']
    #allocation6 [shape = 's32[2]{0}', space=sflag, size = 0x8, scoped, tag = 'scoped memory for tpu_custom_call.1']
    #allocation7 [shape = 'u8[262144]{0}', space=vmem, size = 0x40000, scoped, tag = 'input window, operand 2, single buffered']
    #allocation8 [shape = 'u8[262144]{0}', space=vmem, size = 0x40000, scoped, tag = 'input window, operand 4, single buffered']
    #allocation9 [shape = 's32[1]{0}', space=sflag, size = 0x4, scoped, tag = 'scoped memory for tpu_custom_call.1']
    #allocation10 [shape = 'u8[524288]{0}', space=vmem, size = 0x80000, scoped, tag = 'input window, operand 6, single buffered']
    #allocation11 [shape = 'u8[524288]{0}', space=vmem, size = 0x80000, scoped, tag = 'input window, operand 7, single buffered']
    #allocation12 [shape = 's32[1]{0}', space=sflag, size = 0x4, scoped, tag = 'scoped memory for tpu_custom_call.1']
    #allocation13 [shape = 'u8[262144]{0}', space=vmem, size = 0x40000, scoped, tag = 'input window, operand 9, single buffered']
    #allocation14 [shape = 'u8[262144]{0}', space=vmem, size = 0x40000, scoped, tag = 'output window, operand 0']
    %16 = vsyncpa [#allocation3], 0
    %s17 = scalar_lea.sflag [#allocation3], 1
    %18 = vsyncpa %s17, 0
    %19 = vsyncpa [#allocation6], 0
    %s20 = scalar_lea.sflag [#allocation6], 1
    %21 = vsyncpa %s20, 0
    %22 = vsyncpa [#allocation9], 0
    %23 = vsyncpa [#allocation12], 0
    %24 = vsyncpa [#allocation4], 0
    %s25 = scalar_lea.sflag [#allocation4], 1
    %26 = vsyncpa %s25, 0
    loop: start=0, step=1, limit=4
    $region2: #{tpu_custom_call.1} parent=1 // loop_pre_header
      _
    $region3: #{tpu_custom_call.1} parent=1 // loop_header
      %s28 = sphi 0, %s32
      %p29 = scmp.ge.s32.totalorder %s28, 4
      %s38 = sphi 0, %s40
      %s41 = sphi 0, %s38
      %s42 = sphi 0, %s41
      %s58 = sphi 0, %s42
      %s64 = sphi 0, %s66
      %s67 = sphi 0, %s64
      %s68 = sphi 0, %s67
      %s84 = sphi 0, %s68
      %s88 = sphi 0, %s88
      %s90 = sphi 0, %s88
      %s91 = sphi 0, %s90
      %s105 = sphi 0, %s91
      %s109 = sphi 0, %s109
      %s111 = sphi 0, %s109
      %s112 = sphi 0, %s111
      %s126 = sphi 0, %s112
      %s130 = sphi 0, %s130
      %s132 = sphi 0, %s130
      %s133 = sphi 0, %s132
      %s147 = sphi 0, %s133
      %s151 = sphi 0, %s151
      %s153 = sphi 0, %s151
      %s154 = sphi 0, %s153
      %s168 = sphi 0, %s154
      %s172 = sphi 0, %s172
      %s174 = sphi 0, %s172
      %s175 = sphi 0, %s174
      %s189 = sphi 0, %s175
      %s193 = sphi 0, %s193
      %s195 = sphi 0, %s193
      %s196 = sphi 0, %s195
      %s210 = sphi 0, %s196
      %s214 = sphi 0, %s214
      %s216 = sphi 0, %s214
      %s217 = sphi 0, %s216
      %s231 = sphi 0, %s217
      %s235 = sphi 0, %s235
      %s237 = sphi 0, %s235
      %s238 = sphi 0, %s237
      %s252 = sphi 0, %s238
      %s256 = sphi 0, %s256
      %s258 = sphi 0, %s256
      %s259 = sphi 0, %s258
      %s273 = sphi 0, %s259
      %s279 = sphi 0, %s281
      %s282 = sphi 0, %s279
      %s283 = sphi 0, %s282
      %s299 = sphi 0, %s283
    $region4: #{tpu_custom_call.1} parent=1 // loop_header_branch
      %31 = sbr.rel (%p29) target = $region8
    $region5: #{tpu_custom_call.1} parent=1 // loop_body
      %s33 = ssub.s32 %s28, 1
      %s34 = ssub.s32 %s28, 2
      %s35 = sadd.s32 %s28, 1
      %s36 = ssub.s32 %s28, %s35
      %p37 = scmp.eq.s32.totalorder %s36, 0
      %s39 = sadd.s32 %s38, 1
      %s40 = scalar_select %p37, %s38, %s39
      %p43 = pneg %p37
      %p44 = scmp.eq.s32.totalorder %s28, 1
      %p45 = por %p43, %p44
      %p46 = scmp.ne.s32.totalorder %s38, %s41
      %p47 = scmp.eq.s32.totalorder %s28, 0
      %p48 = por %p46, %p47
      %p49 = scmp.ne.s32.totalorder %s38, %s41
      %p50 = scmp.eq.s32.totalorder %s33, 1
      %p51 = por %p49, %p50
      %p52 = scmp.ne.s32.totalorder %s41, %s42
      %p53 = scmp.eq.s32.totalorder %s33, 0
      %p54 = por %p52, %p53
      %p55 = scmp.ne.s32.totalorder %s41, %s42
      %p56 = scmp.eq.s32.totalorder %s34, 1
      %p57 = por %p55, %p56
      %p59 = scmp.ne.s32.totalorder %s42, %s58
      %p60 = scmp.eq.s32.totalorder %s34, 0
      %p61 = por %p59, %p60
      %s62 = ssub.s32 %s28, %s35
      %p63 = scmp.eq.s32.totalorder %s62, 0
      %s65 = sadd.s32 %s64, 1
      %s66 = scalar_select %p63, %s64, %s65
      %p69 = pneg %p63
      %p70 = scmp.eq.s32.totalorder %s28, 1
      %p71 = por %p69, %p70
      %p72 = scmp.ne.s32.totalorder %s64, %s67
      %p73 = scmp.eq.s32.totalorder %s28, 0
      %p74 = por %p72, %p73
      %p75 = scmp.ne.s32.totalorder %s64, %s67
      %p76 = scmp.eq.s32.totalorder %s33, 1
      %p77 = por %p75, %p76
      %p78 = scmp.ne.s32.totalorder %s67, %s68
      %p79 = scmp.eq.s32.totalorder %s33, 0
      %p80 = por %p78, %p79
      %p81 = scmp.ne.s32.totalorder %s67, %s68
      %p82 = scmp.eq.s32.totalorder %s34, 1
      %p83 = por %p81, %p82
      %p85 = scmp.ne.s32.totalorder %s68, %s84
      %p86 = scmp.eq.s32.totalorder %s34, 0
      %p87 = por %p85, %p86
      %s89 = sadd.s32 %s88, 1
      %p92 = scmp.eq.s32.totalorder %s28, 1
      %p93 = scmp.ne.s32.totalorder %s88, %s90
      %p94 = scmp.eq.s32.totalorder %s28, 0
      %p95 = por %p93, %p94
      %p96 = scmp.ne.s32.totalorder %s88, %s90
      %p97 = scmp.eq.s32.totalorder %s33, 1
      %p98 = por %p96, %p97
      %p99 = scmp.ne.s32.totalorder %s90, %s91
      %p100 = scmp.eq.s32.totalorder %s33, 0
      %p101 = por %p99, %p100
      %p102 = scmp.ne.s32.totalorder %s90, %s91
      %p103 = scmp.eq.s32.totalorder %s34, 1
      %p104 = por %p102, %p103
      %p106 = scmp.ne.s32.totalorder %s91, %s105
      %p107 = scmp.eq.s32.totalorder %s34, 0
      %p108 = por %p106, %p107
      %s110 = sadd.s32 %s109, 1
      %p113 = scmp.eq.s32.totalorder %s28, 1
      %p114 = scmp.ne.s32.totalorder %s109, %s111
      %p115 = scmp.eq.s32.totalorder %s28, 0
      %p116 = por %p114, %p115
      %p117 = scmp.ne.s32.totalorder %s109, %s111
      %p118 = scmp.eq.s32.totalorder %s33, 1
      %p119 = por %p117, %p118
      %p120 = scmp.ne.s32.totalorder %s111, %s112
      %p121 = scmp.eq.s32.totalorder %s33, 0
      %p122 = por %p120, %p121
      %p123 = scmp.ne.s32.totalorder %s111, %s112
      %p124 = scmp.eq.s32.totalorder %s34, 1
      %p125 = por %p123, %p124
      %p127 = scmp.ne.s32.totalorder %s112, %s126
      %p128 = scmp.eq.s32.totalorder %s34, 0
      %p129 = por %p127, %p128
      %s131 = sadd.s32 %s130, 1
      %p134 = scmp.eq.s32.totalorder %s28, 1
      %p135 = scmp.ne.s32.totalorder %s130, %s132
      %p136 = scmp.eq.s32.totalorder %s28, 0
      %p137 = por %p135, %p136
      %p138 = scmp.ne.s32.totalorder %s130, %s132
      %p139 = scmp.eq.s32.totalorder %s33, 1
      %p140 = por %p138, %p139
      %p141 = scmp.ne.s32.totalorder %s132, %s133
      %p142 = scmp.eq.s32.totalorder %s33, 0
      %p143 = por %p141, %p142
      %p144 = scmp.ne.s32.totalorder %s132, %s133
      %p145 = scmp.eq.s32.totalorder %s34, 1
      %p146 = por %p144, %p145
      %p148 = scmp.ne.s32.totalorder %s133, %s147
      %p149 = scmp.eq.s32.totalorder %s34, 0
      %p150 = por %p148, %p149
      %s152 = sadd.s32 %s151, 1
      %p155 = scmp.eq.s32.totalorder %s28, 1
      %p156 = scmp.ne.s32.totalorder %s151, %s153
      %p157 = scmp.eq.s32.totalorder %s28, 0
      %p158 = por %p156, %p157
      %p159 = scmp.ne.s32.totalorder %s151, %s153
      %p160 = scmp.eq.s32.totalorder %s33, 1
      %p161 = por %p159, %p160
      %p162 = scmp.ne.s32.totalorder %s153, %s154
      %p163 = scmp.eq.s32.totalorder %s33, 0
      %p164 = por %p162, %p163
      %p165 = scmp.ne.s32.totalorder %s153, %s154
      %p166 = scmp.eq.s32.totalorder %s34, 1
      %p167 = por %p165, %p166
      %p169 = scmp.ne.s32.totalorder %s154, %s168
      %p170 = scmp.eq.s32.totalorder %s34, 0
      %p171 = por %p169, %p170
      %s173 = sadd.s32 %s172, 1
      %p176 = scmp.eq.s32.totalorder %s28, 1
      %p177 = scmp.ne.s32.totalorder %s172, %s174
      %p178 = scmp.eq.s32.totalorder %s28, 0
      %p179 = por %p177, %p178
      %p180 = scmp.ne.s32.totalorder %s172, %s174
      %p181 = scmp.eq.s32.totalorder %s33, 1
      %p182 = por %p180, %p181
      %p183 = scmp.ne.s32.totalorder %s174, %s175
      %p184 = scmp.eq.s32.totalorder %s33, 0
      %p185 = por %p183, %p184
      %p186 = scmp.ne.s32.totalorder %s174, %s175
      %p187 = scmp.eq.s32.totalorder %s34, 1
      %p188 = por %p186, %p187
      %p190 = scmp.ne.s32.totalorder %s175, %s189
      %p191 = scmp.eq.s32.totalorder %s34, 0
      %p192 = por %p190, %p191
      %s194 = sadd.s32 %s193, 1
      %p197 = scmp.eq.s32.totalorder %s28, 1
      %p198 = scmp.ne.s32.totalorder %s193, %s195
      %p199 = scmp.eq.s32.totalorder %s28, 0
      %p200 = por %p198, %p199
      %p201 = scmp.ne.s32.totalorder %s193, %s195
      %p202 = scmp.eq.s32.totalorder %s33, 1
      %p203 = por %p201, %p202
      %p204 = scmp.ne.s32.totalorder %s195, %s196
      %p205 = scmp.eq.s32.totalorder %s33, 0
      %p206 = por %p204, %p205
      %p207 = scmp.ne.s32.totalorder %s195, %s196
      %p208 = scmp.eq.s32.totalorder %s34, 1
      %p209 = por %p207, %p208
      %p211 = scmp.ne.s32.totalorder %s196, %s210
      %p212 = scmp.eq.s32.totalorder %s34, 0
      %p213 = por %p211, %p212
      %s215 = sadd.s32 %s214, 1
      %p218 = scmp.eq.s32.totalorder %s28, 1
      %p219 = scmp.ne.s32.totalorder %s214, %s216
      %p220 = scmp.eq.s32.totalorder %s28, 0
      %p221 = por %p219, %p220
      %p222 = scmp.ne.s32.totalorder %s214, %s216
      %p223 = scmp.eq.s32.totalorder %s33, 1
      %p224 = por %p222, %p223
      %p225 = scmp.ne.s32.totalorder %s216, %s217
      %p226 = scmp.eq.s32.totalorder %s33, 0
      %p227 = por %p225, %p226
      %p228 = scmp.ne.s32.totalorder %s216, %s217
      %p229 = scmp.eq.s32.totalorder %s34, 1
      %p230 = por %p228, %p229
      %p232 = scmp.ne.s32.totalorder %s217, %s231
      %p233 = scmp.eq.s32.totalorder %s34, 0
      %p234 = por %p232, %p233
      %s236 = sadd.s32 %s235, 1
      %p239 = scmp.eq.s32.totalorder %s28, 1
      %p240 = scmp.ne.s32.totalorder %s235, %s237
      %p241 = scmp.eq.s32.totalorder %s28, 0
      %p242 = por %p240, %p241
      %p243 = scmp.ne.s32.totalorder %s235, %s237
      %p244 = scmp.eq.s32.totalorder %s33, 1
      %p245 = por %p243, %p244
      %p246 = scmp.ne.s32.totalorder %s237, %s238
      %p247 = scmp.eq.s32.totalorder %s33, 0
      %p248 = por %p246, %p247
      %p249 = scmp.ne.s32.totalorder %s237, %s238
      %p250 = scmp.eq.s32.totalorder %s34, 1
      %p251 = por %p249, %p250
      %p253 = scmp.ne.s32.totalorder %s238, %s252
      %p254 = scmp.eq.s32.totalorder %s34, 0
      %p255 = por %p253, %p254
      %s257 = sadd.s32 %s256, 1
      %p260 = scmp.eq.s32.totalorder %s28, 1
      %p261 = scmp.ne.s32.totalorder %s256, %s258
      %p262 = scmp.eq.s32.totalorder %s28, 0
      %p263 = por %p261, %p262
      %p264 = scmp.ne.s32.totalorder %s256, %s258
      %p265 = scmp.eq.s32.totalorder %s33, 1
      %p266 = por %p264, %p265
      %p267 = scmp.ne.s32.totalorder %s258, %s259
      %p268 = scmp.eq.s32.totalorder %s33, 0
      %p269 = por %p267, %p268
      %p270 = scmp.ne.s32.totalorder %s258, %s259
      %p271 = scmp.eq.s32.totalorder %s34, 1
      %p272 = por %p270, %p271
      %p274 = scmp.ne.s32.totalorder %s259, %s273
      %p275 = scmp.eq.s32.totalorder %s34, 0
      %p276 = por %p274, %p275
      %s277 = ssub.s32 %s28, %s35
      %p278 = scmp.eq.s32.totalorder %s277, 0
      %s280 = sadd.s32 %s279, 1
      %s281 = scalar_select %p278, %s279, %s280
      %p284 = pneg %p278
      %p285 = scmp.eq.s32.totalorder %s28, 1
      %p286 = por %p284, %p285
      %p287 = scmp.ne.s32.totalorder %s279, %s282
      %p288 = scmp.eq.s32.totalorder %s28, 0
      %p289 = por %p287, %p288
      %p290 = scmp.ne.s32.totalorder %s279, %s282
      %p291 = scmp.eq.s32.totalorder %s33, 1
      %p292 = por %p290, %p291
      %p293 = scmp.ne.s32.totalorder %s282, %s283
      %p294 = scmp.eq.s32.totalorder %s33, 0
      %p295 = por %p293, %p294
      %p296 = scmp.ne.s32.totalorder %s282, %s283
      %p297 = scmp.eq.s32.totalorder %s34, 1
      %p298 = por %p296, %p297
      %p300 = scmp.ne.s32.totalorder %s283, %s299
      %p301 = scmp.eq.s32.totalorder %s34, 0
      %p302 = por %p300, %p301
      %p303 = scmp.le.s32.totalorder 1, %s28
      %p304 = scmp.lt.s32.totalorder %s28, 3
      %p305 = pnand %p303, %p304
      %p306 = pneg %p305
      // Predicated region
      $region9: #{tpu_custom_call.1} parent=5 // pred_check
        _
      $region10: #{tpu_custom_call.1} parent=5 // pred_check_branch
        %308 = sbr.rel (%p305) target = $region12
      $region11: #{tpu_custom_call.1} parent=5 // pred_region
        %s309 = ssub.s32 %s28, 1
        // Predicated region
        $region13: #{tpu_custom_call.1} parent=11 // pred_check
          %p310 = pneg %p101
        $region14: #{tpu_custom_call.1} parent=11 // pred_check_branch
          %312 = sbr.rel (%p310) target = $region16
        $region15: #{tpu_custom_call.1} parent=11 // pred_region
          %s314 = ssub.s32 8192, 8192
          %315 = vsyncadd [#allocation6], %s314
          %s316 = sshll.u32 [#allocation7], 4
          %s317 = int_to_ptr.vmem [resolvable:$true] %s316
          %322 = dma.hbm_to_vmem [thread:$0]  %s2, 8192, %s317, [#allocation6], 128, 128, 8
        $region16: #{tpu_custom_call.1} parent=11 // pred_fallthru
          _
        // Predicated region
        $region17: #{tpu_custom_call.1} parent=11 // pred_check
          %p323 = pneg %p122
        $region18: #{tpu_custom_call.1} parent=11 // pred_check_branch
          %325 = sbr.rel (%p323) target = $region20
        $region19: #{tpu_custom_call.1} parent=11 // pred_region
          _
        $region20: #{tpu_custom_call.1} parent=11 // pred_fallthru
          _
        // Predicated region
        $region21: #{tpu_custom_call.1} parent=11 // pred_check
          %p326 = pneg %p143
        $region22: #{tpu_custom_call.1} parent=11 // pred_check_branch
          %328 = sbr.rel (%p326) target = $region24
        $region23: #{tpu_custom_call.1} parent=11 // pred_region
          %s330 = ssub.s32 8192, 8192
          %331 = vsyncadd [#allocation9], %s330
          %s332 = sshll.u32 [#allocation8], 4
          %s333 = int_to_ptr.vmem [resolvable:$true] %s332
          %338 = dma.hbm_to_vmem [thread:$0]  %s4, 8192, %s333, [#allocation9], 128, 128, 8
        $region24: #{tpu_custom_call.1} parent=11 // pred_fallthru
          _
        // Predicated region
        $region25: #{tpu_custom_call.1} parent=11 // pred_check
          %p339 = pneg %p164
        $region26: #{tpu_custom_call.1} parent=11 // pred_check_branch
          %341 = sbr.rel (%p339) target = $region28
        $region27: #{tpu_custom_call.1} parent=11 // pred_region
          _
        $region28: #{tpu_custom_call.1} parent=11 // pred_fallthru
          _
        // Predicated region
        $region29: #{tpu_custom_call.1} parent=11 // pred_check
          %p342 = pneg %p185
        $region30: #{tpu_custom_call.1} parent=11 // pred_check_branch
          %344 = sbr.rel (%p342) target = $region32
        $region31: #{tpu_custom_call.1} parent=11 // pred_region
          %s346 = ssub.s32 16384, 16384
          %347 = vsyncadd [#allocation9], %s346
          %s348 = sshll.u32 [#allocation10], 4
          %s349 = int_to_ptr.vmem [resolvable:$true] %s348
          %354 = dma.hbm_to_vmem [thread:$0]  %s6, 16384, %s349, [#allocation9], 256, 256, 16
        $region32: #{tpu_custom_call.1} parent=11 // pred_fallthru
          _
        // Predicated region
        $region33: #{tpu_custom_call.1} parent=11 // pred_check
          %p355 = pneg %p206
        $region34: #{tpu_custom_call.1} parent=11 // pred_check_branch
          %357 = sbr.rel (%p355) target = $region36
        $region35: #{tpu_custom_call.1} parent=11 // pred_region
          %s359 = ssub.s32 16384, 16384
          %360 = vsyncadd [#allocation12], %s359
          %s361 = sshll.u32 [#allocation11], 4
          %s362 = int_to_ptr.vmem [resolvable:$true] %s361
          %367 = dma.hbm_to_vmem [thread:$0]  %s7, 16384, %s362, [#allocation12], 256, 256, 16
        $region36: #{tpu_custom_call.1} parent=11 // pred_fallthru
          _
        // Predicated region
        $region37: #{tpu_custom_call.1} parent=11 // pred_check
          %p368 = pneg %p227
        $region38: #{tpu_custom_call.1} parent=11 // pred_check_branch
          %370 = sbr.rel (%p368) target = $region40
        $region39: #{tpu_custom_call.1} parent=11 // pred_region
          _
        $region40: #{tpu_custom_call.1} parent=11 // pred_fallthru
          _
        // Predicated region
        $region41: #{tpu_custom_call.1} parent=11 // pred_check
          %p371 = pneg %p248
        $region42: #{tpu_custom_call.1} parent=11 // pred_check_branch
          %373 = sbr.rel (%p371) target = $region44
        $region43: #{tpu_custom_call.1} parent=11 // pred_region
          %s375 = ssub.s32 8192, 8192
          %376 = vsyncadd [#allocation12], %s375
          %s377 = sshll.u32 [#allocation13], 4
          %s378 = int_to_ptr.vmem [resolvable:$true] %s377
          %383 = dma.hbm_to_vmem [thread:$0]  %s9, 8192, %s378, [#allocation12], 128, 128, 8
        $region44: #{tpu_custom_call.1} parent=11 // pred_fallthru
          _
        // Predicated region
        $region45: #{tpu_custom_call.1} parent=11 // pred_check
          %p384 = pneg %p269
        $region46: #{tpu_custom_call.1} parent=11 // pred_check_branch
          %386 = sbr.rel (%p384) target = $region48
        $region47: #{tpu_custom_call.1} parent=11 // pred_region
          _
        $region48: #{tpu_custom_call.1} parent=11 // pred_fallthru
          _
      $region12: #{tpu_custom_call.1} parent=5 // pred_fallthru
        _
      %p387 = scmp.lt.s32.totalorder %s28, 2
      // Predicated region
      $region49: #{tpu_custom_call.1} parent=5 // pred_check
        %p388 = pneg %p387
      $region50: #{tpu_custom_call.1} parent=5 // pred_check_branch
        %390 = sbr.rel (%p388) target = $region52
      $region51: #{tpu_custom_call.1} parent=5 // pred_region
        // Predicated region
        $region53: #{tpu_custom_call.1} parent=51 // pred_check
          %p391 = pneg %p48
        $region54: #{tpu_custom_call.1} parent=51 // pred_check_branch
          %393 = sbr.rel (%p391) target = $region56
        $region55: #{tpu_custom_call.1} parent=51 // pred_region
          %s394 = sand.u32 %s38, 1
          %s395 = scalar_lea.sflag [#allocation3], %s394
          %s396 = sand.u32 %s38, 1
          %s397 = smul.addr %s396, 512
          %s398 = scalar_lea.vmem [#allocation2], %s397
          %s399 = smul.u32 16, %s28
          %s401 = ssub.s32 8192, 8192
          %402 = vsyncadd %s395, %s401
          %s403 = smul.addr %s399, 4
          %s404 = smul.addr %s403, 128
          %s405 = scalar_lea.hbm %s0, %s404
          %s406 = sshll.u32 %s398, 4
          %s407 = int_to_ptr.vmem [resolvable:$true] %s406
          %412 = dma.hbm_to_vmem [thread:$0]  %s405, 8192, %s407, %s395, 512, 512, 32
        $region56: #{tpu_custom_call.1} parent=51 // pred_fallthru
          _
        // Predicated region
        $region57: #{tpu_custom_call.1} parent=51 // pred_check
          %p413 = pneg %p74
        $region58: #{tpu_custom_call.1} parent=51 // pred_check_branch
          %415 = sbr.rel (%p413) target = $region60
        $region59: #{tpu_custom_call.1} parent=51 // pred_region
          %s416 = sand.u32 %s28, 1
          %s417 = scalar_lea.sflag [#allocation6], %s416
          %s418 = sand.u32 %s64, 1
          %s419 = smul.addr %s418, 512
          %s420 = scalar_lea.vmem [#allocation5], %s419
          %s421 = smul.u32 16, %s28
          %s423 = ssub.s32 8192, 8192
          %424 = vsyncadd %s417, %s423
          %s425 = smul.addr %s421, 4
          %s426 = smul.addr %s425, 128
          %s427 = scalar_lea.hbm %s1, %s426
          %s428 = sshll.u32 %s420, 4
          %s429 = int_to_ptr.vmem [resolvable:$true] %s428
          %434 = dma.hbm_to_vmem [thread:$0]  %s427, 8192, %s429, %s417, 512, 512, 32
        $region60: #{tpu_custom_call.1} parent=51 // pred_fallthru
          _
      $region52: #{tpu_custom_call.1} parent=5 // pred_fallthru
        _
      %p435 = scmp.le.s32.totalorder 1, %s28
      %p436 = scmp.lt.s32.totalorder %s28, 3
      %p437 = pnand %p435, %p436
      %p438 = pneg %p437
      // Predicated region
      $region61: #{tpu_custom_call.1} parent=5 // pred_check
        _
      $region62: #{tpu_custom_call.1} parent=5 // pred_check_branch
        %440 = sbr.rel (%p437) target = $region64
      $region63: #{tpu_custom_call.1} parent=5 // pred_region
        %s441 = ssub.s32 %s28, 1
        %s442 = sand.u32 %s41, 1
        %s443 = scalar_lea.sflag [#allocation3], %s442
        %s444 = sand.u32 %s41, 1
        %s445 = smul.addr %s444, 512
        %s446 = scalar_lea.vmem [#allocation2], %s445
        // Predicated region
        $region65: #{tpu_custom_call.1} parent=63 // pred_check
          %p447 = pneg %p54
        $region66: #{tpu_custom_call.1} parent=63 // pred_check_branch
          %449 = sbr.rel (%p447) target = $region68
        $region67: #{tpu_custom_call.1} parent=63 // pred_region
          %450 = dma.done %s443, 8192
        $region68: #{tpu_custom_call.1} parent=63 // pred_fallthru
          _
        %s451 = sand.u32 %s33, 1
        %s452 = scalar_lea.sflag [#allocation6], %s451
        %s453 = sand.u32 %s67, 1
        %s454 = smul.addr %s453, 512
        %s455 = scalar_lea.vmem [#allocation5], %s454
        // Predicated region
        $region69: #{tpu_custom_call.1} parent=63 // pred_check
          %p456 = pneg %p80
        $region70: #{tpu_custom_call.1} parent=63 // pred_check_branch
          %458 = sbr.rel (%p456) target = $region72
        $region71: #{tpu_custom_call.1} parent=63 // pred_region
          %459 = dma.done %s452, 8192
        $region72: #{tpu_custom_call.1} parent=63 // pred_fallthru
          _
        // Predicated region
        $region73: #{tpu_custom_call.1} parent=63 // pred_check
          %p460 = pneg %p101
        $region74: #{tpu_custom_call.1} parent=63 // pred_check_branch
          %462 = sbr.rel (%p460) target = $region76
        $region75: #{tpu_custom_call.1} parent=63 // pred_region
          %463 = dma.done [#allocation6], 8192
        $region76: #{tpu_custom_call.1} parent=63 // pred_fallthru
          _
        // Predicated region
        $region77: #{tpu_custom_call.1} parent=63 // pred_check
          %p464 = pneg %p143
        $region78: #{tpu_custom_call.1} parent=63 // pred_check_branch
          %466 = sbr.rel (%p464) target = $region80
        $region79: #{tpu_custom_call.1} parent=63 // pred_region
          %467 = dma.done [#allocation9], 8192
        $region80: #{tpu_custom_call.1} parent=63 // pred_fallthru
          _
        // Predicated region
        $region81: #{tpu_custom_call.1} parent=63 // pred_check
          %p468 = pneg %p185
        $region82: #{tpu_custom_call.1} parent=63 // pred_check_branch
          %470 = sbr.rel (%p468) target = $region84
        $region83: #{tpu_custom_call.1} parent=63 // pred_region
          %471 = dma.done [#allocation9], 16384
        $region84: #{tpu_custom_call.1} parent=63 // pred_fallthru
          _
        // Predicated region
        $region85: #{tpu_custom_call.1} parent=63 // pred_check
          %p472 = pneg %p206
        $region86: #{tpu_custom_call.1} parent=63 // pred_check_branch
          %474 = sbr.rel (%p472) target = $region88
        $region87: #{tpu_custom_call.1} parent=63 // pred_region
          %475 = dma.done [#allocation12], 16384
        $region88: #{tpu_custom_call.1} parent=63 // pred_fallthru
          _
        // Predicated region
        $region89: #{tpu_custom_call.1} parent=63 // pred_check
          %p476 = pneg %p248
        $region90: #{tpu_custom_call.1} parent=63 // pred_check_branch
          %478 = sbr.rel (%p476) target = $region92
        $region91: #{tpu_custom_call.1} parent=63 // pred_region
          %479 = dma.done [#allocation12], 8192
        $region92: #{tpu_custom_call.1} parent=63 // pred_fallthru
          _
        %s480 = sand.u32 %s41, 1
        %s481 = scalar_lea.sflag [#allocation3], %s480
        %s482 = sand.u32 %s41, 1
        %s483 = smul.addr %s482, 512
        %s484 = scalar_lea.vmem [#allocation2], %s483
        %p485 = pneg %p54
        %p486 = pneg %p51
        %s487 = sand.u32 %s33, 1
        %s488 = scalar_lea.sflag [#allocation6], %s487
        %s489 = sand.u32 %s67, 1
        %s490 = smul.addr %s489, 512
        %s491 = scalar_lea.vmem [#allocation5], %s490
        %p492 = pneg %p80
        %p493 = pneg %p77
        %p494 = pneg %p101
        %p495 = pneg %p98
        %p496 = pneg %p122
        %p497 = pneg %p119
        %p498 = pneg %p143
        %p499 = pneg %p140
        %p500 = pneg %p164
        %p501 = pneg %p161
        %p502 = pneg %p185
        %p503 = pneg %p182
        %p504 = pneg %p206
        %p505 = pneg %p203
        %p506 = pneg %p227
        %p507 = pneg %p224
        %p508 = pneg %p248
        %p509 = pneg %p245
        %p510 = pneg %p269
        %p511 = pneg %p266
        %p512 = pneg %p295
        %p513 = pneg %p292
        %s514 = sand.u32 %s282, 1
        %s515 = scalar_lea.sflag [#allocation4], %s514
        %s516 = sand.u32 %s282, 1
        %s517 = smul.addr %s516, 256
        %s518 = scalar_lea.vmem [#allocation14], %s517
        %s519 = smul.u32 16, %s33
        %s520 = smul.u32 16, %s33
        %s521 = smul.u32 16, %s33
        %v522 = vld [vmem:[%s446] sm:$0xff]
        %v523 = vld [vmem:[%s446 + $0x8] sm:$0xff]
        %v524 = vld [vmem:[%s446 + $0x10] sm:$0xff]
        %v525 = vld [vmem:[%s446 + $0x18] sm:$0xff]
        %v526 = vld [vmem:[%s446 + $0x20] sm:$0xff]
        %v527 = vld [vmem:[%s446 + $0x28] sm:$0xff]
        %v528 = vld [vmem:[%s446 + $0x30] sm:$0xff]
        %v529 = vld [vmem:[%s446 + $0x38] sm:$0xff]
        %v530 = vld [vmem:[%s446 + $0x40] sm:$0xff]
        %v531 = vld [vmem:[%s446 + $0x48] sm:$0xff]
        %v532 = vld [vmem:[%s446 + $0x50] sm:$0xff]
        %v533 = vld [vmem:[%s446 + $0x58] sm:$0xff]
        %v534 = vld [vmem:[%s446 + $0x60] sm:$0xff]
        %v535 = vld [vmem:[%s446 + $0x68] sm:$0xff]
        %v536 = vld [vmem:[%s446 + $0x70] sm:$0xff]
        %v537 = vld [vmem:[%s446 + $0x78] sm:$0xff]
        %v538 = vld [vmem:[%s446 + $0x80] sm:$0xff]
        %v539 = vld [vmem:[%s446 + $0x88] sm:$0xff]
        %v540 = vld [vmem:[%s446 + $0x90] sm:$0xff]
        %v541 = vld [vmem:[%s446 + $0x98] sm:$0xff]
        %v542 = vld [vmem:[%s446 + $0xa0] sm:$0xff]
        %v543 = vld [vmem:[%s446 + $0xa8] sm:$0xff]
        %v544 = vld [vmem:[%s446 + $0xb0] sm:$0xff]
        %v545 = vld [vmem:[%s446 + $0xb8] sm:$0xff]
        %v546 = vld [vmem:[%s446 + $0xc0] sm:$0xff]
        %v547 = vld [vmem:[%s446 + $0xc8] sm:$0xff]
        %v548 = vld [vmem:[%s446 + $0xd0] sm:$0xff]
        %v549 = vld [vmem:[%s446 + $0xd8] sm:$0xff]
        %v550 = vld [vmem:[%s446 + $0xe0] sm:$0xff]
        %v551 = vld [vmem:[%s446 + $0xe8] sm:$0xff]
        %v552 = vld [vmem:[%s446 + $0xf0] sm:$0xff]
        %v553 = vld [vmem:[%s446 + $0xf8] sm:$0xff]
        %v554 = vld [vmem:[%s446 + $0x100] sm:$0xff]
        %v555 = vld [vmem:[%s446 + $0x108] sm:$0xff]
        %v556 = vld [vmem:[%s446 + $0x110] sm:$0xff]
        %v557 = vld [vmem:[%s446 + $0x118] sm:$0xff]
        %v558 = vld [vmem:[%s446 + $0x120] sm:$0xff]
        %v559 = vld [vmem:[%s446 + $0x128] sm:$0xff]
        %v560 = vld [vmem:[%s446 + $0x130] sm:$0xff]
        %v561 = vld [vmem:[%s446 + $0x138] sm:$0xff]
        %v562 = vld [vmem:[%s446 + $0x140] sm:$0xff]
        %v563 = vld [vmem:[%s446 + $0x148] sm:$0xff]
        %v564 = vld [vmem:[%s446 + $0x150] sm:$0xff]
        %v565 = vld [vmem:[%s446 + $0x158] sm:$0xff]
        %v566 = vld [vmem:[%s446 + $0x160] sm:$0xff]
        %v567 = vld [vmem:[%s446 + $0x168] sm:$0xff]
        %v568 = vld [vmem:[%s446 + $0x170] sm:$0xff]
        %v569 = vld [vmem:[%s446 + $0x178] sm:$0xff]
        %v570 = vld [vmem:[%s446 + $0x180] sm:$0xff]
        %v571 = vld [vmem:[%s446 + $0x188] sm:$0xff]
        %v572 = vld [vmem:[%s446 + $0x190] sm:$0xff]
        %v573 = vld [vmem:[%s446 + $0x198] sm:$0xff]
        %v574 = vld [vmem:[%s446 + $0x1a0] sm:$0xff]
        %v575 = vld [vmem:[%s446 + $0x1a8] sm:$0xff]
        %v576 = vld [vmem:[%s446 + $0x1b0] sm:$0xff]
        %v577 = vld [vmem:[%s446 + $0x1b8] sm:$0xff]
        %v578 = vld [vmem:[%s446 + $0x1c0] sm:$0xff]
        %v579 = vld [vmem:[%s446 + $0x1c8] sm:$0xff]
        %v580 = vld [vmem:[%s446 + $0x1d0] sm:$0xff]
        %v581 = vld [vmem:[%s446 + $0x1d8] sm:$0xff]
        %v582 = vld [vmem:[%s446 + $0x1e0] sm:$0xff]
        %v583 = vld [vmem:[%s446 + $0x1e8] sm:$0xff]
        %v584 = vld [vmem:[%s446 + $0x1f0] sm:$0xff]
        %v585 = vld [vmem:[%s446 + $0x1f8] sm:$0xff]
        %v586 = vld [vmem:[%s455] sm:$0xff]
        %v587 = vld [vmem:[%s455 + $0x8] sm:$0xff]
        %v588 = vld [vmem:[%s455 + $0x10] sm:$0xff]
        %v589 = vld [vmem:[%s455 + $0x18] sm:$0xff]
        %v590 = vld [vmem:[%s455 + $0x20] sm:$0xff]
        %v591 = vld [vmem:[%s455 + $0x28] sm:$0xff]
        %v592 = vld [vmem:[%s455 + $0x30] sm:$0xff]
        %v593 = vld [vmem:[%s455 + $0x38] sm:$0xff]
        %v594 = vld [vmem:[%s455 + $0x40] sm:$0xff]
        %v595 = vld [vmem:[%s455 + $0x48] sm:$0xff]
        %v596 = vld [vmem:[%s455 + $0x50] sm:$0xff]
        %v597 = vld [vmem:[%s455 + $0x58] sm:$0xff]
        %v598 = vld [vmem:[%s455 + $0x60] sm:$0xff]
        %v599 = vld [vmem:[%s455 + $0x68] sm:$0xff]
        %v600 = vld [vmem:[%s455 + $0x70] sm:$0xff]
        %v601 = vld [vmem:[%s455 + $0x78] sm:$0xff]
        %v602 = vld [vmem:[%s455 + $0x80] sm:$0xff]
        %v603 = vld [vmem:[%s455 + $0x88] sm:$0xff]
        %v604 = vld [vmem:[%s455 + $0x90] sm:$0xff]
        %v605 = vld [vmem:[%s455 + $0x98] sm:$0xff]
        %v606 = vld [vmem:[%s455 + $0xa0] sm:$0xff]
        %v607 = vld [vmem:[%s455 + $0xa8] sm:$0xff]
        %v608 = vld [vmem:[%s455 + $0xb0] sm:$0xff]
        %v609 = vld [vmem:[%s455 + $0xb8] sm:$0xff]
        %v610 = vld [vmem:[%s455 + $0xc0] sm:$0xff]
        %v611 = vld [vmem:[%s455 + $0xc8] sm:$0xff]
        %v612 = vld [vmem:[%s455 + $0xd0] sm:$0xff]
        %v613 = vld [vmem:[%s455 + $0xd8] sm:$0xff]
        %v614 = vld [vmem:[%s455 + $0xe0] sm:$0xff]
        %v615 = vld [vmem:[%s455 + $0xe8] sm:$0xff]
        %v616 = vld [vmem:[%s455 + $0xf0] sm:$0xff]
        %v617 = vld [vmem:[%s455 + $0xf8] sm:$0xff]
        %v618 = vld [vmem:[%s455 + $0x100] sm:$0xff]
        %v619 = vld [vmem:[%s455 + $0x108] sm:$0xff]
        %v620 = vld [vmem:[%s455 + $0x110] sm:$0xff]
        %v621 = vld [vmem:[%s455 + $0x118] sm:$0xff]
        %v622 = vld [vmem:[%s455 + $0x120] sm:$0xff]
        %v623 = vld [vmem:[%s455 + $0x128] sm:$0xff]
        %v624 = vld [vmem:[%s455 + $0x130] sm:$0xff]
        %v625 = vld [vmem:[%s455 + $0x138] sm:$0xff]
        %v626 = vld [vmem:[%s455 + $0x140] sm:$0xff]
        %v627 = vld [vmem:[%s455 + $0x148] sm:$0xff]
        %v628 = vld [vmem:[%s455 + $0x150] sm:$0xff]
        %v629 = vld [vmem:[%s455 + $0x158] sm:$0xff]
        %v630 = vld [vmem:[%s455 + $0x160] sm:$0xff]
        %v631 = vld [vmem:[%s455 + $0x168] sm:$0xff]
        %v632 = vld [vmem:[%s455 + $0x170] sm:$0xff]
        %v633 = vld [vmem:[%s455 + $0x178] sm:$0xff]
        %v634 = vld [vmem:[%s455 + $0x180] sm:$0xff]
        %v635 = vld [vmem:[%s455 + $0x188] sm:$0xff]
        %v636 = vld [vmem:[%s455 + $0x190] sm:$0xff]
        %v637 = vld [vmem:[%s455 + $0x198] sm:$0xff]
        %v638 = vld [vmem:[%s455 + $0x1a0] sm:$0xff]
        %v639 = vld [vmem:[%s455 + $0x1a8] sm:$0xff]
        %v640 = vld [vmem:[%s455 + $0x1b0] sm:$0xff]
        %v641 = vld [vmem:[%s455 + $0x1b8] sm:$0xff]
        %v642 = vld [vmem:[%s455 + $0x1c0] sm:$0xff]
        %v643 = vld [vmem:[%s455 + $0x1c8] sm:$0xff]
        %v644 = vld [vmem:[%s455 + $0x1d0] sm:$0xff]
        %v645 = vld [vmem:[%s455 + $0x1d8] sm:$0xff]
        %v646 = vld [vmem:[%s455 + $0x1e0] sm:$0xff]
        %v647 = vld [vmem:[%s455 + $0x1e8] sm:$0xff]
        %v648 = vld [vmem:[%s455 + $0x1f0] sm:$0xff]
        %v649 = vld [vmem:[%s455 + $0x1f8] sm:$0xff]
        %v650 = vpack.c.bf16 %v526, %v522
        %v651 = vpack.c.bf16 %v527, %v523
        %v652 = vpack.c.bf16 %v528, %v524
        %v653 = vpack.c.bf16 %v529, %v525
        %v654 = vpack.c.bf16 %v534, %v530
        %v655 = vpack.c.bf16 %v535, %v531
        %v656 = vpack.c.bf16 %v536, %v532
        %v657 = vpack.c.bf16 %v537, %v533
        %v658 = vpack.c.bf16 %v542, %v538
        %v659 = vpack.c.bf16 %v543, %v539
        %v660 = vpack.c.bf16 %v544, %v540
        %v661 = vpack.c.bf16 %v545, %v541
        %v662 = vpack.c.bf16 %v550, %v546
        %v663 = vpack.c.bf16 %v551, %v547
        %v664 = vpack.c.bf16 %v552, %v548
        %v665 = vpack.c.bf16 %v553, %v549
        %v666 = vpack.c.bf16 %v558, %v554
        %v667 = vpack.c.bf16 %v559, %v555
        %v668 = vpack.c.bf16 %v560, %v556
        %v669 = vpack.c.bf16 %v561, %v557
        %v670 = vpack.c.bf16 %v566, %v562
        %v671 = vpack.c.bf16 %v567, %v563
        %v672 = vpack.c.bf16 %v568, %v564
        %v673 = vpack.c.bf16 %v569, %v565
        %v674 = vpack.c.bf16 %v574, %v570
        %v675 = vpack.c.bf16 %v575, %v571
        %v676 = vpack.c.bf16 %v576, %v572
        %v677 = vpack.c.bf16 %v577, %v573
        %v678 = vpack.c.bf16 %v582, %v578
        %v679 = vpack.c.bf16 %v583, %v579
        %v680 = vpack.c.bf16 %v584, %v580
        %v681 = vpack.c.bf16 %v585, %v581
        %v682 = vpack.c.bf16 %v590, %v586
        %v683 = vpack.c.bf16 %v591, %v587
        %v684 = vpack.c.bf16 %v592, %v588
        %v685 = vpack.c.bf16 %v593, %v589
        %v686 = vpack.c.bf16 %v598, %v594
        %v687 = vpack.c.bf16 %v599, %v595
        %v688 = vpack.c.bf16 %v600, %v596
        %v689 = vpack.c.bf16 %v601, %v597
        %v690 = vpack.c.bf16 %v606, %v602
        %v691 = vpack.c.bf16 %v607, %v603
        %v692 = vpack.c.bf16 %v608, %v604
        %v693 = vpack.c.bf16 %v609, %v605
        %v694 = vpack.c.bf16 %v614, %v610
        %v695 = vpack.c.bf16 %v615, %v611
        %v696 = vpack.c.bf16 %v616, %v612
        %v697 = vpack.c.bf16 %v617, %v613
        %v698 = vpack.c.bf16 %v622, %v618
        %v699 = vpack.c.bf16 %v623, %v619
        %v700 = vpack.c.bf16 %v624, %v620
        %v701 = vpack.c.bf16 %v625, %v621
        %v702 = vpack.c.bf16 %v630, %v626
        %v703 = vpack.c.bf16 %v631, %v627
        %v704 = vpack.c.bf16 %v632, %v628
        %v705 = vpack.c.bf16 %v633, %v629
        %v706 = vpack.c.bf16 %v638, %v634
        %v707 = vpack.c.bf16 %v639, %v635
        %v708 = vpack.c.bf16 %v640, %v636
        %v709 = vpack.c.bf16 %v641, %v637
        %v710 = vpack.c.bf16 %v646, %v642
        %v711 = vpack.c.bf16 %v647, %v643
        %v712 = vpack.c.bf16 %v648, %v644
        %v713 = vpack.c.bf16 %v649, %v645
        %v714 = vld [vmem:[#allocation7] sm:$0xff]
        %v715 = vld [vmem:[#allocation7 + $0x8] sm:$0xff]
        %v716 = vld [vmem:[#allocation7 + $0x10] sm:$0xff]
        %v717 = vld [vmem:[#allocation7 + $0x18] sm:$0xff]
        %v718 = vld [vmem:[#allocation7 + $0x20] sm:$0xff]
        %v719 = vld [vmem:[#allocation7 + $0x28] sm:$0xff]
        %v720 = vld [vmem:[#allocation7 + $0x30] sm:$0xff]
        %v721 = vld [vmem:[#allocation7 + $0x38] sm:$0xff]
        %v722 = vld [vmem:[#allocation7 + $0x40] sm:$0xff]
        %v723 = vld [vmem:[#allocation7 + $0x48] sm:$0xff]
        %v724 = vld [vmem:[#allocation7 + $0x50] sm:$0xff]
        %v725 = vld [vmem:[#allocation7 + $0x58] sm:$0xff]
        %v726 = vld [vmem:[#allocation7 + $0x60] sm:$0xff]
        %v727 = vld [vmem:[#allocation7 + $0x68] sm:$0xff]
        %v728 = vld [vmem:[#allocation7 + $0x70] sm:$0xff]
        %v729 = vld [vmem:[#allocation7 + $0x78] sm:$0xff]
        %v730 = vld [vmem:[#allocation7 + $0x80] sm:$0xff]
        %v731 = vld [vmem:[#allocation7 + $0x88] sm:$0xff]
        %v732 = vld [vmem:[#allocation7 + $0x90] sm:$0xff]
        %v733 = vld [vmem:[#allocation7 + $0x98] sm:$0xff]
        %v734 = vld [vmem:[#allocation7 + $0xa0] sm:$0xff]
        %v735 = vld [vmem:[#allocation7 + $0xa8] sm:$0xff]
        %v736 = vld [vmem:[#allocation7 + $0xb0] sm:$0xff]
        %v737 = vld [vmem:[#allocation7 + $0xb8] sm:$0xff]
        %v738 = vld [vmem:[#allocation7 + $0xc0] sm:$0xff]
        %v739 = vld [vmem:[#allocation7 + $0xc8] sm:$0xff]
        %v740 = vld [vmem:[#allocation7 + $0xd0] sm:$0xff]
        %v741 = vld [vmem:[#allocation7 + $0xd8] sm:$0xff]
        %v742 = vld [vmem:[#allocation7 + $0xe0] sm:$0xff]
        %v743 = vld [vmem:[#allocation7 + $0xe8] sm:$0xff]
        %v744 = vld [vmem:[#allocation7 + $0xf0] sm:$0xff]
        %v745 = vld [vmem:[#allocation7 + $0xf8] sm:$0xff]
        %v746 = vld [vmem:[#allocation7 + $0x100] sm:$0xff]
        %v747 = vld [vmem:[#allocation7 + $0x108] sm:$0xff]
        %v748 = vld [vmem:[#allocation7 + $0x110] sm:$0xff]
        %v749 = vld [vmem:[#allocation7 + $0x118] sm:$0xff]
        %v750 = vld [vmem:[#allocation7 + $0x120] sm:$0xff]
        %v751 = vld [vmem:[#allocation7 + $0x128] sm:$0xff]
        %v752 = vld [vmem:[#allocation7 + $0x130] sm:$0xff]
        %v753 = vld [vmem:[#allocation7 + $0x138] sm:$0xff]
        %v754 = vld [vmem:[#allocation7 + $0x140] sm:$0xff]
        %v755 = vld [vmem:[#allocation7 + $0x148] sm:$0xff]
        %v756 = vld [vmem:[#allocation7 + $0x150] sm:$0xff]
        %v757 = vld [vmem:[#allocation7 + $0x158] sm:$0xff]
        %v758 = vld [vmem:[#allocation7 + $0x160] sm:$0xff]
        %v759 = vld [vmem:[#allocation7 + $0x168] sm:$0xff]
        %v760 = vld [vmem:[#allocation7 + $0x170] sm:$0xff]
        %v761 = vld [vmem:[#allocation7 + $0x178] sm:$0xff]
        %v762 = vld [vmem:[#allocation7 + $0x180] sm:$0xff]
        %v763 = vld [vmem:[#allocation7 + $0x188] sm:$0xff]
        %v764 = vld [vmem:[#allocation7 + $0x190] sm:$0xff]
        %v765 = vld [vmem:[#allocation7 + $0x198] sm:$0xff]
        %v766 = vld [vmem:[#allocation7 + $0x1a0] sm:$0xff]
        %v767 = vld [vmem:[#allocation7 + $0x1a8] sm:$0xff]
        %v768 = vld [vmem:[#allocation7 + $0x1b0] sm:$0xff]
        %v769 = vld [vmem:[#allocation7 + $0x1b8] sm:$0xff]
        %v770 = vld [vmem:[#allocation7 + $0x1c0] sm:$0xff]
        %v771 = vld [vmem:[#allocation7 + $0x1c8] sm:$0xff]
        %v772 = vld [vmem:[#allocation7 + $0x1d0] sm:$0xff]
        %v773 = vld [vmem:[#allocation7 + $0x1d8] sm:$0xff]
        %v774 = vld [vmem:[#allocation7 + $0x1e0] sm:$0xff]
        %v775 = vld [vmem:[#allocation7 + $0x1e8] sm:$0xff]
        %v776 = vld [vmem:[#allocation7 + $0x1f0] sm:$0xff]
        %v777 = vld [vmem:[#allocation7 + $0x1f8] sm:$0xff]
        %v778 = vld [vmem:[%s3] sm:$0x3]
        %v780 = vlaneseq
        %v781 = vshrl.u32 %v780, 7
        %v782 = vsub.s32 0, %v781
        %v783 = vrot.slane %v778, %v782
        %v784 = vlaneseq
        %v785 = vshrl.u32 %v784, 7
        %v786 = vsub.s32 1, %v785
        %v787 = vrot.slane %v778, %v786
        %v854 = vunpack.c.l.b16 %v714
        %v855 = vunpack.c.h.b16 %v714
        %v856 = vunpack.c.l.b16 %v715
        %v857 = vunpack.c.h.b16 %v715
        %v858 = vunpack.c.l.b16 %v716
        %v859 = vunpack.c.h.b16 %v716
        %v860 = vunpack.c.l.b16 %v717
        %v861 = vunpack.c.h.b16 %v717
        %v862 = vunpack.c.l.b16 %v718
        %v863 = vunpack.c.h.b16 %v718
        %v864 = vunpack.c.l.b16 %v719
        %v865 = vunpack.c.h.b16 %v719
        %v866 = vunpack.c.l.b16 %v720
        %v867 = vunpack.c.h.b16 %v720
        %v868 = vunpack.c.l.b16 %v721
        %v869 = vunpack.c.h.b16 %v721
        %v870 = vunpack.c.l.b16 %v722
        %v871 = vunpack.c.h.b16 %v722
        %v872 = vunpack.c.l.b16 %v723
        %v873 = vunpack.c.h.b16 %v723
        %v874 = vunpack.c.l.b16 %v724
        %v875 = vunpack.c.h.b16 %v724
        %v876 = vunpack.c.l.b16 %v725
        %v877 = vunpack.c.h.b16 %v725
        %v878 = vunpack.c.l.b16 %v726
        %v879 = vunpack.c.h.b16 %v726
        %v880 = vunpack.c.l.b16 %v727
        %v881 = vunpack.c.h.b16 %v727
        %v882 = vunpack.c.l.b16 %v728
        %v883 = vunpack.c.h.b16 %v728
        %v884 = vunpack.c.l.b16 %v729
        %v885 = vunpack.c.h.b16 %v729
        %v886 = vunpack.c.l.b16 %v730
        %v887 = vunpack.c.h.b16 %v730
        %v888 = vunpack.c.l.b16 %v731
        %v889 = vunpack.c.h.b16 %v731
        %v890 = vunpack.c.l.b16 %v732
        %v891 = vunpack.c.h.b16 %v732
        %v892 = vunpack.c.l.b16 %v733
        %v893 = vunpack.c.h.b16 %v733
        %v894 = vunpack.c.l.b16 %v734
        %v895 = vunpack.c.h.b16 %v734
        %v896 = vunpack.c.l.b16 %v735
        %v897 = vunpack.c.h.b16 %v735
        %v898 = vunpack.c.l.b16 %v736
        %v899 = vunpack.c.h.b16 %v736
        %v900 = vunpack.c.l.b16 %v737
        %v901 = vunpack.c.h.b16 %v737
        %v902 = vunpack.c.l.b16 %v738
        %v903 = vunpack.c.h.b16 %v738
        %v904 = vunpack.c.l.b16 %v739
        %v905 = vunpack.c.h.b16 %v739
        %v906 = vunpack.c.l.b16 %v740
        %v907 = vunpack.c.h.b16 %v740
        %v908 = vunpack.c.l.b16 %v741
        %v909 = vunpack.c.h.b16 %v741
        %v910 = vunpack.c.l.b16 %v742
        %v911 = vunpack.c.h.b16 %v742
        %v912 = vunpack.c.l.b16 %v743
        %v913 = vunpack.c.h.b16 %v743
        %v914 = vunpack.c.l.b16 %v744
        %v915 = vunpack.c.h.b16 %v744
        %v916 = vunpack.c.l.b16 %v745
        %v917 = vunpack.c.h.b16 %v745
        %v918 = vunpack.c.l.b16 %v746
        %v919 = vunpack.c.h.b16 %v746
        %v920 = vunpack.c.l.b16 %v747
        %v921 = vunpack.c.h.b16 %v747
        %v922 = vunpack.c.l.b16 %v748
        %v923 = vunpack.c.h.b16 %v748
        %v924 = vunpack.c.l.b16 %v749
        %v925 = vunpack.c.h.b16 %v749
        %v926 = vunpack.c.l.b16 %v750
        %v927 = vunpack.c.h.b16 %v750
        %v928 = vunpack.c.l.b16 %v751
        %v929 = vunpack.c.h.b16 %v751
        %v930 = vunpack.c.l.b16 %v752
        %v931 = vunpack.c.h.b16 %v752
        %v932 = vunpack.c.l.b16 %v753
        %v933 = vunpack.c.h.b16 %v753
        %v934 = vunpack.c.l.b16 %v754
        %v935 = vunpack.c.h.b16 %v754
        %v936 = vunpack.c.l.b16 %v755
        %v937 = vunpack.c.h.b16 %v755
        %v938 = vunpack.c.l.b16 %v756
        %v939 = vunpack.c.h.b16 %v756
        %v940 = vunpack.c.l.b16 %v757
        %v941 = vunpack.c.h.b16 %v757
        %v942 = vunpack.c.l.b16 %v758
        %v943 = vunpack.c.h.b16 %v758
        %v944 = vunpack.c.l.b16 %v759
        %v945 = vunpack.c.h.b16 %v759
        %v946 = vunpack.c.l.b16 %v760
        %v947 = vunpack.c.h.b16 %v760
        %v948 = vunpack.c.l.b16 %v761
        %v949 = vunpack.c.h.b16 %v761
        %v950 = vunpack.c.l.b16 %v762
        %v951 = vunpack.c.h.b16 %v762
        %v952 = vunpack.c.l.b16 %v763
        %v953 = vunpack.c.h.b16 %v763
        %v954 = vunpack.c.l.b16 %v764
        %v955 = vunpack.c.h.b16 %v764
        %v956 = vunpack.c.l.b16 %v765
        %v957 = vunpack.c.h.b16 %v765
        %v958 = vunpack.c.l.b16 %v766
        %v959 = vunpack.c.h.b16 %v766
        %v960 = vunpack.c.l.b16 %v767
        %v961 = vunpack.c.h.b16 %v767
        %v962 = vunpack.c.l.b16 %v768
        %v963 = vunpack.c.h.b16 %v768
        %v964 = vunpack.c.l.b16 %v769
        %v965 = vunpack.c.h.b16 %v769
        %v966 = vunpack.c.l.b16 %v770
        %v967 = vunpack.c.h.b16 %v770
        %v968 = vunpack.c.l.b16 %v771
        %v969 = vunpack.c.h.b16 %v771
        %v970 = vunpack.c.l.b16 %v772
        %v971 = vunpack.c.h.b16 %v772
        %v972 = vunpack.c.l.b16 %v773
        %v973 = vunpack.c.h.b16 %v773
        %v974 = vunpack.c.l.b16 %v774
        %v975 = vunpack.c.h.b16 %v774
        %v976 = vunpack.c.l.b16 %v775
        %v977 = vunpack.c.h.b16 %v775
        %v978 = vunpack.c.l.b16 %v776
        %v979 = vunpack.c.h.b16 %v776
        %v980 = vunpack.c.l.b16 %v777
        %v981 = vunpack.c.h.b16 %v777
        %v982 = vpack.c.b16 %v856, %v854
        %v983 = vpack.c.b16 %v857, %v855
        %v984 = vpack.c.b16 %v860, %v858
        %v985 = vpack.c.b16 %v861, %v859
        %v986 = vpack.c.b16 %v864, %v862
        %v987 = vpack.c.b16 %v865, %v863
        %v988 = vpack.c.b16 %v868, %v866
        %v989 = vpack.c.b16 %v869, %v867
        %v990 = vpack.c.b16 %v872, %v870
        %v991 = vpack.c.b16 %v873, %v871
        %v992 = vpack.c.b16 %v876, %v874
        %v993 = vpack.c.b16 %v877, %v875
        %v994 = vpack.c.b16 %v880, %v878
        %v995 = vpack.c.b16 %v881, %v879
        %v996 = vpack.c.b16 %v884, %v882
        %v997 = vpack.c.b16 %v885, %v883
        %v998 = vpack.c.b16 %v888, %v886
        %v999 = vpack.c.b16 %v889, %v887
        %v1000 = vpack.c.b16 %v892, %v890
        %v1001 = vpack.c.b16 %v893, %v891
        %v1002 = vpack.c.b16 %v896, %v894
        %v1003 = vpack.c.b16 %v897, %v895
        %v1004 = vpack.c.b16 %v900, %v898
        %v1005 = vpack.c.b16 %v901, %v899
        %v1006 = vpack.c.b16 %v904, %v902
        %v1007 = vpack.c.b16 %v905, %v903
        %v1008 = vpack.c.b16 %v908, %v906
        %v1009 = vpack.c.b16 %v909, %v907
        %v1010 = vpack.c.b16 %v912, %v910
        %v1011 = vpack.c.b16 %v913, %v911
        %v1012 = vpack.c.b16 %v916, %v914
        %v1013 = vpack.c.b16 %v917, %v915
        %v1014 = vpack.c.b16 %v920, %v918
        %v1015 = vpack.c.b16 %v921, %v919
        %v1016 = vpack.c.b16 %v924, %v922
        %v1017 = vpack.c.b16 %v925, %v923
        %v1018 = vpack.c.b16 %v928, %v926
        %v1019 = vpack.c.b16 %v929, %v927
        %v1020 = vpack.c.b16 %v932, %v930
        %v1021 = vpack.c.b16 %v933, %v931
        %v1022 = vpack.c.b16 %v936, %v934
        %v1023 = vpack.c.b16 %v937, %v935
        %v1024 = vpack.c.b16 %v940, %v938
        %v1025 = vpack.c.b16 %v941, %v939
        %v1026 = vpack.c.b16 %v944, %v942
        %v1027 = vpack.c.b16 %v945, %v943
        %v1028 = vpack.c.b16 %v948, %v946
        %v1029 = vpack.c.b16 %v949, %v947
        %v1030 = vpack.c.b16 %v952, %v950
        %v1031 = vpack.c.b16 %v953, %v951
        %v1032 = vpack.c.b16 %v956, %v954
        %v1033 = vpack.c.b16 %v957, %v955
        %v1034 = vpack.c.b16 %v960, %v958
        %v1035 = vpack.c.b16 %v961, %v959
        %v1036 = vpack.c.b16 %v964, %v962
        %v1037 = vpack.c.b16 %v965, %v963
        %v1038 = vpack.c.b16 %v968, %v966
        %v1039 = vpack.c.b16 %v969, %v967
        %v1040 = vpack.c.b16 %v972, %v970
        %v1041 = vpack.c.b16 %v973, %v971
        %v1042 = vpack.c.b16 %v976, %v974
        %v1043 = vpack.c.b16 %v977, %v975
        %v1044 = vpack.c.b16 %v980, %v978
        %v1045 = vpack.c.b16 %v981, %v979
        %1110 = vmatprep.subr.bf16.mxu0 %v983
        %1111 = vmatpush1.bf16.msra.mxu0 %v982
        %1112 = vmatprep.subr.bf16.mxu0 %v985
        %1113 = vmatpush1.bf16.msra.mxu0 %v984
        %1114 = vmatprep.subr.bf16.mxu0 %v987
        %1115 = vmatpush1.bf16.msra.mxu0 %v986
        %1116 = vmatprep.subr.bf16.mxu0 %v989
        %1117 = vmatpush1.bf16.msra.mxu0 %v988
        %1118 = vmatprep.subr.bf16.mxu0 %v991
        %1119 = vmatpush1.bf16.msra.mxu0 %v990
        %1120 = vmatprep.subr.bf16.mxu0 %v993
        %1121 = vmatpush1.bf16.msra.mxu0 %v992
        %1122 = vmatprep.subr.bf16.mxu0 %v995
        %1123 = vmatpush1.bf16.msra.mxu0 %v994
        %1124 = vmatprep.subr.bf16.mxu0 %v997
        %1125 = vmatpush1.bf16.msra.mxu0 %v996
        %1126 = vmatprep.subr.bf16.mxu0 %v999
        %1127 = vmatpush1.bf16.msra.mxu0 %v998
        %1128 = vmatprep.subr.bf16.mxu0 %v1001
        %1129 = vmatpush1.bf16.msra.mxu0 %v1000
        %1130 = vmatprep.subr.bf16.mxu0 %v1003
        %1131 = vmatpush1.bf16.msra.mxu0 %v1002
        %1132 = vmatprep.subr.bf16.mxu0 %v1005
        %1133 = vmatpush1.bf16.msra.mxu0 %v1004
        %1134 = vmatprep.subr.bf16.mxu0 %v1007
        %1135 = vmatpush1.bf16.msra.mxu0 %v1006
        %1136 = vmatprep.subr.bf16.mxu0 %v1009
        %1137 = vmatpush1.bf16.msra.mxu0 %v1008
        %1138 = vmatprep.subr.bf16.mxu0 %v1011
        %1139 = vmatpush1.bf16.msra.mxu0 %v1010
        %1140 = vmatprep.subr.bf16.mxu0 %v1013
        %1141 = vmatpush1.bf16.msra.mxu0 %v1012
        %1142 = vmatprep.mubr.bf16.mxu0 %v651
        %1143 = vmatmul.mubr.bf16.gmra.mrb[0].mxu0 %v650
        %v1144 = vpop.f32.mrb[0].mxu0
        %v1145 = vadd.f32 %v783, %v1144
        %v1146 = vpop.f32.mrb[0].mxu0
        %v1147 = vadd.f32 %v787, %v1146
        %v1148 = vpop.f32.mrb[0].mxu0
        %v1149 = vadd.f32 %v783, %v1148
        %v1150 = vpop.f32.mrb[0].mxu0
        %v1151 = vadd.f32 %v787, %v1150
        %1152 = vmatprep.mubr.bf16.mxu0 %v655
        %1153 = vmatmul.mubr.bf16.gmra.mrb[0].mxu0 %v654
        %v1154 = vpop.f32.mrb[0].mxu0
        %v1155 = vadd.f32 %v783, %v1154
        %v1156 = vpop.f32.mrb[0].mxu0
        %v1157 = vadd.f32 %v787, %v1156
        %v1158 = vpop.f32.mrb[0].mxu0
        %v1159 = vadd.f32 %v783, %v1158
        %v1160 = vpop.f32.mrb[0].mxu0
        %v1161 = vadd.f32 %v787, %v1160
        %1162 = vmatprep.mubr.bf16.mxu0 %v659
        %1163 = vmatmul.mubr.bf16.gmra.mrb[0].mxu0 %v658
        %v1164 = vpop.f32.mrb[0].mxu0
        %v1165 = vadd.f32 %v783, %v1164
        %v1166 = vpop.f32.mrb[0].mxu0
        %v1167 = vadd.f32 %v787, %v1166
        %v1168 = vpop.f32.mrb[0].mxu0
        %v1169 = vadd.f32 %v783, %v1168
        %v1170 = vpop.f32.mrb[0].mxu0
        %v1171 = vadd.f32 %v787, %v1170
        %1172 = vmatprep.mubr.bf16.mxu0 %v663
        %1173 = vmatmul.mubr.bf16.gmra.mrb[0].mxu0 %v662
        %v1174 = vpop.f32.mrb[0].mxu0
        %v1175 = vadd.f32 %v783, %v1174
        %v1176 = vpop.f32.mrb[0].mxu0
        %v1177 = vadd.f32 %v787, %v1176
        %v1178 = vpop.f32.mrb[0].mxu0
        %v1179 = vadd.f32 %v783, %v1178
        %v1180 = vpop.f32.mrb[0].mxu0
        %v1181 = vadd.f32 %v787, %v1180
        %1182 = vmatprep.mubr.bf16.mxu0 %v667
        %1183 = vmatmul.mubr.bf16.gmra.mrb[0].mxu0 %v666
        %v1184 = vpop.f32.mrb[0].mxu0
        %v1185 = vadd.f32 %v783, %v1184
        %v1186 = vpop.f32.mrb[0].mxu0
        %v1187 = vadd.f32 %v787, %v1186
        %v1188 = vpop.f32.mrb[0].mxu0
        %v1189 = vadd.f32 %v783, %v1188
        %v1190 = vpop.f32.mrb[0].mxu0
        %v1191 = vadd.f32 %v787, %v1190
        %1192 = vmatprep.mubr.bf16.mxu0 %v671
        %1193 = vmatmul.mubr.bf16.gmra.mrb[0].mxu0 %v670
        %v1194 = vpop.f32.mrb[0].mxu0
        %v1195 = vadd.f32 %v783, %v1194
        %v1196 = vpop.f32.mrb[0].mxu0
        %v1197 = vadd.f32 %v787, %v1196
        %v1198 = vpop.f32.mrb[0].mxu0
        %v1199 = vadd.f32 %v783, %v1198
        %v1200 = vpop.f32.mrb[0].mxu0
        %v1201 = vadd.f32 %v787, %v1200
        %1202 = vmatprep.mubr.bf16.mxu0 %v675
        %1203 = vmatmul.mubr.bf16.gmra.mrb[0].mxu0 %v674
        %v1204 = vpop.f32.mrb[0].mxu0
        %v1205 = vadd.f32 %v783, %v1204
        %v1206 = vpop.f32.mrb[0].mxu0
        %v1207 = vadd.f32 %v787, %v1206
        %v1208 = vpop.f32.mrb[0].mxu0
        %v1209 = vadd.f32 %v783, %v1208
        %v1210 = vpop.f32.mrb[0].mxu0
        %v1211 = vadd.f32 %v787, %v1210
        %1212 = vmatprep.mubr.bf16.mxu0 %v679
        %1213 = vmatmul.mubr.bf16.gmra.mrb[0].mxu0 %v678
        %v1214 = vpop.f32.mrb[0].mxu0
        %v1215 = vadd.f32 %v783, %v1214
        %v1216 = vpop.f32.mrb[0].mxu0
        %v1217 = vadd.f32 %v787, %v1216
        %v1218 = vpop.f32.mrb[0].mxu0
        %v1219 = vadd.f32 %v783, %v1218
        %v1220 = vpop.f32.mrb[0].mxu0
        %v1221 = vadd.f32 %v787, %v1220
        %1222 = vmatprep.mubr.bf16.mxu0 %v683
        %1223 = vmatmul.mubr.bf16.gmra.mrb[0].mxu0 %v682
        %v1224 = vpop.f32.mrb[0].mxu0
        %v1225 = vadd.f32 %v783, %v1224
        %v1226 = vpop.f32.mrb[0].mxu0
        %v1227 = vadd.f32 %v787, %v1226
        %v1228 = vpop.f32.mrb[0].mxu0
        %v1229 = vadd.f32 %v783, %v1228
        %v1230 = vpop.f32.mrb[0].mxu0
        %v1231 = vadd.f32 %v787, %v1230
        %1232 = vmatprep.mubr.bf16.mxu0 %v687
        %1233 = vmatmul.mubr.bf16.gmra.mrb[0].mxu0 %v686
        %v1234 = vpop.f32.mrb[0].mxu0
        %v1235 = vadd.f32 %v783, %v1234
        %v1236 = vpop.f32.mrb[0].mxu0
        %v1237 = vadd.f32 %v787, %v1236
        %v1238 = vpop.f32.mrb[0].mxu0
        %v1239 = vadd.f32 %v783, %v1238
        %v1240 = vpop.f32.mrb[0].mxu0
        %v1241 = vadd.f32 %v787, %v1240
        %1242 = vmatprep.mubr.bf16.mxu0 %v691
        %1243 = vmatmul.mubr.bf16.gmra.mrb[0].mxu0 %v690
        %v1244 = vpop.f32.mrb[0].mxu0
        %v1245 = vadd.f32 %v783, %v1244
        %v1246 = vpop.f32.mrb[0].mxu0
        %v1247 = vadd.f32 %v787, %v1246
        %v1248 = vpop.f32.mrb[0].mxu0
        %v1249 = vadd.f32 %v783, %v1248
        %v1250 = vpop.f32.mrb[0].mxu0
        %v1251 = vadd.f32 %v787, %v1250
        %1252 = vmatprep.mubr.bf16.mxu0 %v695
        %1253 = vmatmul.mubr.bf16.gmra.mrb[0].mxu0 %v694
        %v1254 = vpop.f32.mrb[0].mxu0
        %v1255 = vadd.f32 %v783, %v1254
        %v1256 = vpop.f32.mrb[0].mxu0
        %v1257 = vadd.f32 %v787, %v1256
        %v1258 = vpop.f32.mrb[0].mxu0
        %v1259 = vadd.f32 %v783, %v1258
        %v1260 = vpop.f32.mrb[0].mxu0
        %v1261 = vadd.f32 %v787, %v1260
        %1262 = vmatprep.mubr.bf16.mxu0 %v699
        %1263 = vmatmul.mubr.bf16.gmra.mrb[0].mxu0 %v698
        %v1264 = vpop.f32.mrb[0].mxu0
        %v1265 = vadd.f32 %v783, %v1264
        %v1266 = vpop.f32.mrb[0].mxu0
        %v1267 = vadd.f32 %v787, %v1266
        %v1268 = vpop.f32.mrb[0].mxu0
        %v1269 = vadd.f32 %v783, %v1268
        %v1270 = vpop.f32.mrb[0].mxu0
        %v1271 = vadd.f32 %v787, %v1270
        %1272 = vmatprep.mubr.bf16.mxu0 %v703
        %1273 = vmatmul.mubr.bf16.gmra.mrb[0].mxu0 %v702
        %v1274 = vpop.f32.mrb[0].mxu0
        %v1275 = vadd.f32 %v783, %v1274
        %v1276 = vpop.f32.mrb[0].mxu0
        %v1277 = vadd.f32 %v787, %v1276
        %v1278 = vpop.f32.mrb[0].mxu0
        %v1279 = vadd.f32 %v783, %v1278
        %v1280 = vpop.f32.mrb[0].mxu0
        %v1281 = vadd.f32 %v787, %v1280
        %1282 = vmatprep.mubr.bf16.mxu0 %v707
        %1283 = vmatmul.mubr.bf16.gmra.mrb[0].mxu0 %v706
        %v1284 = vpop.f32.mrb[0].mxu0
        %v1285 = vadd.f32 %v783, %v1284
        %v1286 = vpop.f32.mrb[0].mxu0
        %v1287 = vadd.f32 %v787, %v1286
        %v1288 = vpop.f32.mrb[0].mxu0
        %v1289 = vadd.f32 %v783, %v1288
        %v1290 = vpop.f32.mrb[0].mxu0
        %v1291 = vadd.f32 %v787, %v1290
        %1292 = vmatprep.mubr.bf16.mxu0 %v711
        %1293 = vmatmul.mubr.bf16.gmra.mrb[0].mxu0 %v710
        %v1294 = vpop.f32.mrb[0].mxu0
        %v1295 = vadd.f32 %v783, %v1294
        %v1296 = vpop.f32.mrb[0].mxu0
        %v1297 = vadd.f32 %v787, %v1296
        %v1298 = vpop.f32.mrb[0].mxu0
        %v1299 = vadd.f32 %v783, %v1298
        %v1300 = vpop.f32.mrb[0].mxu0
        %v1301 = vadd.f32 %v787, %v1300
        %1302 = vdwg.mxu0
        %1303 = vmatprep.subr.bf16.mxu0 %v1015
        %1304 = vmatpush1.bf16.msra.mxu0 %v1014
        %1305 = vmatprep.subr.bf16.mxu0 %v1017
        %1306 = vmatpush1.bf16.msra.mxu0 %v1016
        %1307 = vmatprep.subr.bf16.mxu0 %v1019
        %1308 = vmatpush1.bf16.msra.mxu0 %v1018
        %1309 = vmatprep.subr.bf16.mxu0 %v1021
        %1310 = vmatpush1.bf16.msra.mxu0 %v1020
        %1311 = vmatprep.subr.bf16.mxu0 %v1023
        %1312 = vmatpush1.bf16.msra.mxu0 %v1022
        %1313 = vmatprep.subr.bf16.mxu0 %v1025
        %1314 = vmatpush1.bf16.msra.mxu0 %v1024
        %1315 = vmatprep.subr.bf16.mxu0 %v1027
        %1316 = vmatpush1.bf16.msra.mxu0 %v1026
        %1317 = vmatprep.subr.bf16.mxu0 %v1029
        %1318 = vmatpush1.bf16.msra.mxu0 %v1028
        %1319 = vmatprep.subr.bf16.mxu0 %v1031
        %1320 = vmatpush1.bf16.msra.mxu0 %v1030
        %1321 = vmatprep.subr.bf16.mxu0 %v1033
        %1322 = vmatpush1.bf16.msra.mxu0 %v1032
        %1323 = vmatprep.subr.bf16.mxu0 %v1035
        %1324 = vmatpush1.bf16.msra.mxu0 %v1034
        %1325 = vmatprep.subr.bf16.mxu0 %v1037
        %1326 = vmatpush1.bf16.msra.mxu0 %v1036
        %1327 = vmatprep.subr.bf16.mxu0 %v1039
        %1328 = vmatpush1.bf16.msra.mxu0 %v1038
        %1329 = vmatprep.subr.bf16.mxu0 %v1041
        %1330 = vmatpush1.bf16.msra.mxu0 %v1040
        %1331 = vmatprep.subr.bf16.mxu0 %v1043
        %1332 = vmatpush1.bf16.msra.mxu0 %v1042
        %1333 = vmatprep.subr.bf16.mxu0 %v1045
        %1334 = vmatpush1.bf16.msra.mxu0 %v1044
        %1335 = vmatprep.mubr.bf16.mxu0 %v653
        %1336 = vmatmul.mubr.bf16.gmra.mrb[0].mxu0 %v652
        %v1337 = vpop.f32.mrb[0].mxu0
        %v1338 = vadd.f32 %v1145, %v1337
        %v1339 = vpop.f32.mrb[0].mxu0
        %v1340 = vadd.f32 %v1147, %v1339
        %v1341 = vpop.f32.mrb[0].mxu0
        %v1342 = vadd.f32 %v1149, %v1341
        %v1343 = vpop.f32.mrb[0].mxu0
        %v1344 = vadd.f32 %v1151, %v1343
        %1345 = vmatprep.mubr.bf16.mxu0 %v657
        %1346 = vmatmul.mubr.bf16.gmra.mrb[0].mxu0 %v656
        %v1347 = vpop.f32.mrb[0].mxu0
        %v1348 = vadd.f32 %v1155, %v1347
        %v1349 = vpop.f32.mrb[0].mxu0
        %v1350 = vadd.f32 %v1157, %v1349
        %v1351 = vpop.f32.mrb[0].mxu0
        %v1352 = vadd.f32 %v1159, %v1351
        %v1353 = vpop.f32.mrb[0].mxu0
        %v1354 = vadd.f32 %v1161, %v1353
        %1355 = vmatprep.mubr.bf16.mxu0 %v661
        %1356 = vmatmul.mubr.bf16.gmra.mrb[0].mxu0 %v660
        %v1357 = vpop.f32.mrb[0].mxu0
        %v1358 = vadd.f32 %v1165, %v1357
        %v1359 = vpop.f32.mrb[0].mxu0
        %v1360 = vadd.f32 %v1167, %v1359
        %v1361 = vpop.f32.mrb[0].mxu0
        %v1362 = vadd.f32 %v1169, %v1361
        %v1363 = vpop.f32.mrb[0].mxu0
        %v1364 = vadd.f32 %v1171, %v1363
        %1365 = vmatprep.mubr.bf16.mxu0 %v665
        %1366 = vmatmul.mubr.bf16.gmra.mrb[0].mxu0 %v664
        %v1367 = vpop.f32.mrb[0].mxu0
        %v1368 = vadd.f32 %v1175, %v1367
        %v1369 = vpop.f32.mrb[0].mxu0
        %v1370 = vadd.f32 %v1177, %v1369
        %v1371 = vpop.f32.mrb[0].mxu0
        %v1372 = vadd.f32 %v1179, %v1371
        %v1373 = vpop.f32.mrb[0].mxu0
        %v1374 = vadd.f32 %v1181, %v1373
        %1375 = vmatprep.mubr.bf16.mxu0 %v669
        %1376 = vmatmul.mubr.bf16.gmra.mrb[0].mxu0 %v668
        %v1377 = vpop.f32.mrb[0].mxu0
        %v1378 = vadd.f32 %v1185, %v1377
        %v1379 = vpop.f32.mrb[0].mxu0
        %v1380 = vadd.f32 %v1187, %v1379
        %v1381 = vpop.f32.mrb[0].mxu0
        %v1382 = vadd.f32 %v1189, %v1381
        %v1383 = vpop.f32.mrb[0].mxu0
        %v1384 = vadd.f32 %v1191, %v1383
        %1385 = vmatprep.mubr.bf16.mxu0 %v673
        %1386 = vmatmul.mubr.bf16.gmra.mrb[0].mxu0 %v672
        %v1387 = vpop.f32.mrb[0].mxu0
        %v1388 = vadd.f32 %v1195, %v1387
        %v1389 = vpop.f32.mrb[0].mxu0
        %v1390 = vadd.f32 %v1197, %v1389
        %v1391 = vpop.f32.mrb[0].mxu0
        %v1392 = vadd.f32 %v1199, %v1391
        %v1393 = vpop.f32.mrb[0].mxu0
        %v1394 = vadd.f32 %v1201, %v1393
        %1395 = vmatprep.mubr.bf16.mxu0 %v677
        %1396 = vmatmul.mubr.bf16.gmra.mrb[0].mxu0 %v676
        %v1397 = vpop.f32.mrb[0].mxu0
        %v1398 = vadd.f32 %v1205, %v1397
        %v1399 = vpop.f32.mrb[0].mxu0
        %v1400 = vadd.f32 %v1207, %v1399
        %v1401 = vpop.f32.mrb[0].mxu0
        %v1402 = vadd.f32 %v1209, %v1401
        %v1403 = vpop.f32.mrb[0].mxu0
        %v1404 = vadd.f32 %v1211, %v1403
        %1405 = vmatprep.mubr.bf16.mxu0 %v681
        %1406 = vmatmul.mubr.bf16.gmra.mrb[0].mxu0 %v680
        %v1407 = vpop.f32.mrb[0].mxu0
        %v1408 = vadd.f32 %v1215, %v1407
        %v1409 = vpop.f32.mrb[0].mxu0
        %v1410 = vadd.f32 %v1217, %v1409
        %v1411 = vpop.f32.mrb[0].mxu0
        %v1412 = vadd.f32 %v1219, %v1411
        %v1413 = vpop.f32.mrb[0].mxu0
        %v1414 = vadd.f32 %v1221, %v1413
        %1415 = vmatprep.mubr.bf16.mxu0 %v685
        %1416 = vmatmul.mubr.bf16.gmra.mrb[0].mxu0 %v684
        %v1417 = vpop.f32.mrb[0].mxu0
        %v1418 = vadd.f32 %v1225, %v1417
        %v1419 = vpop.f32.mrb[0].mxu0
        %v1420 = vadd.f32 %v1227, %v1419
        %v1421 = vpop.f32.mrb[0].mxu0
        %v1422 = vadd.f32 %v1229, %v1421
        %v1423 = vpop.f32.mrb[0].mxu0
        %v1424 = vadd.f32 %v1231, %v1423
        %1425 = vmatprep.mubr.bf16.mxu0 %v689
        %1426 = vmatmul.mubr.bf16.gmra.mrb[0].mxu0 %v688
        %v1427 = vpop.f32.mrb[0].mxu0
        %v1428 = vadd.f32 %v1235, %v1427
        %v1429 = vpop.f32.mrb[0].mxu0
        %v1430 = vadd.f32 %v1237, %v1429
        %v1431 = vpop.f32.mrb[0].mxu0
        %v1432 = vadd.f32 %v1239, %v1431
        %v1433 = vpop.f32.mrb[0].mxu0
        %v1434 = vadd.f32 %v1241, %v1433
        %1435 = vmatprep.mubr.bf16.mxu0 %v693
        %1436 = vmatmul.mubr.bf16.gmra.mrb[0].mxu0 %v692
        %v1437 = vpop.f32.mrb[0].mxu0
        %v1438 = vadd.f32 %v1245, %v1437
        %v1439 = vpop.f32.mrb[0].mxu0
        %v1440 = vadd.f32 %v1247, %v1439
        %v1441 = vpop.f32.mrb[0].mxu0
        %v1442 = vadd.f32 %v1249, %v1441
        %v1443 = vpop.f32.mrb[0].mxu0
        %v1444 = vadd.f32 %v1251, %v1443
        %1445 = vmatprep.mubr.bf16.mxu0 %v697
        %1446 = vmatmul.mubr.bf16.gmra.mrb[0].mxu0 %v696
        %v1447 = vpop.f32.mrb[0].mxu0
        %v1448 = vadd.f32 %v1255, %v1447
        %v1449 = vpop.f32.mrb[0].mxu0
        %v1450 = vadd.f32 %v1257, %v1449
        %v1451 = vpop.f32.mrb[0].mxu0
        %v1452 = vadd.f32 %v1259, %v1451
        %v1453 = vpop.f32.mrb[0].mxu0
        %v1454 = vadd.f32 %v1261, %v1453
        %1455 = vmatprep.mubr.bf16.mxu0 %v701
        %1456 = vmatmul.mubr.bf16.gmra.mrb[0].mxu0 %v700
        %v1457 = vpop.f32.mrb[0].mxu0
        %v1458 = vadd.f32 %v1265, %v1457
        %v1459 = vpop.f32.mrb[0].mxu0
        %v1460 = vadd.f32 %v1267, %v1459
        %v1461 = vpop.f32.mrb[0].mxu0
        %v1462 = vadd.f32 %v1269, %v1461
        %v1463 = vpop.f32.mrb[0].mxu0
        %v1464 = vadd.f32 %v1271, %v1463
        %1465 = vmatprep.mubr.bf16.mxu0 %v705
        %1466 = vmatmul.mubr.bf16.gmra.mrb[0].mxu0 %v704
        %v1467 = vpop.f32.mrb[0].mxu0
        %v1468 = vadd.f32 %v1275, %v1467
        %v1469 = vpop.f32.mrb[0].mxu0
        %v1470 = vadd.f32 %v1277, %v1469
        %v1471 = vpop.f32.mrb[0].mxu0
        %v1472 = vadd.f32 %v1279, %v1471
        %v1473 = vpop.f32.mrb[0].mxu0
        %v1474 = vadd.f32 %v1281, %v1473
        %1475 = vmatprep.mubr.bf16.mxu0 %v709
        %1476 = vmatmul.mubr.bf16.gmra.mrb[0].mxu0 %v708
        %v1477 = vpop.f32.mrb[0].mxu0
        %v1478 = vadd.f32 %v1285, %v1477
        %v1479 = vpop.f32.mrb[0].mxu0
        %v1480 = vadd.f32 %v1287, %v1479
        %v1481 = vpop.f32.mrb[0].mxu0
        %v1482 = vadd.f32 %v1289, %v1481
        %v1483 = vpop.f32.mrb[0].mxu0
        %v1484 = vadd.f32 %v1291, %v1483
        %1485 = vmatprep.mubr.bf16.mxu0 %v713
        %1486 = vmatmul.mubr.bf16.gmra.mrb[0].mxu0 %v712
        %v1487 = vpop.f32.mrb[0].mxu0
        %v1488 = vadd.f32 %v1295, %v1487
        %v1489 = vpop.f32.mrb[0].mxu0
        %v1490 = vadd.f32 %v1297, %v1489
        %v1491 = vpop.f32.mrb[0].mxu0
        %v1492 = vadd.f32 %v1299, %v1491
        %v1493 = vpop.f32.mrb[0].mxu0
        %v1494 = vadd.f32 %v1301, %v1493
        %1495 = vdwg.mxu0
        %v1496 = vmax.f32 %v1338, 0.0
        %v1497 = vmax.f32 %v1340, 0.0
        %v1498 = vmax.f32 %v1342, 0.0
        %v1499 = vmax.f32 %v1344, 0.0
        %v1500 = vmax.f32 %v1348, 0.0
        %v1501 = vmax.f32 %v1350, 0.0
        %v1502 = vmax.f32 %v1352, 0.0
        %v1503 = vmax.f32 %v1354, 0.0
        %v1504 = vmax.f32 %v1358, 0.0
        %v1505 = vmax.f32 %v1360, 0.0
        %v1506 = vmax.f32 %v1362, 0.0
        %v1507 = vmax.f32 %v1364, 0.0
        %v1508 = vmax.f32 %v1368, 0.0
        %v1509 = vmax.f32 %v1370, 0.0
        %v1510 = vmax.f32 %v1372, 0.0
        %v1511 = vmax.f32 %v1374, 0.0
        %v1512 = vmax.f32 %v1378, 0.0
        %v1513 = vmax.f32 %v1380, 0.0
        %v1514 = vmax.f32 %v1382, 0.0
        %v1515 = vmax.f32 %v1384, 0.0
        %v1516 = vmax.f32 %v1388, 0.0
        %v1517 = vmax.f32 %v1390, 0.0
        %v1518 = vmax.f32 %v1392, 0.0
        %v1519 = vmax.f32 %v1394, 0.0
        %v1520 = vmax.f32 %v1398, 0.0
        %v1521 = vmax.f32 %v1400, 0.0
        %v1522 = vmax.f32 %v1402, 0.0
        %v1523 = vmax.f32 %v1404, 0.0
        %v1524 = vmax.f32 %v1408, 0.0
        %v1525 = vmax.f32 %v1410, 0.0
        %v1526 = vmax.f32 %v1412, 0.0
        %v1527 = vmax.f32 %v1414, 0.0
        %v1528 = vmax.f32 %v1418, 0.0
        %v1529 = vmax.f32 %v1420, 0.0
        %v1530 = vmax.f32 %v1422, 0.0
        %v1531 = vmax.f32 %v1424, 0.0
        %v1532 = vmax.f32 %v1428, 0.0
        %v1533 = vmax.f32 %v1430, 0.0
        %v1534 = vmax.f32 %v1432, 0.0
        %v1535 = vmax.f32 %v1434, 0.0
        %v1536 = vmax.f32 %v1438, 0.0
        %v1537 = vmax.f32 %v1440, 0.0
        %v1538 = vmax.f32 %v1442, 0.0
        %v1539 = vmax.f32 %v1444, 0.0
        %v1540 = vmax.f32 %v1448, 0.0
        %v1541 = vmax.f32 %v1450, 0.0
        %v1542 = vmax.f32 %v1452, 0.0
        %v1543 = vmax.f32 %v1454, 0.0
        %v1544 = vmax.f32 %v1458, 0.0
        %v1545 = vmax.f32 %v1460, 0.0
        %v1546 = vmax.f32 %v1462, 0.0
        %v1547 = vmax.f32 %v1464, 0.0
        %v1548 = vmax.f32 %v1468, 0.0
        %v1549 = vmax.f32 %v1470, 0.0
        %v1550 = vmax.f32 %v1472, 0.0
        %v1551 = vmax.f32 %v1474, 0.0
        %v1552 = vmax.f32 %v1478, 0.0
        %v1553 = vmax.f32 %v1480, 0.0
        %v1554 = vmax.f32 %v1482, 0.0
        %v1555 = vmax.f32 %v1484, 0.0
        %v1556 = vmax.f32 %v1488, 0.0
        %v1557 = vmax.f32 %v1490, 0.0
        %v1558 = vmax.f32 %v1492, 0.0
        %v1559 = vmax.f32 %v1494, 0.0
        %v1560 = vld [vmem:[#allocation8] sm:$0xff]
        %v1561 = vld [vmem:[#allocation8 + $0x8] sm:$0xff]
        %v1562 = vld [vmem:[#allocation8 + $0x10] sm:$0xff]
        %v1563 = vld [vmem:[#allocation8 + $0x18] sm:$0xff]
        %v1564 = vld [vmem:[#allocation8 + $0x20] sm:$0xff]
        %v1565 = vld [vmem:[#allocation8 + $0x28] sm:$0xff]
        %v1566 = vld [vmem:[#allocation8 + $0x30] sm:$0xff]
        %v1567 = vld [vmem:[#allocation8 + $0x38] sm:$0xff]
        %v1568 = vld [vmem:[#allocation8 + $0x40] sm:$0xff]
        %v1569 = vld [vmem:[#allocation8 + $0x48] sm:$0xff]
        %v1570 = vld [vmem:[#allocation8 + $0x50] sm:$0xff]
        %v1571 = vld [vmem:[#allocation8 + $0x58] sm:$0xff]
        %v1572 = vld [vmem:[#allocation8 + $0x60] sm:$0xff]
        %v1573 = vld [vmem:[#allocation8 + $0x68] sm:$0xff]
        %v1574 = vld [vmem:[#allocation8 + $0x70] sm:$0xff]
        %v1575 = vld [vmem:[#allocation8 + $0x78] sm:$0xff]
        %v1576 = vld [vmem:[#allocation8 + $0x80] sm:$0xff]
        %v1577 = vld [vmem:[#allocation8 + $0x88] sm:$0xff]
        %v1578 = vld [vmem:[#allocation8 + $0x90] sm:$0xff]
        %v1579 = vld [vmem:[#allocation8 + $0x98] sm:$0xff]
        %v1580 = vld [vmem:[#allocation8 + $0xa0] sm:$0xff]
        %v1581 = vld [vmem:[#allocation8 + $0xa8] sm:$0xff]
        %v1582 = vld [vmem:[#allocation8 + $0xb0] sm:$0xff]
        %v1583 = vld [vmem:[#allocation8 + $0xb8] sm:$0xff]
        %v1584 = vld [vmem:[#allocation8 + $0xc0] sm:$0xff]
        %v1585 = vld [vmem:[#allocation8 + $0xc8] sm:$0xff]
        %v1586 = vld [vmem:[#allocation8 + $0xd0] sm:$0xff]
        %v1587 = vld [vmem:[#allocation8 + $0xd8] sm:$0xff]
        %v1588 = vld [vmem:[#allocation8 + $0xe0] sm:$0xff]
        %v1589 = vld [vmem:[#allocation8 + $0xe8] sm:$0xff]
        %v1590 = vld [vmem:[#allocation8 + $0xf0] sm:$0xff]
        %v1591 = vld [vmem:[#allocation8 + $0xf8] sm:$0xff]
        %v1592 = vld [vmem:[#allocation8 + $0x100] sm:$0xff]
        %v1593 = vld [vmem:[#allocation8 + $0x108] sm:$0xff]
        %v1594 = vld [vmem:[#allocation8 + $0x110] sm:$0xff]
        %v1595 = vld [vmem:[#allocation8 + $0x118] sm:$0xff]
        %v1596 = vld [vmem:[#allocation8 + $0x120] sm:$0xff]
        %v1597 = vld [vmem:[#allocation8 + $0x128] sm:$0xff]
        %v1598 = vld [vmem:[#allocation8 + $0x130] sm:$0xff]
        %v1599 = vld [vmem:[#allocation8 + $0x138] sm:$0xff]
        %v1600 = vld [vmem:[#allocation8 + $0x140] sm:$0xff]
        %v1601 = vld [vmem:[#allocation8 + $0x148] sm:$0xff]
        %v1602 = vld [vmem:[#allocation8 + $0x150] sm:$0xff]
        %v1603 = vld [vmem:[#allocation8 + $0x158] sm:$0xff]
        %v1604 = vld [vmem:[#allocation8 + $0x160] sm:$0xff]
        %v1605 = vld [vmem:[#allocation8 + $0x168] sm:$0xff]
        %v1606 = vld [vmem:[#allocation8 + $0x170] sm:$0xff]
        %v1607 = vld [vmem:[#allocation8 + $0x178] sm:$0xff]
        %v1608 = vld [vmem:[#allocation8 + $0x180] sm:$0xff]
        %v1609 = vld [vmem:[#allocation8 + $0x188] sm:$0xff]
        %v1610 = vld [vmem:[#allocation8 + $0x190] sm:$0xff]
        %v1611 = vld [vmem:[#allocation8 + $0x198] sm:$0xff]
        %v1612 = vld [vmem:[#allocation8 + $0x1a0] sm:$0xff]
        %v1613 = vld [vmem:[#allocation8 + $0x1a8] sm:$0xff]
        %v1614 = vld [vmem:[#allocation8 + $0x1b0] sm:$0xff]
        %v1615 = vld [vmem:[#allocation8 + $0x1b8] sm:$0xff]
        %v1616 = vld [vmem:[#allocation8 + $0x1c0] sm:$0xff]
        %v1617 = vld [vmem:[#allocation8 + $0x1c8] sm:$0xff]
        %v1618 = vld [vmem:[#allocation8 + $0x1d0] sm:$0xff]
        %v1619 = vld [vmem:[#allocation8 + $0x1d8] sm:$0xff]
        %v1620 = vld [vmem:[#allocation8 + $0x1e0] sm:$0xff]
        %v1621 = vld [vmem:[#allocation8 + $0x1e8] sm:$0xff]
        %v1622 = vld [vmem:[#allocation8 + $0x1f0] sm:$0xff]
        %v1623 = vld [vmem:[#allocation8 + $0x1f8] sm:$0xff]
        %v1624 = vld [vmem:[%s5] sm:$0x3]
        %v1626 = vlaneseq
        %v1627 = vshrl.u32 %v1626, 7
        %v1628 = vsub.s32 0, %v1627
        %v1629 = vrot.slane %v1624, %v1628
        %v1630 = vlaneseq
        %v1631 = vshrl.u32 %v1630, 7
        %v1632 = vsub.s32 1, %v1631
        %v1633 = vrot.slane %v1624, %v1632
        %v1700 = vunpack.c.l.b16 %v1560
        %v1701 = vunpack.c.h.b16 %v1560
        %v1702 = vunpack.c.l.b16 %v1561
        %v1703 = vunpack.c.h.b16 %v1561
        %v1704 = vunpack.c.l.b16 %v1562
        %v1705 = vunpack.c.h.b16 %v1562
        %v1706 = vunpack.c.l.b16 %v1563
        %v1707 = vunpack.c.h.b16 %v1563
        %v1708 = vunpack.c.l.b16 %v1564
        %v1709 = vunpack.c.h.b16 %v1564
        %v1710 = vunpack.c.l.b16 %v1565
        %v1711 = vunpack.c.h.b16 %v1565
        %v1712 = vunpack.c.l.b16 %v1566
        %v1713 = vunpack.c.h.b16 %v1566
        %v1714 = vunpack.c.l.b16 %v1567
        %v1715 = vunpack.c.h.b16 %v1567
        %v1716 = vunpack.c.l.b16 %v1568
        %v1717 = vunpack.c.h.b16 %v1568
        %v1718 = vunpack.c.l.b16 %v1569
        %v1719 = vunpack.c.h.b16 %v1569
        %v1720 = vunpack.c.l.b16 %v1570
        %v1721 = vunpack.c.h.b16 %v1570
        %v1722 = vunpack.c.l.b16 %v1571
        %v1723 = vunpack.c.h.b16 %v1571
        %v1724 = vunpack.c.l.b16 %v1572
        %v1725 = vunpack.c.h.b16 %v1572
        %v1726 = vunpack.c.l.b16 %v1573
        %v1727 = vunpack.c.h.b16 %v1573
        %v1728 = vunpack.c.l.b16 %v1574
        %v1729 = vunpack.c.h.b16 %v1574
        %v1730 = vunpack.c.l.b16 %v1575
        %v1731 = vunpack.c.h.b16 %v1575
        %v1732 = vunpack.c.l.b16 %v1576
        %v1733 = vunpack.c.h.b16 %v1576
        %v1734 = vunpack.c.l.b16 %v1577
        %v1735 = vunpack.c.h.b16 %v1577
        %v1736 = vunpack.c.l.b16 %v1578
        %v1737 = vunpack.c.h.b16 %v1578
        %v1738 = vunpack.c.l.b16 %v1579
        %v1739 = vunpack.c.h.b16 %v1579
        %v1740 = vunpack.c.l.b16 %v1580
        %v1741 = vunpack.c.h.b16 %v1580
        %v1742 = vunpack.c.l.b16 %v1581
        %v1743 = vunpack.c.h.b16 %v1581
        %v1744 = vunpack.c.l.b16 %v1582
        %v1745 = vunpack.c.h.b16 %v1582
        %v1746 = vunpack.c.l.b16 %v1583
        %v1747 = vunpack.c.h.b16 %v1583
        %v1748 = vunpack.c.l.b16 %v1584
        %v1749 = vunpack.c.h.b16 %v1584
        %v1750 = vunpack.c.l.b16 %v1585
        %v1751 = vunpack.c.h.b16 %v1585
        %v1752 = vunpack.c.l.b16 %v1586
        %v1753 = vunpack.c.h.b16 %v1586
        %v1754 = vunpack.c.l.b16 %v1587
        %v1755 = vunpack.c.h.b16 %v1587
        %v1756 = vunpack.c.l.b16 %v1588
        %v1757 = vunpack.c.h.b16 %v1588
        %v1758 = vunpack.c.l.b16 %v1589
        %v1759 = vunpack.c.h.b16 %v1589
        %v1760 = vunpack.c.l.b16 %v1590
        %v1761 = vunpack.c.h.b16 %v1590
        %v1762 = vunpack.c.l.b16 %v1591
        %v1763 = vunpack.c.h.b16 %v1591
        %v1764 = vunpack.c.l.b16 %v1592
        %v1765 = vunpack.c.h.b16 %v1592
        %v1766 = vunpack.c.l.b16 %v1593
        %v1767 = vunpack.c.h.b16 %v1593
        %v1768 = vunpack.c.l.b16 %v1594
        %v1769 = vunpack.c.h.b16 %v1594
        %v1770 = vunpack.c.l.b16 %v1595
        %v1771 = vunpack.c.h.b16 %v1595
        %v1772 = vunpack.c.l.b16 %v1596
        %v1773 = vunpack.c.h.b16 %v1596
        %v1774 = vunpack.c.l.b16 %v1597
        %v1775 = vunpack.c.h.b16 %v1597
        %v1776 = vunpack.c.l.b16 %v1598
        %v1777 = vunpack.c.h.b16 %v1598
        %v1778 = vunpack.c.l.b16 %v1599
        %v1779 = vunpack.c.h.b16 %v1599
        %v1780 = vunpack.c.l.b16 %v1600
        %v1781 = vunpack.c.h.b16 %v1600
        %v1782 = vunpack.c.l.b16 %v1601
        %v1783 = vunpack.c.h.b16 %v1601
        %v1784 = vunpack.c.l.b16 %v1602
        %v1785 = vunpack.c.h.b16 %v1602
        %v1786 = vunpack.c.l.b16 %v1603
        %v1787 = vunpack.c.h.b16 %v1603
        %v1788 = vunpack.c.l.b16 %v1604
        %v1789 = vunpack.c.h.b16 %v1604
        %v1790 = vunpack.c.l.b16 %v1605
        %v1791 = vunpack.c.h.b16 %v1605
        %v1792 = vunpack.c.l.b16 %v1606
        %v1793 = vunpack.c.h.b16 %v1606
        %v1794 = vunpack.c.l.b16 %v1607
        %v1795 = vunpack.c.h.b16 %v1607
        %v1796 = vunpack.c.l.b16 %v1608
        %v1797 = vunpack.c.h.b16 %v1608
        %v1798 = vunpack.c.l.b16 %v1609
        %v1799 = vunpack.c.h.b16 %v1609
        %v1800 = vunpack.c.l.b16 %v1610
        %v1801 = vunpack.c.h.b16 %v1610
        %v1802 = vunpack.c.l.b16 %v1611
        %v1803 = vunpack.c.h.b16 %v1611
        %v1804 = vunpack.c.l.b16 %v1612
        %v1805 = vunpack.c.h.b16 %v1612
        %v1806 = vunpack.c.l.b16 %v1613
        %v1807 = vunpack.c.h.b16 %v1613
        %v1808 = vunpack.c.l.b16 %v1614
        %v1809 = vunpack.c.h.b16 %v1614
        %v1810 = vunpack.c.l.b16 %v1615
        %v1811 = vunpack.c.h.b16 %v1615
        %v1812 = vunpack.c.l.b16 %v1616
        %v1813 = vunpack.c.h.b16 %v1616
        %v1814 = vunpack.c.l.b16 %v1617
        %v1815 = vunpack.c.h.b16 %v1617
        %v1816 = vunpack.c.l.b16 %v1618
        %v1817 = vunpack.c.h.b16 %v1618
        %v1818 = vunpack.c.l.b16 %v1619
        %v1819 = vunpack.c.h.b16 %v1619
        %v1820 = vunpack.c.l.b16 %v1620
        %v1821 = vunpack.c.h.b16 %v1620
        %v1822 = vunpack.c.l.b16 %v1621
        %v1823 = vunpack.c.h.b16 %v1621
        %v1824 = vunpack.c.l.b16 %v1622
        %v1825 = vunpack.c.h.b16 %v1622
        %v1826 = vunpack.c.l.b16 %v1623
        %v1827 = vunpack.c.h.b16 %v1623
        %v1828 = vpack.c.b16 %v1702, %v1700
        %v1829 = vpack.c.b16 %v1703, %v1701
        %v1830 = vpack.c.b16 %v1706, %v1704
        %v1831 = vpack.c.b16 %v1707, %v1705
        %v1832 = vpack.c.b16 %v1710, %v1708
        %v1833 = vpack.c.b16 %v1711, %v1709
        %v1834 = vpack.c.b16 %v1714, %v1712
        %v1835 = vpack.c.b16 %v1715, %v1713
        %v1836 = vpack.c.b16 %v1718, %v1716
        %v1837 = vpack.c.b16 %v1719, %v1717
        %v1838 = vpack.c.b16 %v1722, %v1720
        %v1839 = vpack.c.b16 %v1723, %v1721
        %v1840 = vpack.c.b16 %v1726, %v1724
        %v1841 = vpack.c.b16 %v1727, %v1725
        %v1842 = vpack.c.b16 %v1730, %v1728
        %v1843 = vpack.c.b16 %v1731, %v1729
        %v1844 = vpack.c.b16 %v1734, %v1732
        %v1845 = vpack.c.b16 %v1735, %v1733
        %v1846 = vpack.c.b16 %v1738, %v1736
        %v1847 = vpack.c.b16 %v1739, %v1737
        %v1848 = vpack.c.b16 %v1742, %v1740
        %v1849 = vpack.c.b16 %v1743, %v1741
        %v1850 = vpack.c.b16 %v1746, %v1744
        %v1851 = vpack.c.b16 %v1747, %v1745
        %v1852 = vpack.c.b16 %v1750, %v1748
        %v1853 = vpack.c.b16 %v1751, %v1749
        %v1854 = vpack.c.b16 %v1754, %v1752
        %v1855 = vpack.c.b16 %v1755, %v1753
        %v1856 = vpack.c.b16 %v1758, %v1756
        %v1857 = vpack.c.b16 %v1759, %v1757
        %v1858 = vpack.c.b16 %v1762, %v1760
        %v1859 = vpack.c.b16 %v1763, %v1761
        %v1860 = vpack.c.b16 %v1766, %v1764
        %v1861 = vpack.c.b16 %v1767, %v1765
        %v1862 = vpack.c.b16 %v1770, %v1768
        %v1863 = vpack.c.b16 %v1771, %v1769
        %v1864 = vpack.c.b16 %v1774, %v1772
        %v1865 = vpack.c.b16 %v1775, %v1773
        %v1866 = vpack.c.b16 %v1778, %v1776
        %v1867 = vpack.c.b16 %v1779, %v1777
        %v1868 = vpack.c.b16 %v1782, %v1780
        %v1869 = vpack.c.b16 %v1783, %v1781
        %v1870 = vpack.c.b16 %v1786, %v1784
        %v1871 = vpack.c.b16 %v1787, %v1785
        %v1872 = vpack.c.b16 %v1790, %v1788
        %v1873 = vpack.c.b16 %v1791, %v1789
        %v1874 = vpack.c.b16 %v1794, %v1792
        %v1875 = vpack.c.b16 %v1795, %v1793
        %v1876 = vpack.c.b16 %v1798, %v1796
        %v1877 = vpack.c.b16 %v1799, %v1797
        %v1878 = vpack.c.b16 %v1802, %v1800
        %v1879 = vpack.c.b16 %v1803, %v1801
        %v1880 = vpack.c.b16 %v1806, %v1804
        %v1881 = vpack.c.b16 %v1807, %v1805
        %v1882 = vpack.c.b16 %v1810, %v1808
        %v1883 = vpack.c.b16 %v1811, %v1809
        %v1884 = vpack.c.b16 %v1814, %v1812
        %v1885 = vpack.c.b16 %v1815, %v1813
        %v1886 = vpack.c.b16 %v1818, %v1816
        %v1887 = vpack.c.b16 %v1819, %v1817
        %v1888 = vpack.c.b16 %v1822, %v1820
        %v1889 = vpack.c.b16 %v1823, %v1821
        %v1890 = vpack.c.b16 %v1826, %v1824
        %v1891 = vpack.c.b16 %v1827, %v1825
        %1956 = vmatprep.subr.bf16.mxu0 %v1829
        %1957 = vmatpush1.bf16.msra.mxu0 %v1828
        %1958 = vmatprep.subr.bf16.mxu0 %v1831
        %1959 = vmatpush1.bf16.msra.mxu0 %v1830
        %1960 = vmatprep.subr.bf16.mxu0 %v1833
        %1961 = vmatpush1.bf16.msra.mxu0 %v1832
        %1962 = vmatprep.subr.bf16.mxu0 %v1835
        %1963 = vmatpush1.bf16.msra.mxu0 %v1834
        %1964 = vmatprep.subr.bf16.mxu0 %v1837
        %1965 = vmatpush1.bf16.msra.mxu0 %v1836
        %1966 = vmatprep.subr.bf16.mxu0 %v1839
        %1967 = vmatpush1.bf16.msra.mxu0 %v1838
        %1968 = vmatprep.subr.bf16.mxu0 %v1841
        %1969 = vmatpush1.bf16.msra.mxu0 %v1840
        %1970 = vmatprep.subr.bf16.mxu0 %v1843
        %1971 = vmatpush1.bf16.msra.mxu0 %v1842
        %1972 = vmatprep.subr.bf16.mxu0 %v1845
        %1973 = vmatpush1.bf16.msra.mxu0 %v1844
        %1974 = vmatprep.subr.bf16.mxu0 %v1847
        %1975 = vmatpush1.bf16.msra.mxu0 %v1846
        %1976 = vmatprep.subr.bf16.mxu0 %v1849
        %1977 = vmatpush1.bf16.msra.mxu0 %v1848
        %1978 = vmatprep.subr.bf16.mxu0 %v1851
        %1979 = vmatpush1.bf16.msra.mxu0 %v1850
        %1980 = vmatprep.subr.bf16.mxu0 %v1853
        %1981 = vmatpush1.bf16.msra.mxu0 %v1852
        %1982 = vmatprep.subr.bf16.mxu0 %v1855
        %1983 = vmatpush1.bf16.msra.mxu0 %v1854
        %1984 = vmatprep.subr.bf16.mxu0 %v1857
        %1985 = vmatpush1.bf16.msra.mxu0 %v1856
        %1986 = vmatprep.subr.bf16.mxu0 %v1859
        %1987 = vmatpush1.bf16.msra.mxu0 %v1858
        %1988 = vmatprep.mubr.bf16.mxu0 %v651
        %1989 = vmatmul.mubr.bf16.gmra.mrb[0].mxu0 %v650
        %v1990 = vpop.f32.mrb[0].mxu0
        %v1991 = vadd.f32 %v1629, %v1990
        %v1992 = vpop.f32.mrb[0].mxu0
        %v1993 = vadd.f32 %v1633, %v1992
        %v1994 = vpop.f32.mrb[0].mxu0
        %v1995 = vadd.f32 %v1629, %v1994
        %v1996 = vpop.f32.mrb[0].mxu0
        %v1997 = vadd.f32 %v1633, %v1996
        %1998 = vmatprep.mubr.bf16.mxu0 %v655
        %1999 = vmatmul.mubr.bf16.gmra.mrb[0].mxu0 %v654
        %v2000 = vpop.f32.mrb[0].mxu0
        %v2001 = vadd.f32 %v1629, %v2000
        %v2002 = vpop.f32.mrb[0].mxu0
        %v2003 = vadd.f32 %v1633, %v2002
        %v2004 = vpop.f32.mrb[0].mxu0
        %v2005 = vadd.f32 %v1629, %v2004
        %v2006 = vpop.f32.mrb[0].mxu0
        %v2007 = vadd.f32 %v1633, %v2006
        %2008 = vmatprep.mubr.bf16.mxu0 %v659
        %2009 = vmatmul.mubr.bf16.gmra.mrb[0].mxu0 %v658
        %v2010 = vpop.f32.mrb[0].mxu0
        %v2011 = vadd.f32 %v1629, %v2010
        %v2012 = vpop.f32.mrb[0].mxu0
        %v2013 = vadd.f32 %v1633, %v2012
        %v2014 = vpop.f32.mrb[0].mxu0
        %v2015 = vadd.f32 %v1629, %v2014
        %v2016 = vpop.f32.mrb[0].mxu0
        %v2017 = vadd.f32 %v1633, %v2016
        %2018 = vmatprep.mubr.bf16.mxu0 %v663
        %2019 = vmatmul.mubr.bf16.gmra.mrb[0].mxu0 %v662
        %v2020 = vpop.f32.mrb[0].mxu0
        %v2021 = vadd.f32 %v1629, %v2020
        %v2022 = vpop.f32.mrb[0].mxu0
        %v2023 = vadd.f32 %v1633, %v2022
        %v2024 = vpop.f32.mrb[0].mxu0
        %v2025 = vadd.f32 %v1629, %v2024
        %v2026 = vpop.f32.mrb[0].mxu0
        %v2027 = vadd.f32 %v1633, %v2026
        %2028 = vmatprep.mubr.bf16.mxu0 %v667
        %2029 = vmatmul.mubr.bf16.gmra.mrb[0].mxu0 %v666
        %v2030 = vpop.f32.mrb[0].mxu0
        %v2031 = vadd.f32 %v1629, %v2030
        %v2032 = vpop.f32.mrb[0].mxu0
        %v2033 = vadd.f32 %v1633, %v2032
        %v2034 = vpop.f32.mrb[0].mxu0
        %v2035 = vadd.f32 %v1629, %v2034
        %v2036 = vpop.f32.mrb[0].mxu0
        %v2037 = vadd.f32 %v1633, %v2036
        %2038 = vmatprep.mubr.bf16.mxu0 %v671
        %2039 = vmatmul.mubr.bf16.gmra.mrb[0].mxu0 %v670
        %v2040 = vpop.f32.mrb[0].mxu0
        %v2041 = vadd.f32 %v1629, %v2040
        %v2042 = vpop.f32.mrb[0].mxu0
        %v2043 = vadd.f32 %v1633, %v2042
        %v2044 = vpop.f32.mrb[0].mxu0
        %v2045 = vadd.f32 %v1629, %v2044
        %v2046 = vpop.f32.mrb[0].mxu0
        %v2047 = vadd.f32 %v1633, %v2046
        %2048 = vmatprep.mubr.bf16.mxu0 %v675
        %2049 = vmatmul.mubr.bf16.gmra.mrb[0].mxu0 %v674
        %v2050 = vpop.f32.mrb[0].mxu0
        %v2051 = vadd.f32 %v1629, %v2050
        %v2052 = vpop.f32.mrb[0].mxu0
        %v2053 = vadd.f32 %v1633, %v2052
        %v2054 = vpop.f32.mrb[0].mxu0
        %v2055 = vadd.f32 %v1629, %v2054
        %v2056 = vpop.f32.mrb[0].mxu0
        %v2057 = vadd.f32 %v1633, %v2056
        %2058 = vmatprep.mubr.bf16.mxu0 %v679
        %2059 = vmatmul.mubr.bf16.gmra.mrb[0].mxu0 %v678
        %v2060 = vpop.f32.mrb[0].mxu0
        %v2061 = vadd.f32 %v1629, %v2060
        %v2062 = vpop.f32.mrb[0].mxu0
        %v2063 = vadd.f32 %v1633, %v2062
        %v2064 = vpop.f32.mrb[0].mxu0
        %v2065 = vadd.f32 %v1629, %v2064
        %v2066 = vpop.f32.mrb[0].mxu0
        %v2067 = vadd.f32 %v1633, %v2066
        %2068 = vmatprep.mubr.bf16.mxu0 %v683
        %2069 = vmatmul.mubr.bf16.gmra.mrb[0].mxu0 %v682
        %v2070 = vpop.f32.mrb[0].mxu0
        %v2071 = vadd.f32 %v1629, %v2070
        %v2072 = vpop.f32.mrb[0].mxu0
        %v2073 = vadd.f32 %v1633, %v2072
        %v2074 = vpop.f32.mrb[0].mxu0
        %v2075 = vadd.f32 %v1629, %v2074
        %v2076 = vpop.f32.mrb[0].mxu0
        %v2077 = vadd.f32 %v1633, %v2076
        %2078 = vmatprep.mubr.bf16.mxu0 %v687
        %2079 = vmatmul.mubr.bf16.gmra.mrb[0].mxu0 %v686
        %v2080 = vpop.f32.mrb[0].mxu0
        %v2081 = vadd.f32 %v1629, %v2080
        %v2082 = vpop.f32.mrb[0].mxu0
        %v2083 = vadd.f32 %v1633, %v2082
        %v2084 = vpop.f32.mrb[0].mxu0
        %v2085 = vadd.f32 %v1629, %v2084
        %v2086 = vpop.f32.mrb[0].mxu0
        %v2087 = vadd.f32 %v1633, %v2086
        %2088 = vmatprep.mubr.bf16.mxu0 %v691
        %2089 = vmatmul.mubr.bf16.gmra.mrb[0].mxu0 %v690
        %v2090 = vpop.f32.mrb[0].mxu0
        %v2091 = vadd.f32 %v1629, %v2090
        %v2092 = vpop.f32.mrb[0].mxu0
        %v2093 = vadd.f32 %v1633, %v2092
        %v2094 = vpop.f32.mrb[0].mxu0
        %v2095 = vadd.f32 %v1629, %v2094
        %v2096 = vpop.f32.mrb[0].mxu0
        %v2097 = vadd.f32 %v1633, %v2096
        %2098 = vmatprep.mubr.bf16.mxu0 %v695
        %2099 = vmatmul.mubr.bf16.gmra.mrb[0].mxu0 %v694
        %v2100 = vpop.f32.mrb[0].mxu0
        %v2101 = vadd.f32 %v1629, %v2100
        %v2102 = vpop.f32.mrb[0].mxu0
        %v2103 = vadd.f32 %v1633, %v2102
        %v2104 = vpop.f32.mrb[0].mxu0
        %v2105 = vadd.f32 %v1629, %v2104
        %v2106 = vpop.f32.mrb[0].mxu0
        %v2107 = vadd.f32 %v1633, %v2106
        %2108 = vmatprep.mubr.bf16.mxu0 %v699
        %2109 = vmatmul.mubr.bf16.gmra.mrb[0].mxu0 %v698
        %v2110 = vpop.f32.mrb[0].mxu0
        %v2111 = vadd.f32 %v1629, %v2110
        %v2112 = vpop.f32.mrb[0].mxu0
        %v2113 = vadd.f32 %v1633, %v2112
        %v2114 = vpop.f32.mrb[0].mxu0
        %v2115 = vadd.f32 %v1629, %v2114
        %v2116 = vpop.f32.mrb[0].mxu0
        %v2117 = vadd.f32 %v1633, %v2116
        %2118 = vmatprep.mubr.bf16.mxu0 %v703
        %2119 = vmatmul.mubr.bf16.gmra.mrb[0].mxu0 %v702
        %v2120 = vpop.f32.mrb[0].mxu0
        %v2121 = vadd.f32 %v1629, %v2120
        %v2122 = vpop.f32.mrb[0].mxu0
        %v2123 = vadd.f32 %v1633, %v2122
        %v2124 = vpop.f32.mrb[0].mxu0
        %v2125 = vadd.f32 %v1629, %v2124
        %v2126 = vpop.f32.mrb[0].mxu0
        %v2127 = vadd.f32 %v1633, %v2126
        %2128 = vmatprep.mubr.bf16.mxu0 %v707
        %2129 = vmatmul.mubr.bf16.gmra.mrb[0].mxu0 %v706
        %v2130 = vpop.f32.mrb[0].mxu0
        %v2131 = vadd.f32 %v1629, %v2130
        %v2132 = vpop.f32.mrb[0].mxu0
        %v2133 = vadd.f32 %v1633, %v2132
        %v2134 = vpop.f32.mrb[0].mxu0
        %v2135 = vadd.f32 %v1629, %v2134
        %v2136 = vpop.f32.mrb[0].mxu0
        %v2137 = vadd.f32 %v1633, %v2136
        %2138 = vmatprep.mubr.bf16.mxu0 %v711
        %2139 = vmatmul.mubr.bf16.gmra.mrb[0].mxu0 %v710
        %v2140 = vpop.f32.mrb[0].mxu0
        %v2141 = vadd.f32 %v1629, %v2140
        %v2142 = vpop.f32.mrb[0].mxu0
        %v2143 = vadd.f32 %v1633, %v2142
        %v2144 = vpop.f32.mrb[0].mxu0
        %v2145 = vadd.f32 %v1629, %v2144
        %v2146 = vpop.f32.mrb[0].mxu0
        %v2147 = vadd.f32 %v1633, %v2146
        %2148 = vdwg.mxu0
        %2149 = vmatprep.subr.bf16.mxu0 %v1861
        %2150 = vmatpush1.bf16.msra.mxu0 %v1860
        %2151 = vmatprep.subr.bf16.mxu0 %v1863
        %2152 = vmatpush1.bf16.msra.mxu0 %v1862
        %2153 = vmatprep.subr.bf16.mxu0 %v1865
        %2154 = vmatpush1.bf16.msra.mxu0 %v1864
        %2155 = vmatprep.subr.bf16.mxu0 %v1867
        %2156 = vmatpush1.bf16.msra.mxu0 %v1866
        %2157 = vmatprep.subr.bf16.mxu0 %v1869
        %2158 = vmatpush1.bf16.msra.mxu0 %v1868
        %2159 = vmatprep.subr.bf16.mxu0 %v1871
        %2160 = vmatpush1.bf16.msra.mxu0 %v1870
        %2161 = vmatprep.subr.bf16.mxu0 %v1873
        %2162 = vmatpush1.bf16.msra.mxu0 %v1872
        %2163 = vmatprep.subr.bf16.mxu0 %v1875
        %2164 = vmatpush1.bf16.msra.mxu0 %v1874
        %2165 = vmatprep.subr.bf16.mxu0 %v1877
        %2166 = vmatpush1.bf16.msra.mxu0 %v1876
        %2167 = vmatprep.subr.bf16.mxu0 %v1879
        %2168 = vmatpush1.bf16.msra.mxu0 %v1878
        %2169 = vmatprep.subr.bf16.mxu0 %v1881
        %2170 = vmatpush1.bf16.msra.mxu0 %v1880
        %2171 = vmatprep.subr.bf16.mxu0 %v1883
        %2172 = vmatpush1.bf16.msra.mxu0 %v1882
        %2173 = vmatprep.subr.bf16.mxu0 %v1885
        %2174 = vmatpush1.bf16.msra.mxu0 %v1884
        %2175 = vmatprep.subr.bf16.mxu0 %v1887
        %2176 = vmatpush1.bf16.msra.mxu0 %v1886
        %2177 = vmatprep.subr.bf16.mxu0 %v1889
        %2178 = vmatpush1.bf16.msra.mxu0 %v1888
        %2179 = vmatprep.subr.bf16.mxu0 %v1891
        %2180 = vmatpush1.bf16.msra.mxu0 %v1890
        %2181 = vmatprep.mubr.bf16.mxu0 %v653
        %2182 = vmatmul.mubr.bf16.gmra.mrb[0].mxu0 %v652
        %v2183 = vpop.f32.mrb[0].mxu0
        %v2184 = vadd.f32 %v1991, %v2183
        %v2185 = vpop.f32.mrb[0].mxu0
        %v2186 = vadd.f32 %v1993, %v2185
        %v2187 = vpop.f32.mrb[0].mxu0
        %v2188 = vadd.f32 %v1995, %v2187
        %v2189 = vpop.f32.mrb[0].mxu0
        %v2190 = vadd.f32 %v1997, %v2189
        %2191 = vmatprep.mubr.bf16.mxu0 %v657
        %2192 = vmatmul.mubr.bf16.gmra.mrb[0].mxu0 %v656
        %v2193 = vpop.f32.mrb[0].mxu0
        %v2194 = vadd.f32 %v2001, %v2193
        %v2195 = vpop.f32.mrb[0].mxu0
        %v2196 = vadd.f32 %v2003, %v2195
        %v2197 = vpop.f32.mrb[0].mxu0
        %v2198 = vadd.f32 %v2005, %v2197
        %v2199 = vpop.f32.mrb[0].mxu0
        %v2200 = vadd.f32 %v2007, %v2199
        %2201 = vmatprep.mubr.bf16.mxu0 %v661
        %2202 = vmatmul.mubr.bf16.gmra.mrb[0].mxu0 %v660
        %v2203 = vpop.f32.mrb[0].mxu0
        %v2204 = vadd.f32 %v2011, %v2203
        %v2205 = vpop.f32.mrb[0].mxu0
        %v2206 = vadd.f32 %v2013, %v2205
        %v2207 = vpop.f32.mrb[0].mxu0
        %v2208 = vadd.f32 %v2015, %v2207
        %v2209 = vpop.f32.mrb[0].mxu0
        %v2210 = vadd.f32 %v2017, %v2209
        %2211 = vmatprep.mubr.bf16.mxu0 %v665
        %2212 = vmatmul.mubr.bf16.gmra.mrb[0].mxu0 %v664
        %v2213 = vpop.f32.mrb[0].mxu0
        %v2214 = vadd.f32 %v2021, %v2213
        %v2215 = vpop.f32.mrb[0].mxu0
        %v2216 = vadd.f32 %v2023, %v2215
        %v2217 = vpop.f32.mrb[0].mxu0
        %v2218 = vadd.f32 %v2025, %v2217
        %v2219 = vpop.f32.mrb[0].mxu0
        %v2220 = vadd.f32 %v2027, %v2219
        %2221 = vmatprep.mubr.bf16.mxu0 %v669
        %2222 = vmatmul.mubr.bf16.gmra.mrb[0].mxu0 %v668
        %v2223 = vpop.f32.mrb[0].mxu0
        %v2224 = vadd.f32 %v2031, %v2223
        %v2225 = vpop.f32.mrb[0].mxu0
        %v2226 = vadd.f32 %v2033, %v2225
        %v2227 = vpop.f32.mrb[0].mxu0
        %v2228 = vadd.f32 %v2035, %v2227
        %v2229 = vpop.f32.mrb[0].mxu0
        %v2230 = vadd.f32 %v2037, %v2229
        %2231 = vmatprep.mubr.bf16.mxu0 %v673
        %2232 = vmatmul.mubr.bf16.gmra.mrb[0].mxu0 %v672
        %v2233 = vpop.f32.mrb[0].mxu0
        %v2234 = vadd.f32 %v2041, %v2233
        %v2235 = vpop.f32.mrb[0].mxu0
        %v2236 = vadd.f32 %v2043, %v2235
        %v2237 = vpop.f32.mrb[0].mxu0
        %v2238 = vadd.f32 %v2045, %v2237
        %v2239 = vpop.f32.mrb[0].mxu0
        %v2240 = vadd.f32 %v2047, %v2239
        %2241 = vmatprep.mubr.bf16.mxu0 %v677
        %2242 = vmatmul.mubr.bf16.gmra.mrb[0].mxu0 %v676
        %v2243 = vpop.f32.mrb[0].mxu0
        %v2244 = vadd.f32 %v2051, %v2243
        %v2245 = vpop.f32.mrb[0].mxu0
        %v2246 = vadd.f32 %v2053, %v2245
        %v2247 = vpop.f32.mrb[0].mxu0
        %v2248 = vadd.f32 %v2055, %v2247
        %v2249 = vpop.f32.mrb[0].mxu0
        %v2250 = vadd.f32 %v2057, %v2249
        %2251 = vmatprep.mubr.bf16.mxu0 %v681
        %2252 = vmatmul.mubr.bf16.gmra.mrb[0].mxu0 %v680
        %v2253 = vpop.f32.mrb[0].mxu0
        %v2254 = vadd.f32 %v2061, %v2253
        %v2255 = vpop.f32.mrb[0].mxu0
        %v2256 = vadd.f32 %v2063, %v2255
        %v2257 = vpop.f32.mrb[0].mxu0
        %v2258 = vadd.f32 %v2065, %v2257
        %v2259 = vpop.f32.mrb[0].mxu0
        %v2260 = vadd.f32 %v2067, %v2259
        %2261 = vmatprep.mubr.bf16.mxu0 %v685
        %2262 = vmatmul.mubr.bf16.gmra.mrb[0].mxu0 %v684
        %v2263 = vpop.f32.mrb[0].mxu0
        %v2264 = vadd.f32 %v2071, %v2263
        %v2265 = vpop.f32.mrb[0].mxu0
        %v2266 = vadd.f32 %v2073, %v2265
        %v2267 = vpop.f32.mrb[0].mxu0
        %v2268 = vadd.f32 %v2075, %v2267
        %v2269 = vpop.f32.mrb[0].mxu0
        %v2270 = vadd.f32 %v2077, %v2269
        %2271 = vmatprep.mubr.bf16.mxu0 %v689
        %2272 = vmatmul.mubr.bf16.gmra.mrb[0].mxu0 %v688
        %v2273 = vpop.f32.mrb[0].mxu0
        %v2274 = vadd.f32 %v2081, %v2273
        %v2275 = vpop.f32.mrb[0].mxu0
        %v2276 = vadd.f32 %v2083, %v2275
        %v2277 = vpop.f32.mrb[0].mxu0
        %v2278 = vadd.f32 %v2085, %v2277
        %v2279 = vpop.f32.mrb[0].mxu0
        %v2280 = vadd.f32 %v2087, %v2279
        %2281 = vmatprep.mubr.bf16.mxu0 %v693
        %2282 = vmatmul.mubr.bf16.gmra.mrb[0].mxu0 %v692
        %v2283 = vpop.f32.mrb[0].mxu0
        %v2284 = vadd.f32 %v2091, %v2283
        %v2285 = vpop.f32.mrb[0].mxu0
        %v2286 = vadd.f32 %v2093, %v2285
        %v2287 = vpop.f32.mrb[0].mxu0
        %v2288 = vadd.f32 %v2095, %v2287
        %v2289 = vpop.f32.mrb[0].mxu0
        %v2290 = vadd.f32 %v2097, %v2289
        %2291 = vmatprep.mubr.bf16.mxu0 %v697
        %2292 = vmatmul.mubr.bf16.gmra.mrb[0].mxu0 %v696
        %v2293 = vpop.f32.mrb[0].mxu0
        %v2294 = vadd.f32 %v2101, %v2293
        %v2295 = vpop.f32.mrb[0].mxu0
        %v2296 = vadd.f32 %v2103, %v2295
        %v2297 = vpop.f32.mrb[0].mxu0
        %v2298 = vadd.f32 %v2105, %v2297
        %v2299 = vpop.f32.mrb[0].mxu0
        %v2300 = vadd.f32 %v2107, %v2299
        %2301 = vmatprep.mubr.bf16.mxu0 %v701
        %2302 = vmatmul.mubr.bf16.gmra.mrb[0].mxu0 %v700
        %v2303 = vpop.f32.mrb[0].mxu0
        %v2304 = vadd.f32 %v2111, %v2303
        %v2305 = vpop.f32.mrb[0].mxu0
        %v2306 = vadd.f32 %v2113, %v2305
        %v2307 = vpop.f32.mrb[0].mxu0
        %v2308 = vadd.f32 %v2115, %v2307
        %v2309 = vpop.f32.mrb[0].mxu0
        %v2310 = vadd.f32 %v2117, %v2309
        %2311 = vmatprep.mubr.bf16.mxu0 %v705
        %2312 = vmatmul.mubr.bf16.gmra.mrb[0].mxu0 %v704
        %v2313 = vpop.f32.mrb[0].mxu0
        %v2314 = vadd.f32 %v2121, %v2313
        %v2315 = vpop.f32.mrb[0].mxu0
        %v2316 = vadd.f32 %v2123, %v2315
        %v2317 = vpop.f32.mrb[0].mxu0
        %v2318 = vadd.f32 %v2125, %v2317
        %v2319 = vpop.f32.mrb[0].mxu0
        %v2320 = vadd.f32 %v2127, %v2319
        %2321 = vmatprep.mubr.bf16.mxu0 %v709
        %2322 = vmatmul.mubr.bf16.gmra.mrb[0].mxu0 %v708
        %v2323 = vpop.f32.mrb[0].mxu0
        %v2324 = vadd.f32 %v2131, %v2323
        %v2325 = vpop.f32.mrb[0].mxu0
        %v2326 = vadd.f32 %v2133, %v2325
        %v2327 = vpop.f32.mrb[0].mxu0
        %v2328 = vadd.f32 %v2135, %v2327
        %v2329 = vpop.f32.mrb[0].mxu0
        %v2330 = vadd.f32 %v2137, %v2329
        %2331 = vmatprep.mubr.bf16.mxu0 %v713
        %2332 = vmatmul.mubr.bf16.gmra.mrb[0].mxu0 %v712
        %v2333 = vpop.f32.mrb[0].mxu0
        %v2334 = vadd.f32 %v2141, %v2333
        %v2335 = vpop.f32.mrb[0].mxu0
        %v2336 = vadd.f32 %v2143, %v2335
        %v2337 = vpop.f32.mrb[0].mxu0
        %v2338 = vadd.f32 %v2145, %v2337
        %v2339 = vpop.f32.mrb[0].mxu0
        %v2340 = vadd.f32 %v2147, %v2339
        %2341 = vdwg.mxu0
        %v2342 = vmax.f32 %v2184, 0.0
        %v2343 = vmax.f32 %v2186, 0.0
        %v2344 = vmax.f32 %v2188, 0.0
        %v2345 = vmax.f32 %v2190, 0.0
        %v2346 = vmax.f32 %v2194, 0.0
        %v2347 = vmax.f32 %v2196, 0.0
        %v2348 = vmax.f32 %v2198, 0.0
        %v2349 = vmax.f32 %v2200, 0.0
        %v2350 = vmax.f32 %v2204, 0.0
        %v2351 = vmax.f32 %v2206, 0.0
        %v2352 = vmax.f32 %v2208, 0.0
        %v2353 = vmax.f32 %v2210, 0.0
        %v2354 = vmax.f32 %v2214, 0.0
        %v2355 = vmax.f32 %v2216, 0.0
        %v2356 = vmax.f32 %v2218, 0.0
        %v2357 = vmax.f32 %v2220, 0.0
        %v2358 = vmax.f32 %v2224, 0.0
        %v2359 = vmax.f32 %v2226, 0.0
        %v2360 = vmax.f32 %v2228, 0.0
        %v2361 = vmax.f32 %v2230, 0.0
        %v2362 = vmax.f32 %v2234, 0.0
        %v2363 = vmax.f32 %v2236, 0.0
        %v2364 = vmax.f32 %v2238, 0.0
        %v2365 = vmax.f32 %v2240, 0.0
        %v2366 = vmax.f32 %v2244, 0.0
        %v2367 = vmax.f32 %v2246, 0.0
        %v2368 = vmax.f32 %v2248, 0.0
        %v2369 = vmax.f32 %v2250, 0.0
        %v2370 = vmax.f32 %v2254, 0.0
        %v2371 = vmax.f32 %v2256, 0.0
        %v2372 = vmax.f32 %v2258, 0.0
        %v2373 = vmax.f32 %v2260, 0.0
        %v2374 = vmax.f32 %v2264, 0.0
        %v2375 = vmax.f32 %v2266, 0.0
        %v2376 = vmax.f32 %v2268, 0.0
        %v2377 = vmax.f32 %v2270, 0.0
        %v2378 = vmax.f32 %v2274, 0.0
        %v2379 = vmax.f32 %v2276, 0.0
        %v2380 = vmax.f32 %v2278, 0.0
        %v2381 = vmax.f32 %v2280, 0.0
        %v2382 = vmax.f32 %v2284, 0.0
        %v2383 = vmax.f32 %v2286, 0.0
        %v2384 = vmax.f32 %v2288, 0.0
        %v2385 = vmax.f32 %v2290, 0.0
        %v2386 = vmax.f32 %v2294, 0.0
        %v2387 = vmax.f32 %v2296, 0.0
        %v2388 = vmax.f32 %v2298, 0.0
        %v2389 = vmax.f32 %v2300, 0.0
        %v2390 = vmax.f32 %v2304, 0.0
        %v2391 = vmax.f32 %v2306, 0.0
        %v2392 = vmax.f32 %v2308, 0.0
        %v2393 = vmax.f32 %v2310, 0.0
        %v2394 = vmax.f32 %v2314, 0.0
        %v2395 = vmax.f32 %v2316, 0.0
        %v2396 = vmax.f32 %v2318, 0.0
        %v2397 = vmax.f32 %v2320, 0.0
        %v2398 = vmax.f32 %v2324, 0.0
        %v2399 = vmax.f32 %v2326, 0.0
        %v2400 = vmax.f32 %v2328, 0.0
        %v2401 = vmax.f32 %v2330, 0.0
        %v2402 = vmax.f32 %v2334, 0.0
        %v2403 = vmax.f32 %v2336, 0.0
        %v2404 = vmax.f32 %v2338, 0.0
        %v2405 = vmax.f32 %v2340, 0.0
        %v2406 = vmul.f32 %v1496, %v2374
        %v2407 = vmul.f32 %v1497, %v2375
        %v2408 = vmul.f32 %v1498, %v2376
        %v2409 = vmul.f32 %v1499, %v2377
        %v2410 = vmul.f32 %v1500, %v2378
        %v2411 = vmul.f32 %v1501, %v2379
        %v2412 = vmul.f32 %v1502, %v2380
        %v2413 = vmul.f32 %v1503, %v2381
        %v2414 = vmul.f32 %v1504, %v2382
        %v2415 = vmul.f32 %v1505, %v2383
        %v2416 = vmul.f32 %v1506, %v2384
        %v2417 = vmul.f32 %v1507, %v2385
        %v2418 = vmul.f32 %v1508, %v2386
        %v2419 = vmul.f32 %v1509, %v2387
        %v2420 = vmul.f32 %v1510, %v2388
        %v2421 = vmul.f32 %v1511, %v2389
        %v2422 = vmul.f32 %v1512, %v2390
        %v2423 = vmul.f32 %v1513, %v2391
        %v2424 = vmul.f32 %v1514, %v2392
        %v2425 = vmul.f32 %v1515, %v2393
        %v2426 = vmul.f32 %v1516, %v2394
        %v2427 = vmul.f32 %v1517, %v2395
        %v2428 = vmul.f32 %v1518, %v2396
        %v2429 = vmul.f32 %v1519, %v2397
        %v2430 = vmul.f32 %v1520, %v2398
        %v2431 = vmul.f32 %v1521, %v2399
        %v2432 = vmul.f32 %v1522, %v2400
        %v2433 = vmul.f32 %v1523, %v2401
        %v2434 = vmul.f32 %v1524, %v2402
        %v2435 = vmul.f32 %v1525, %v2403
        %v2436 = vmul.f32 %v1526, %v2404
        %v2437 = vmul.f32 %v1527, %v2405
        %v2438 = vadd.f32 %v2406, %v2407
        %2439 = vadd.xlane.f32.xlu0 %v2438
        %v2440 = vpop.xlane.xlu0 %2439
        %v2441 = vadd.f32 %v2408, %v2409
        %2442 = vadd.xlane.f32.xlu0 %v2441
        %v2443 = vpop.xlane.xlu0 %2442
        %v2444 = vadd.f32 %v2410, %v2411
        %2445 = vadd.xlane.f32.xlu0 %v2444
        %v2446 = vpop.xlane.xlu0 %2445
        %v2447 = vadd.f32 %v2412, %v2413
        %2448 = vadd.xlane.f32.xlu0 %v2447
        %v2449 = vpop.xlane.xlu0 %2448
        %v2450 = vadd.f32 %v2414, %v2415
        %2451 = vadd.xlane.f32.xlu0 %v2450
        %v2452 = vpop.xlane.xlu0 %2451
        %v2453 = vadd.f32 %v2416, %v2417
        %2454 = vadd.xlane.f32.xlu0 %v2453
        %v2455 = vpop.xlane.xlu0 %2454
        %v2456 = vadd.f32 %v2418, %v2419
        %2457 = vadd.xlane.f32.xlu0 %v2456
        %v2458 = vpop.xlane.xlu0 %2457
        %v2459 = vadd.f32 %v2420, %v2421
        %2460 = vadd.xlane.f32.xlu0 %v2459
        %v2461 = vpop.xlane.xlu0 %2460
        %v2462 = vadd.f32 %v2422, %v2423
        %2463 = vadd.xlane.f32.xlu0 %v2462
        %v2464 = vpop.xlane.xlu0 %2463
        %v2465 = vadd.f32 %v2424, %v2425
        %2466 = vadd.xlane.f32.xlu0 %v2465
        %v2467 = vpop.xlane.xlu0 %2466
        %v2468 = vadd.f32 %v2426, %v2427
        %2469 = vadd.xlane.f32.xlu0 %v2468
        %v2470 = vpop.xlane.xlu0 %2469
        %v2471 = vadd.f32 %v2428, %v2429
        %2472 = vadd.xlane.f32.xlu0 %v2471
        %v2473 = vpop.xlane.xlu0 %2472
        %v2474 = vadd.f32 %v2430, %v2431
        %2475 = vadd.xlane.f32.xlu0 %v2474
        %v2476 = vpop.xlane.xlu0 %2475
        %v2477 = vadd.f32 %v2432, %v2433
        %2478 = vadd.xlane.f32.xlu0 %v2477
        %v2479 = vpop.xlane.xlu0 %2478
        %v2480 = vadd.f32 %v2434, %v2435
        %2481 = vadd.xlane.f32.xlu0 %v2480
        %v2482 = vpop.xlane.xlu0 %2481
        %v2483 = vadd.f32 %v2436, %v2437
        %2484 = vadd.xlane.f32.xlu0 %v2483
        %v2485 = vpop.xlane.xlu0 %2484
        %v2486 = vmul.f32 %v1528, %v2342
        %v2487 = vmul.f32 %v1529, %v2343
        %v2488 = vmul.f32 %v1530, %v2344
        %v2489 = vmul.f32 %v1531, %v2345
        %v2490 = vmul.f32 %v1532, %v2346
        %v2491 = vmul.f32 %v1533, %v2347
        %v2492 = vmul.f32 %v1534, %v2348
        %v2493 = vmul.f32 %v1535, %v2349
        %v2494 = vmul.f32 %v1536, %v2350
        %v2495 = vmul.f32 %v1537, %v2351
        %v2496 = vmul.f32 %v1538, %v2352
        %v2497 = vmul.f32 %v1539, %v2353
        %v2498 = vmul.f32 %v1540, %v2354
        %v2499 = vmul.f32 %v1541, %v2355
        %v2500 = vmul.f32 %v1542, %v2356
        %v2501 = vmul.f32 %v1543, %v2357
        %v2502 = vmul.f32 %v1544, %v2358
        %v2503 = vmul.f32 %v1545, %v2359
        %v2504 = vmul.f32 %v1546, %v2360
        %v2505 = vmul.f32 %v1547, %v2361
        %v2506 = vmul.f32 %v1548, %v2362
        %v2507 = vmul.f32 %v1549, %v2363
        %v2508 = vmul.f32 %v1550, %v2364
        %v2509 = vmul.f32 %v1551, %v2365
        %v2510 = vmul.f32 %v1552, %v2366
        %v2511 = vmul.f32 %v1553, %v2367
        %v2512 = vmul.f32 %v1554, %v2368
        %v2513 = vmul.f32 %v1555, %v2369
        %v2514 = vmul.f32 %v1556, %v2370
        %v2515 = vmul.f32 %v1557, %v2371
        %v2516 = vmul.f32 %v1558, %v2372
        %v2517 = vmul.f32 %v1559, %v2373
        %v2518 = vadd.f32 %v2486, %v2487
        %2519 = vadd.xlane.f32.xlu0 %v2518
        %v2520 = vpop.xlane.xlu0 %2519
        %v2521 = vadd.f32 %v2488, %v2489
        %2522 = vadd.xlane.f32.xlu0 %v2521
        %v2523 = vpop.xlane.xlu0 %2522
        %v2524 = vadd.f32 %v2490, %v2491
        %2525 = vadd.xlane.f32.xlu0 %v2524
        %v2526 = vpop.xlane.xlu0 %2525
        %v2527 = vadd.f32 %v2492, %v2493
        %2528 = vadd.xlane.f32.xlu0 %v2527
        %v2529 = vpop.xlane.xlu0 %2528
        %v2530 = vadd.f32 %v2494, %v2495
        %2531 = vadd.xlane.f32.xlu0 %v2530
        %v2532 = vpop.xlane.xlu0 %2531
        %v2533 = vadd.f32 %v2496, %v2497
        %2534 = vadd.xlane.f32.xlu0 %v2533
        %v2535 = vpop.xlane.xlu0 %2534
        %v2536 = vadd.f32 %v2498, %v2499
        %2537 = vadd.xlane.f32.xlu0 %v2536
        %v2538 = vpop.xlane.xlu0 %2537
        %v2539 = vadd.f32 %v2500, %v2501
        %2540 = vadd.xlane.f32.xlu0 %v2539
        %v2541 = vpop.xlane.xlu0 %2540
        %v2542 = vadd.f32 %v2502, %v2503
        %2543 = vadd.xlane.f32.xlu0 %v2542
        %v2544 = vpop.xlane.xlu0 %2543
        %v2545 = vadd.f32 %v2504, %v2505
        %2546 = vadd.xlane.f32.xlu0 %v2545
        %v2547 = vpop.xlane.xlu0 %2546
        %v2548 = vadd.f32 %v2506, %v2507
        %2549 = vadd.xlane.f32.xlu0 %v2548
        %v2550 = vpop.xlane.xlu0 %2549
        %v2551 = vadd.f32 %v2508, %v2509
        %2552 = vadd.xlane.f32.xlu0 %v2551
        %v2553 = vpop.xlane.xlu0 %2552
        %v2554 = vadd.f32 %v2510, %v2511
        %2555 = vadd.xlane.f32.xlu0 %v2554
        %v2556 = vpop.xlane.xlu0 %2555
        %v2557 = vadd.f32 %v2512, %v2513
        %2558 = vadd.xlane.f32.xlu0 %v2557
        %v2559 = vpop.xlane.xlu0 %2558
        %v2560 = vadd.f32 %v2514, %v2515
        %2561 = vadd.xlane.f32.xlu0 %v2560
        %v2562 = vpop.xlane.xlu0 %2561
        %v2563 = vadd.f32 %v2516, %v2517
        %2564 = vadd.xlane.f32.xlu0 %v2563
        %v2565 = vpop.xlane.xlu0 %2564
        %v2566 = vmax.f32 %v2440, %v2520
        %v2567 = vmax.f32 %v2443, %v2523
        %v2568 = vmax.f32 %v2446, %v2526
        %v2569 = vmax.f32 %v2449, %v2529
        %v2570 = vmax.f32 %v2452, %v2532
        %v2571 = vmax.f32 %v2455, %v2535
        %v2572 = vmax.f32 %v2458, %v2538
        %v2573 = vmax.f32 %v2461, %v2541
        %v2574 = vmax.f32 %v2464, %v2544
        %v2575 = vmax.f32 %v2467, %v2547
        %v2576 = vmax.f32 %v2470, %v2550
        %v2577 = vmax.f32 %v2473, %v2553
        %v2578 = vmax.f32 %v2476, %v2556
        %v2579 = vmax.f32 %v2479, %v2559
        %v2580 = vmax.f32 %v2482, %v2562
        %v2581 = vmax.f32 %v2485, %v2565
        %v2582 = vsub.f32 %v2440, %v2566
        %v2583 = vsub.f32 %v2443, %v2567
        %v2584 = vsub.f32 %v2446, %v2568
        %v2585 = vsub.f32 %v2449, %v2569
        %v2586 = vsub.f32 %v2452, %v2570
        %v2587 = vsub.f32 %v2455, %v2571
        %v2588 = vsub.f32 %v2458, %v2572
        %v2589 = vsub.f32 %v2461, %v2573
        %v2590 = vsub.f32 %v2464, %v2574
        %v2591 = vsub.f32 %v2467, %v2575
        %v2592 = vsub.f32 %v2470, %v2576
        %v2593 = vsub.f32 %v2473, %v2577
        %v2594 = vsub.f32 %v2476, %v2578
        %v2595 = vsub.f32 %v2479, %v2579
        %v2596 = vsub.f32 %v2482, %v2580
        %v2597 = vsub.f32 %v2485, %v2581
        %v2598 = vmul.f32 %v2582, 1.442695
        %v2599 = vpow.pop %v2598
        %v2600 = vmul.f32 %v2583, 1.442695
        %v2601 = vpow.pop %v2600
        %v2602 = vmul.f32 %v2584, 1.442695
        %v2603 = vpow.pop %v2602
        %v2604 = vmul.f32 %v2585, 1.442695
        %v2605 = vpow.pop %v2604
        %v2606 = vmul.f32 %v2586, 1.442695
        %v2607 = vpow.pop %v2606
        %v2608 = vmul.f32 %v2587, 1.442695
        %v2609 = vpow.pop %v2608
        %v2610 = vmul.f32 %v2588, 1.442695
        %v2611 = vpow.pop %v2610
        %v2612 = vmul.f32 %v2589, 1.442695
        %v2613 = vpow.pop %v2612
        %v2614 = vmul.f32 %v2590, 1.442695
        %v2615 = vpow.pop %v2614
        %v2616 = vmul.f32 %v2591, 1.442695
        %v2617 = vpow.pop %v2616
        %v2618 = vmul.f32 %v2592, 1.442695
        %v2619 = vpow.pop %v2618
        %v2620 = vmul.f32 %v2593, 1.442695
        %v2621 = vpow.pop %v2620
        %v2622 = vmul.f32 %v2594, 1.442695
        %v2623 = vpow.pop %v2622
        %v2624 = vmul.f32 %v2595, 1.442695
        %v2625 = vpow.pop %v2624
        %v2626 = vmul.f32 %v2596, 1.442695
        %v2627 = vpow.pop %v2626
        %v2628 = vmul.f32 %v2597, 1.442695
        %v2629 = vpow.pop %v2628
        %v2630 = vsub.f32 %v2520, %v2566
        %v2631 = vsub.f32 %v2523, %v2567
        %v2632 = vsub.f32 %v2526, %v2568
        %v2633 = vsub.f32 %v2529, %v2569
        %v2634 = vsub.f32 %v2532, %v2570
        %v2635 = vsub.f32 %v2535, %v2571
        %v2636 = vsub.f32 %v2538, %v2572
        %v2637 = vsub.f32 %v2541, %v2573
        %v2638 = vsub.f32 %v2544, %v2574
        %v2639 = vsub.f32 %v2547, %v2575
        %v2640 = vsub.f32 %v2550, %v2576
        %v2641 = vsub.f32 %v2553, %v2577
        %v2642 = vsub.f32 %v2556, %v2578
        %v2643 = vsub.f32 %v2559, %v2579
        %v2644 = vsub.f32 %v2562, %v2580
        %v2645 = vsub.f32 %v2565, %v2581
        %v2646 = vmul.f32 %v2630, 1.442695
        %v2647 = vpow.pop %v2646
        %v2648 = vmul.f32 %v2631, 1.442695
        %v2649 = vpow.pop %v2648
        %v2650 = vmul.f32 %v2632, 1.442695
        %v2651 = vpow.pop %v2650
        %v2652 = vmul.f32 %v2633, 1.442695
        %v2653 = vpow.pop %v2652
        %v2654 = vmul.f32 %v2634, 1.442695
        %v2655 = vpow.pop %v2654
        %v2656 = vmul.f32 %v2635, 1.442695
        %v2657 = vpow.pop %v2656
        %v2658 = vmul.f32 %v2636, 1.442695
        %v2659 = vpow.pop %v2658
        %v2660 = vmul.f32 %v2637, 1.442695
        %v2661 = vpow.pop %v2660
        %v2662 = vmul.f32 %v2638, 1.442695
        %v2663 = vpow.pop %v2662
        %v2664 = vmul.f32 %v2639, 1.442695
        %v2665 = vpow.pop %v2664
        %v2666 = vmul.f32 %v2640, 1.442695
        %v2667 = vpow.pop %v2666
        %v2668 = vmul.f32 %v2641, 1.442695
        %v2669 = vpow.pop %v2668
        %v2670 = vmul.f32 %v2642, 1.442695
        %v2671 = vpow.pop %v2670
        %v2672 = vmul.f32 %v2643, 1.442695
        %v2673 = vpow.pop %v2672
        %v2674 = vmul.f32 %v2644, 1.442695
        %v2675 = vpow.pop %v2674
        %v2676 = vmul.f32 %v2645, 1.442695
        %v2677 = vpow.pop %v2676
        %v2678 = vadd.f32 %v2599, %v2647
        %v2679 = vadd.f32 %v2601, %v2649
        %v2680 = vadd.f32 %v2603, %v2651
        %v2681 = vadd.f32 %v2605, %v2653
        %v2682 = vadd.f32 %v2607, %v2655
        %v2683 = vadd.f32 %v2609, %v2657
        %v2684 = vadd.f32 %v2611, %v2659
        %v2685 = vadd.f32 %v2613, %v2661
        %v2686 = vadd.f32 %v2615, %v2663
        %v2687 = vadd.f32 %v2617, %v2665
        %v2688 = vadd.f32 %v2619, %v2667
        %v2689 = vadd.f32 %v2621, %v2669
        %v2690 = vadd.f32 %v2623, %v2671
        %v2691 = vadd.f32 %v2625, %v2673
        %v2692 = vadd.f32 %v2627, %v2675
        %v2693 = vadd.f32 %v2629, %v2677
        %v2694 = vrcp.pop %v2678
        %v2695 = vrcp.pop %v2679
        %v2696 = vrcp.pop %v2680
        %v2697 = vrcp.pop %v2681
        %v2698 = vrcp.pop %v2682
        %v2699 = vrcp.pop %v2683
        %v2700 = vrcp.pop %v2684
        %v2701 = vrcp.pop %v2685
        %v2702 = vrcp.pop %v2686
        %v2703 = vrcp.pop %v2687
        %v2704 = vrcp.pop %v2688
        %v2705 = vrcp.pop %v2689
        %v2706 = vrcp.pop %v2690
        %v2707 = vrcp.pop %v2691
        %v2708 = vrcp.pop %v2692
        %v2709 = vrcp.pop %v2693
        %v2710 = vmul.f32 %v2599, %v2694
        %v2711 = vmul.f32 %v2601, %v2695
        %v2712 = vmul.f32 %v2603, %v2696
        %v2713 = vmul.f32 %v2605, %v2697
        %v2714 = vmul.f32 %v2607, %v2698
        %v2715 = vmul.f32 %v2609, %v2699
        %v2716 = vmul.f32 %v2611, %v2700
        %v2717 = vmul.f32 %v2613, %v2701
        %v2718 = vmul.f32 %v2615, %v2702
        %v2719 = vmul.f32 %v2617, %v2703
        %v2720 = vmul.f32 %v2619, %v2704
        %v2721 = vmul.f32 %v2621, %v2705
        %v2722 = vmul.f32 %v2623, %v2706
        %v2723 = vmul.f32 %v2625, %v2707
        %v2724 = vmul.f32 %v2627, %v2708
        %v2725 = vmul.f32 %v2629, %v2709
        %v2726 = vmul.f32 %v2647, %v2694
        %v2727 = vmul.f32 %v2649, %v2695
        %v2728 = vmul.f32 %v2651, %v2696
        %v2729 = vmul.f32 %v2653, %v2697
        %v2730 = vmul.f32 %v2655, %v2698
        %v2731 = vmul.f32 %v2657, %v2699
        %v2732 = vmul.f32 %v2659, %v2700
        %v2733 = vmul.f32 %v2661, %v2701
        %v2734 = vmul.f32 %v2663, %v2702
        %v2735 = vmul.f32 %v2665, %v2703
        %v2736 = vmul.f32 %v2667, %v2704
        %v2737 = vmul.f32 %v2669, %v2705
        %v2738 = vmul.f32 %v2671, %v2706
        %v2739 = vmul.f32 %v2673, %v2707
        %v2740 = vmul.f32 %v2675, %v2708
        %v2741 = vmul.f32 %v2677, %v2709
        %v2742 = vmul.f32 %v522, %v2710
        %v2743 = vmul.f32 %v523, %v2710
        %v2744 = vmul.f32 %v524, %v2710
        %v2745 = vmul.f32 %v525, %v2710
        %v2746 = vmul.f32 %v526, %v2711
        %v2747 = vmul.f32 %v527, %v2711
        %v2748 = vmul.f32 %v528, %v2711
        %v2749 = vmul.f32 %v529, %v2711
        %v2750 = vmul.f32 %v530, %v2712
        %v2751 = vmul.f32 %v531, %v2712
        %v2752 = vmul.f32 %v532, %v2712
        %v2753 = vmul.f32 %v533, %v2712
        %v2754 = vmul.f32 %v534, %v2713
        %v2755 = vmul.f32 %v535, %v2713
        %v2756 = vmul.f32 %v536, %v2713
        %v2757 = vmul.f32 %v537, %v2713
        %v2758 = vmul.f32 %v538, %v2714
        %v2759 = vmul.f32 %v539, %v2714
        %v2760 = vmul.f32 %v540, %v2714
        %v2761 = vmul.f32 %v541, %v2714
        %v2762 = vmul.f32 %v542, %v2715
        %v2763 = vmul.f32 %v543, %v2715
        %v2764 = vmul.f32 %v544, %v2715
        %v2765 = vmul.f32 %v545, %v2715
        %v2766 = vmul.f32 %v546, %v2716
        %v2767 = vmul.f32 %v547, %v2716
        %v2768 = vmul.f32 %v548, %v2716
        %v2769 = vmul.f32 %v549, %v2716
        %v2770 = vmul.f32 %v550, %v2717
        %v2771 = vmul.f32 %v551, %v2717
        %v2772 = vmul.f32 %v552, %v2717
        %v2773 = vmul.f32 %v553, %v2717
        %v2774 = vmul.f32 %v554, %v2718
        %v2775 = vmul.f32 %v555, %v2718
        %v2776 = vmul.f32 %v556, %v2718
        %v2777 = vmul.f32 %v557, %v2718
        %v2778 = vmul.f32 %v558, %v2719
        %v2779 = vmul.f32 %v559, %v2719
        %v2780 = vmul.f32 %v560, %v2719
        %v2781 = vmul.f32 %v561, %v2719
        %v2782 = vmul.f32 %v562, %v2720
        %v2783 = vmul.f32 %v563, %v2720
        %v2784 = vmul.f32 %v564, %v2720
        %v2785 = vmul.f32 %v565, %v2720
        %v2786 = vmul.f32 %v566, %v2721
        %v2787 = vmul.f32 %v567, %v2721
        %v2788 = vmul.f32 %v568, %v2721
        %v2789 = vmul.f32 %v569, %v2721
        %v2790 = vmul.f32 %v570, %v2722
        %v2791 = vmul.f32 %v571, %v2722
        %v2792 = vmul.f32 %v572, %v2722
        %v2793 = vmul.f32 %v573, %v2722
        %v2794 = vmul.f32 %v574, %v2723
        %v2795 = vmul.f32 %v575, %v2723
        %v2796 = vmul.f32 %v576, %v2723
        %v2797 = vmul.f32 %v577, %v2723
        %v2798 = vmul.f32 %v578, %v2724
        %v2799 = vmul.f32 %v579, %v2724
        %v2800 = vmul.f32 %v580, %v2724
        %v2801 = vmul.f32 %v581, %v2724
        %v2802 = vmul.f32 %v582, %v2725
        %v2803 = vmul.f32 %v583, %v2725
        %v2804 = vmul.f32 %v584, %v2725
        %v2805 = vmul.f32 %v585, %v2725
        %v2806 = vpack.c.bf16 %v2746, %v2742
        %v2807 = vpack.c.bf16 %v2747, %v2743
        %v2808 = vpack.c.bf16 %v2748, %v2744
        %v2809 = vpack.c.bf16 %v2749, %v2745
        %v2810 = vpack.c.bf16 %v2754, %v2750
        %v2811 = vpack.c.bf16 %v2755, %v2751
        %v2812 = vpack.c.bf16 %v2756, %v2752
        %v2813 = vpack.c.bf16 %v2757, %v2753
        %v2814 = vpack.c.bf16 %v2762, %v2758
        %v2815 = vpack.c.bf16 %v2763, %v2759
        %v2816 = vpack.c.bf16 %v2764, %v2760
        %v2817 = vpack.c.bf16 %v2765, %v2761
        %v2818 = vpack.c.bf16 %v2770, %v2766
        %v2819 = vpack.c.bf16 %v2771, %v2767
        %v2820 = vpack.c.bf16 %v2772, %v2768
        %v2821 = vpack.c.bf16 %v2773, %v2769
        %v2822 = vpack.c.bf16 %v2778, %v2774
        %v2823 = vpack.c.bf16 %v2779, %v2775
        %v2824 = vpack.c.bf16 %v2780, %v2776
        %v2825 = vpack.c.bf16 %v2781, %v2777
        %v2826 = vpack.c.bf16 %v2786, %v2782
        %v2827 = vpack.c.bf16 %v2787, %v2783
        %v2828 = vpack.c.bf16 %v2788, %v2784
        %v2829 = vpack.c.bf16 %v2789, %v2785
        %v2830 = vpack.c.bf16 %v2794, %v2790
        %v2831 = vpack.c.bf16 %v2795, %v2791
        %v2832 = vpack.c.bf16 %v2796, %v2792
        %v2833 = vpack.c.bf16 %v2797, %v2793
        %v2834 = vpack.c.bf16 %v2802, %v2798
        %v2835 = vpack.c.bf16 %v2803, %v2799
        %v2836 = vpack.c.bf16 %v2804, %v2800
        %v2837 = vpack.c.bf16 %v2805, %v2801
        %v2838 = vmul.f32 %v586, %v2726
        %v2839 = vmul.f32 %v587, %v2726
        %v2840 = vmul.f32 %v588, %v2726
        %v2841 = vmul.f32 %v589, %v2726
        %v2842 = vmul.f32 %v590, %v2727
        %v2843 = vmul.f32 %v591, %v2727
        %v2844 = vmul.f32 %v592, %v2727
        %v2845 = vmul.f32 %v593, %v2727
        %v2846 = vmul.f32 %v594, %v2728
        %v2847 = vmul.f32 %v595, %v2728
        %v2848 = vmul.f32 %v596, %v2728
        %v2849 = vmul.f32 %v597, %v2728
        %v2850 = vmul.f32 %v598, %v2729
        %v2851 = vmul.f32 %v599, %v2729
        %v2852 = vmul.f32 %v600, %v2729
        %v2853 = vmul.f32 %v601, %v2729
        %v2854 = vmul.f32 %v602, %v2730
        %v2855 = vmul.f32 %v603, %v2730
        %v2856 = vmul.f32 %v604, %v2730
        %v2857 = vmul.f32 %v605, %v2730
        %v2858 = vmul.f32 %v606, %v2731
        %v2859 = vmul.f32 %v607, %v2731
        %v2860 = vmul.f32 %v608, %v2731
        %v2861 = vmul.f32 %v609, %v2731
        %v2862 = vmul.f32 %v610, %v2732
        %v2863 = vmul.f32 %v611, %v2732
        %v2864 = vmul.f32 %v612, %v2732
        %v2865 = vmul.f32 %v613, %v2732
        %v2866 = vmul.f32 %v614, %v2733
        %v2867 = vmul.f32 %v615, %v2733
        %v2868 = vmul.f32 %v616, %v2733
        %v2869 = vmul.f32 %v617, %v2733
        %v2870 = vmul.f32 %v618, %v2734
        %v2871 = vmul.f32 %v619, %v2734
        %v2872 = vmul.f32 %v620, %v2734
        %v2873 = vmul.f32 %v621, %v2734
        %v2874 = vmul.f32 %v622, %v2735
        %v2875 = vmul.f32 %v623, %v2735
        %v2876 = vmul.f32 %v624, %v2735
        %v2877 = vmul.f32 %v625, %v2735
        %v2878 = vmul.f32 %v626, %v2736
        %v2879 = vmul.f32 %v627, %v2736
        %v2880 = vmul.f32 %v628, %v2736
        %v2881 = vmul.f32 %v629, %v2736
        %v2882 = vmul.f32 %v630, %v2737
        %v2883 = vmul.f32 %v631, %v2737
        %v2884 = vmul.f32 %v632, %v2737
        %v2885 = vmul.f32 %v633, %v2737
        %v2886 = vmul.f32 %v634, %v2738
        %v2887 = vmul.f32 %v635, %v2738
        %v2888 = vmul.f32 %v636, %v2738
        %v2889 = vmul.f32 %v637, %v2738
        %v2890 = vmul.f32 %v638, %v2739
        %v2891 = vmul.f32 %v639, %v2739
        %v2892 = vmul.f32 %v640, %v2739
        %v2893 = vmul.f32 %v641, %v2739
        %v2894 = vmul.f32 %v642, %v2740
        %v2895 = vmul.f32 %v643, %v2740
        %v2896 = vmul.f32 %v644, %v2740
        %v2897 = vmul.f32 %v645, %v2740
        %v2898 = vmul.f32 %v646, %v2741
        %v2899 = vmul.f32 %v647, %v2741
        %v2900 = vmul.f32 %v648, %v2741
        %v2901 = vmul.f32 %v649, %v2741
        %v2902 = vpack.c.bf16 %v2842, %v2838
        %v2903 = vpack.c.bf16 %v2843, %v2839
        %v2904 = vpack.c.bf16 %v2844, %v2840
        %v2905 = vpack.c.bf16 %v2845, %v2841
        %v2906 = vpack.c.bf16 %v2850, %v2846
        %v2907 = vpack.c.bf16 %v2851, %v2847
        %v2908 = vpack.c.bf16 %v2852, %v2848
        %v2909 = vpack.c.bf16 %v2853, %v2849
        %v2910 = vpack.c.bf16 %v2858, %v2854
        %v2911 = vpack.c.bf16 %v2859, %v2855
        %v2912 = vpack.c.bf16 %v2860, %v2856
        %v2913 = vpack.c.bf16 %v2861, %v2857
        %v2914 = vpack.c.bf16 %v2866, %v2862
        %v2915 = vpack.c.bf16 %v2867, %v2863
        %v2916 = vpack.c.bf16 %v2868, %v2864
        %v2917 = vpack.c.bf16 %v2869, %v2865
        %v2918 = vpack.c.bf16 %v2874, %v2870
        %v2919 = vpack.c.bf16 %v2875, %v2871
        %v2920 = vpack.c.bf16 %v2876, %v2872
        %v2921 = vpack.c.bf16 %v2877, %v2873
        %v2922 = vpack.c.bf16 %v2882, %v2878
        %v2923 = vpack.c.bf16 %v2883, %v2879
        %v2924 = vpack.c.bf16 %v2884, %v2880
        %v2925 = vpack.c.bf16 %v2885, %v2881
        %v2926 = vpack.c.bf16 %v2890, %v2886
        %v2927 = vpack.c.bf16 %v2891, %v2887
        %v2928 = vpack.c.bf16 %v2892, %v2888
        %v2929 = vpack.c.bf16 %v2893, %v2889
        %v2930 = vpack.c.bf16 %v2898, %v2894
        %v2931 = vpack.c.bf16 %v2899, %v2895
        %v2932 = vpack.c.bf16 %v2900, %v2896
        %v2933 = vpack.c.bf16 %v2901, %v2897
        %v2934 = vld [vmem:[#allocation10] sm:$0xff]
        %v2935 = vld [vmem:[#allocation10 + $0x8] sm:$0xff]
        %v2936 = vld [vmem:[#allocation10 + $0x10] sm:$0xff]
        %v2937 = vld [vmem:[#allocation10 + $0x18] sm:$0xff]
        %v2938 = vld [vmem:[#allocation10 + $0x20] sm:$0xff]
        %v2939 = vld [vmem:[#allocation10 + $0x28] sm:$0xff]
        %v2940 = vld [vmem:[#allocation10 + $0x30] sm:$0xff]
        %v2941 = vld [vmem:[#allocation10 + $0x38] sm:$0xff]
        %v2942 = vld [vmem:[#allocation10 + $0x40] sm:$0xff]
        %v2943 = vld [vmem:[#allocation10 + $0x48] sm:$0xff]
        %v2944 = vld [vmem:[#allocation10 + $0x50] sm:$0xff]
        %v2945 = vld [vmem:[#allocation10 + $0x58] sm:$0xff]
        %v2946 = vld [vmem:[#allocation10 + $0x60] sm:$0xff]
        %v2947 = vld [vmem:[#allocation10 + $0x68] sm:$0xff]
        %v2948 = vld [vmem:[#allocation10 + $0x70] sm:$0xff]
        %v2949 = vld [vmem:[#allocation10 + $0x78] sm:$0xff]
        %v2950 = vld [vmem:[#allocation10 + $0x80] sm:$0xff]
        %v2951 = vld [vmem:[#allocation10 + $0x88] sm:$0xff]
        %v2952 = vld [vmem:[#allocation10 + $0x90] sm:$0xff]
        %v2953 = vld [vmem:[#allocation10 + $0x98] sm:$0xff]
        %v2954 = vld [vmem:[#allocation10 + $0xa0] sm:$0xff]
        %v2955 = vld [vmem:[#allocation10 + $0xa8] sm:$0xff]
        %v2956 = vld [vmem:[#allocation10 + $0xb0] sm:$0xff]
        %v2957 = vld [vmem:[#allocation10 + $0xb8] sm:$0xff]
        %v2958 = vld [vmem:[#allocation10 + $0xc0] sm:$0xff]
        %v2959 = vld [vmem:[#allocation10 + $0xc8] sm:$0xff]
        %v2960 = vld [vmem:[#allocation10 + $0xd0] sm:$0xff]
        %v2961 = vld [vmem:[#allocation10 + $0xd8] sm:$0xff]
        %v2962 = vld [vmem:[#allocation10 + $0xe0] sm:$0xff]
        %v2963 = vld [vmem:[#allocation10 + $0xe8] sm:$0xff]
        %v2964 = vld [vmem:[#allocation10 + $0xf0] sm:$0xff]
        %v2965 = vld [vmem:[#allocation10 + $0xf8] sm:$0xff]
        %v2966 = vld [vmem:[#allocation10 + $0x100] sm:$0xff]
        %v2967 = vld [vmem:[#allocation10 + $0x108] sm:$0xff]
        %v2968 = vld [vmem:[#allocation10 + $0x110] sm:$0xff]
        %v2969 = vld [vmem:[#allocation10 + $0x118] sm:$0xff]
        %v2970 = vld [vmem:[#allocation10 + $0x120] sm:$0xff]
        %v2971 = vld [vmem:[#allocation10 + $0x128] sm:$0xff]
        %v2972 = vld [vmem:[#allocation10 + $0x130] sm:$0xff]
        %v2973 = vld [vmem:[#allocation10 + $0x138] sm:$0xff]
        %v2974 = vld [vmem:[#allocation10 + $0x140] sm:$0xff]
        %v2975 = vld [vmem:[#allocation10 + $0x148] sm:$0xff]
        %v2976 = vld [vmem:[#allocation10 + $0x150] sm:$0xff]
        %v2977 = vld [vmem:[#allocation10 + $0x158] sm:$0xff]
        %v2978 = vld [vmem:[#allocation10 + $0x160] sm:$0xff]
        %v2979 = vld [vmem:[#allocation10 + $0x168] sm:$0xff]
        %v2980 = vld [vmem:[#allocation10 + $0x170] sm:$0xff]
        %v2981 = vld [vmem:[#allocation10 + $0x178] sm:$0xff]
        %v2982 = vld [vmem:[#allocation10 + $0x180] sm:$0xff]
        %v2983 = vld [vmem:[#allocation10 + $0x188] sm:$0xff]
        %v2984 = vld [vmem:[#allocation10 + $0x190] sm:$0xff]
        %v2985 = vld [vmem:[#allocation10 + $0x198] sm:$0xff]
        %v2986 = vld [vmem:[#allocation10 + $0x1a0] sm:$0xff]
        %v2987 = vld [vmem:[#allocation10 + $0x1a8] sm:$0xff]
        %v2988 = vld [vmem:[#allocation10 + $0x1b0] sm:$0xff]
        %v2989 = vld [vmem:[#allocation10 + $0x1b8] sm:$0xff]
        %v2990 = vld [vmem:[#allocation10 + $0x1c0] sm:$0xff]
        %v2991 = vld [vmem:[#allocation10 + $0x1c8] sm:$0xff]
        %v2992 = vld [vmem:[#allocation10 + $0x1d0] sm:$0xff]
        %v2993 = vld [vmem:[#allocation10 + $0x1d8] sm:$0xff]
        %v2994 = vld [vmem:[#allocation10 + $0x1e0] sm:$0xff]
        %v2995 = vld [vmem:[#allocation10 + $0x1e8] sm:$0xff]
        %v2996 = vld [vmem:[#allocation10 + $0x1f0] sm:$0xff]
        %v2997 = vld [vmem:[#allocation10 + $0x1f8] sm:$0xff]
        %v2998 = vld [vmem:[#allocation10 + $0x200] sm:$0xff]
        %v2999 = vld [vmem:[#allocation10 + $0x208] sm:$0xff]
        %v3000 = vld [vmem:[#allocation10 + $0x210] sm:$0xff]
        %v3001 = vld [vmem:[#allocation10 + $0x218] sm:$0xff]
        %v3002 = vld [vmem:[#allocation10 + $0x220] sm:$0xff]
        %v3003 = vld [vmem:[#allocation10 + $0x228] sm:$0xff]
        %v3004 = vld [vmem:[#allocation10 + $0x230] sm:$0xff]
        %v3005 = vld [vmem:[#allocation10 + $0x238] sm:$0xff]
        %v3006 = vld [vmem:[#allocation10 + $0x240] sm:$0xff]
        %v3007 = vld [vmem:[#allocation10 + $0x248] sm:$0xff]
        %v3008 = vld [vmem:[#allocation10 + $0x250] sm:$0xff]
        %v3009 = vld [vmem:[#allocation10 + $0x258] sm:$0xff]
        %v3010 = vld [vmem:[#allocation10 + $0x260] sm:$0xff]
        %v3011 = vld [vmem:[#allocation10 + $0x268] sm:$0xff]
        %v3012 = vld [vmem:[#allocation10 + $0x270] sm:$0xff]
        %v3013 = vld [vmem:[#allocation10 + $0x278] sm:$0xff]
        %v3014 = vld [vmem:[#allocation10 + $0x280] sm:$0xff]
        %v3015 = vld [vmem:[#allocation10 + $0x288] sm:$0xff]
        %v3016 = vld [vmem:[#allocation10 + $0x290] sm:$0xff]
        %v3017 = vld [vmem:[#allocation10 + $0x298] sm:$0xff]
        %v3018 = vld [vmem:[#allocation10 + $0x2a0] sm:$0xff]
        %v3019 = vld [vmem:[#allocation10 + $0x2a8] sm:$0xff]
        %v3020 = vld [vmem:[#allocation10 + $0x2b0] sm:$0xff]
        %v3021 = vld [vmem:[#allocation10 + $0x2b8] sm:$0xff]
        %v3022 = vld [vmem:[#allocation10 + $0x2c0] sm:$0xff]
        %v3023 = vld [vmem:[#allocation10 + $0x2c8] sm:$0xff]
        %v3024 = vld [vmem:[#allocation10 + $0x2d0] sm:$0xff]
        %v3025 = vld [vmem:[#allocation10 + $0x2d8] sm:$0xff]
        %v3026 = vld [vmem:[#allocation10 + $0x2e0] sm:$0xff]
        %v3027 = vld [vmem:[#allocation10 + $0x2e8] sm:$0xff]
        %v3028 = vld [vmem:[#allocation10 + $0x2f0] sm:$0xff]
        %v3029 = vld [vmem:[#allocation10 + $0x2f8] sm:$0xff]
        %v3030 = vld [vmem:[#allocation10 + $0x300] sm:$0xff]
        %v3031 = vld [vmem:[#allocation10 + $0x308] sm:$0xff]
        %v3032 = vld [vmem:[#allocation10 + $0x310] sm:$0xff]
        %v3033 = vld [vmem:[#allocation10 + $0x318] sm:$0xff]
        %v3034 = vld [vmem:[#allocation10 + $0x320] sm:$0xff]
        %v3035 = vld [vmem:[#allocation10 + $0x328] sm:$0xff]
        %v3036 = vld [vmem:[#allocation10 + $0x330] sm:$0xff]
        %v3037 = vld [vmem:[#allocation10 + $0x338] sm:$0xff]
        %v3038 = vld [vmem:[#allocation10 + $0x340] sm:$0xff]
        %v3039 = vld [vmem:[#allocation10 + $0x348] sm:$0xff]
        %v3040 = vld [vmem:[#allocation10 + $0x350] sm:$0xff]
        %v3041 = vld [vmem:[#allocation10 + $0x358] sm:$0xff]
        %v3042 = vld [vmem:[#allocation10 + $0x360] sm:$0xff]
        %v3043 = vld [vmem:[#allocation10 + $0x368] sm:$0xff]
        %v3044 = vld [vmem:[#allocation10 + $0x370] sm:$0xff]
        %v3045 = vld [vmem:[#allocation10 + $0x378] sm:$0xff]
        %v3046 = vld [vmem:[#allocation10 + $0x380] sm:$0xff]
        %v3047 = vld [vmem:[#allocation10 + $0x388] sm:$0xff]
        %v3048 = vld [vmem:[#allocation10 + $0x390] sm:$0xff]
        %v3049 = vld [vmem:[#allocation10 + $0x398] sm:$0xff]
        %v3050 = vld [vmem:[#allocation10 + $0x3a0] sm:$0xff]
        %v3051 = vld [vmem:[#allocation10 + $0x3a8] sm:$0xff]
        %v3052 = vld [vmem:[#allocation10 + $0x3b0] sm:$0xff]
        %v3053 = vld [vmem:[#allocation10 + $0x3b8] sm:$0xff]
        %v3054 = vld [vmem:[#allocation10 + $0x3c0] sm:$0xff]
        %v3055 = vld [vmem:[#allocation10 + $0x3c8] sm:$0xff]
        %v3056 = vld [vmem:[#allocation10 + $0x3d0] sm:$0xff]
        %v3057 = vld [vmem:[#allocation10 + $0x3d8] sm:$0xff]
        %v3058 = vld [vmem:[#allocation10 + $0x3e0] sm:$0xff]
        %v3059 = vld [vmem:[#allocation10 + $0x3e8] sm:$0xff]
        %v3060 = vld [vmem:[#allocation10 + $0x3f0] sm:$0xff]
        %v3061 = vld [vmem:[#allocation10 + $0x3f8] sm:$0xff]
        %v3062 = vld [vmem:[#allocation11] sm:$0xff]
        %v3063 = vld [vmem:[#allocation11 + $0x8] sm:$0xff]
        %v3064 = vld [vmem:[#allocation11 + $0x10] sm:$0xff]
        %v3065 = vld [vmem:[#allocation11 + $0x18] sm:$0xff]
        %v3066 = vld [vmem:[#allocation11 + $0x20] sm:$0xff]
        %v3067 = vld [vmem:[#allocation11 + $0x28] sm:$0xff]
        %v3068 = vld [vmem:[#allocation11 + $0x30] sm:$0xff]
        %v3069 = vld [vmem:[#allocation11 + $0x38] sm:$0xff]
        %v3070 = vld [vmem:[#allocation11 + $0x40] sm:$0xff]
        %v3071 = vld [vmem:[#allocation11 + $0x48] sm:$0xff]
        %v3072 = vld [vmem:[#allocation11 + $0x50] sm:$0xff]
        %v3073 = vld [vmem:[#allocation11 + $0x58] sm:$0xff]
        %v3074 = vld [vmem:[#allocation11 + $0x60] sm:$0xff]
        %v3075 = vld [vmem:[#allocation11 + $0x68] sm:$0xff]
        %v3076 = vld [vmem:[#allocation11 + $0x70] sm:$0xff]
        %v3077 = vld [vmem:[#allocation11 + $0x78] sm:$0xff]
        %v3078 = vld [vmem:[#allocation11 + $0x80] sm:$0xff]
        %v3079 = vld [vmem:[#allocation11 + $0x88] sm:$0xff]
        %v3080 = vld [vmem:[#allocation11 + $0x90] sm:$0xff]
        %v3081 = vld [vmem:[#allocation11 + $0x98] sm:$0xff]
        %v3082 = vld [vmem:[#allocation11 + $0xa0] sm:$0xff]
        %v3083 = vld [vmem:[#allocation11 + $0xa8] sm:$0xff]
        %v3084 = vld [vmem:[#allocation11 + $0xb0] sm:$0xff]
        %v3085 = vld [vmem:[#allocation11 + $0xb8] sm:$0xff]
        %v3086 = vld [vmem:[#allocation11 + $0xc0] sm:$0xff]
        %v3087 = vld [vmem:[#allocation11 + $0xc8] sm:$0xff]
        %v3088 = vld [vmem:[#allocation11 + $0xd0] sm:$0xff]
        %v3089 = vld [vmem:[#allocation11 + $0xd8] sm:$0xff]
        %v3090 = vld [vmem:[#allocation11 + $0xe0] sm:$0xff]
        %v3091 = vld [vmem:[#allocation11 + $0xe8] sm:$0xff]
        %v3092 = vld [vmem:[#allocation11 + $0xf0] sm:$0xff]
        %v3093 = vld [vmem:[#allocation11 + $0xf8] sm:$0xff]
        %v3094 = vld [vmem:[#allocation11 + $0x100] sm:$0xff]
        %v3095 = vld [vmem:[#allocation11 + $0x108] sm:$0xff]
        %v3096 = vld [vmem:[#allocation11 + $0x110] sm:$0xff]
        %v3097 = vld [vmem:[#allocation11 + $0x118] sm:$0xff]
        %v3098 = vld [vmem:[#allocation11 + $0x120] sm:$0xff]
        %v3099 = vld [vmem:[#allocation11 + $0x128] sm:$0xff]
        %v3100 = vld [vmem:[#allocation11 + $0x130] sm:$0xff]
        %v3101 = vld [vmem:[#allocation11 + $0x138] sm:$0xff]
        %v3102 = vld [vmem:[#allocation11 + $0x140] sm:$0xff]
        %v3103 = vld [vmem:[#allocation11 + $0x148] sm:$0xff]
        %v3104 = vld [vmem:[#allocation11 + $0x150] sm:$0xff]
        %v3105 = vld [vmem:[#allocation11 + $0x158] sm:$0xff]
        %v3106 = vld [vmem:[#allocation11 + $0x160] sm:$0xff]
        %v3107 = vld [vmem:[#allocation11 + $0x168] sm:$0xff]
        %v3108 = vld [vmem:[#allocation11 + $0x170] sm:$0xff]
        %v3109 = vld [vmem:[#allocation11 + $0x178] sm:$0xff]
        %v3110 = vld [vmem:[#allocation11 + $0x180] sm:$0xff]
        %v3111 = vld [vmem:[#allocation11 + $0x188] sm:$0xff]
        %v3112 = vld [vmem:[#allocation11 + $0x190] sm:$0xff]
        %v3113 = vld [vmem:[#allocation11 + $0x198] sm:$0xff]
        %v3114 = vld [vmem:[#allocation11 + $0x1a0] sm:$0xff]
        %v3115 = vld [vmem:[#allocation11 + $0x1a8] sm:$0xff]
        %v3116 = vld [vmem:[#allocation11 + $0x1b0] sm:$0xff]
        %v3117 = vld [vmem:[#allocation11 + $0x1b8] sm:$0xff]
        %v3118 = vld [vmem:[#allocation11 + $0x1c0] sm:$0xff]
        %v3119 = vld [vmem:[#allocation11 + $0x1c8] sm:$0xff]
        %v3120 = vld [vmem:[#allocation11 + $0x1d0] sm:$0xff]
        %v3121 = vld [vmem:[#allocation11 + $0x1d8] sm:$0xff]
        %v3122 = vld [vmem:[#allocation11 + $0x1e0] sm:$0xff]
        %v3123 = vld [vmem:[#allocation11 + $0x1e8] sm:$0xff]
        %v3124 = vld [vmem:[#allocation11 + $0x1f0] sm:$0xff]
        %v3125 = vld [vmem:[#allocation11 + $0x1f8] sm:$0xff]
        %v3126 = vld [vmem:[#allocation11 + $0x200] sm:$0xff]
        %v3127 = vld [vmem:[#allocation11 + $0x208] sm:$0xff]
        %v3128 = vld [vmem:[#allocation11 + $0x210] sm:$0xff]
        %v3129 = vld [vmem:[#allocation11 + $0x218] sm:$0xff]
        %v3130 = vld [vmem:[#allocation11 + $0x220] sm:$0xff]
        %v3131 = vld [vmem:[#allocation11 + $0x228] sm:$0xff]
        %v3132 = vld [vmem:[#allocation11 + $0x230] sm:$0xff]
        %v3133 = vld [vmem:[#allocation11 + $0x238] sm:$0xff]
        %v3134 = vld [vmem:[#allocation11 + $0x240] sm:$0xff]
        %v3135 = vld [vmem:[#allocation11 + $0x248] sm:$0xff]
        %v3136 = vld [vmem:[#allocation11 + $0x250] sm:$0xff]
        %v3137 = vld [vmem:[#allocation11 + $0x258] sm:$0xff]
        %v3138 = vld [vmem:[#allocation11 + $0x260] sm:$0xff]
        %v3139 = vld [vmem:[#allocation11 + $0x268] sm:$0xff]
        %v3140 = vld [vmem:[#allocation11 + $0x270] sm:$0xff]
        %v3141 = vld [vmem:[#allocation11 + $0x278] sm:$0xff]
        %v3142 = vld [vmem:[#allocation11 + $0x280] sm:$0xff]
        %v3143 = vld [vmem:[#allocation11 + $0x288] sm:$0xff]
        %v3144 = vld [vmem:[#allocation11 + $0x290] sm:$0xff]
        %v3145 = vld [vmem:[#allocation11 + $0x298] sm:$0xff]
        %v3146 = vld [vmem:[#allocation11 + $0x2a0] sm:$0xff]
        %v3147 = vld [vmem:[#allocation11 + $0x2a8] sm:$0xff]
        %v3148 = vld [vmem:[#allocation11 + $0x2b0] sm:$0xff]
        %v3149 = vld [vmem:[#allocation11 + $0x2b8] sm:$0xff]
        %v3150 = vld [vmem:[#allocation11 + $0x2c0] sm:$0xff]
        %v3151 = vld [vmem:[#allocation11 + $0x2c8] sm:$0xff]
        %v3152 = vld [vmem:[#allocation11 + $0x2d0] sm:$0xff]
        %v3153 = vld [vmem:[#allocation11 + $0x2d8] sm:$0xff]
        %v3154 = vld [vmem:[#allocation11 + $0x2e0] sm:$0xff]
        %v3155 = vld [vmem:[#allocation11 + $0x2e8] sm:$0xff]
        %v3156 = vld [vmem:[#allocation11 + $0x2f0] sm:$0xff]
        %v3157 = vld [vmem:[#allocation11 + $0x2f8] sm:$0xff]
        %v3158 = vld [vmem:[#allocation11 + $0x300] sm:$0xff]
        %v3159 = vld [vmem:[#allocation11 + $0x308] sm:$0xff]
        %v3160 = vld [vmem:[#allocation11 + $0x310] sm:$0xff]
        %v3161 = vld [vmem:[#allocation11 + $0x318] sm:$0xff]
        %v3162 = vld [vmem:[#allocation11 + $0x320] sm:$0xff]
        %v3163 = vld [vmem:[#allocation11 + $0x328] sm:$0xff]
        %v3164 = vld [vmem:[#allocation11 + $0x330] sm:$0xff]
        %v3165 = vld [vmem:[#allocation11 + $0x338] sm:$0xff]
        %v3166 = vld [vmem:[#allocation11 + $0x340] sm:$0xff]
        %v3167 = vld [vmem:[#allocation11 + $0x348] sm:$0xff]
        %v3168 = vld [vmem:[#allocation11 + $0x350] sm:$0xff]
        %v3169 = vld [vmem:[#allocation11 + $0x358] sm:$0xff]
        %v3170 = vld [vmem:[#allocation11 + $0x360] sm:$0xff]
        %v3171 = vld [vmem:[#allocation11 + $0x368] sm:$0xff]
        %v3172 = vld [vmem:[#allocation11 + $0x370] sm:$0xff]
        %v3173 = vld [vmem:[#allocation11 + $0x378] sm:$0xff]
        %v3174 = vld [vmem:[#allocation11 + $0x380] sm:$0xff]
        %v3175 = vld [vmem:[#allocation11 + $0x388] sm:$0xff]
        %v3176 = vld [vmem:[#allocation11 + $0x390] sm:$0xff]
        %v3177 = vld [vmem:[#allocation11 + $0x398] sm:$0xff]
        %v3178 = vld [vmem:[#allocation11 + $0x3a0] sm:$0xff]
        %v3179 = vld [vmem:[#allocation11 + $0x3a8] sm:$0xff]
        %v3180 = vld [vmem:[#allocation11 + $0x3b0] sm:$0xff]
        %v3181 = vld [vmem:[#allocation11 + $0x3b8] sm:$0xff]
        %v3182 = vld [vmem:[#allocation11 + $0x3c0] sm:$0xff]
        %v3183 = vld [vmem:[#allocation11 + $0x3c8] sm:$0xff]
        %v3184 = vld [vmem:[#allocation11 + $0x3d0] sm:$0xff]
        %v3185 = vld [vmem:[#allocation11 + $0x3d8] sm:$0xff]
        %v3186 = vld [vmem:[#allocation11 + $0x3e0] sm:$0xff]
        %v3187 = vld [vmem:[#allocation11 + $0x3e8] sm:$0xff]
        %v3188 = vld [vmem:[#allocation11 + $0x3f0] sm:$0xff]
        %v3189 = vld [vmem:[#allocation11 + $0x3f8] sm:$0xff]
        %v3318 = vunpack.c.l.b16 %v3062
        %v3319 = vunpack.c.h.b16 %v3062
        %v3320 = vunpack.c.l.b16 %v3063
        %v3321 = vunpack.c.h.b16 %v3063
        %v3322 = vunpack.c.l.b16 %v3064
        %v3323 = vunpack.c.h.b16 %v3064
        %v3324 = vunpack.c.l.b16 %v3065
        %v3325 = vunpack.c.h.b16 %v3065
        %v3326 = vunpack.c.l.b16 %v3066
        %v3327 = vunpack.c.h.b16 %v3066
        %v3328 = vunpack.c.l.b16 %v3067
        %v3329 = vunpack.c.h.b16 %v3067
        %v3330 = vunpack.c.l.b16 %v3068
        %v3331 = vunpack.c.h.b16 %v3068
        %v3332 = vunpack.c.l.b16 %v3069
        %v3333 = vunpack.c.h.b16 %v3069
        %v3334 = vunpack.c.l.b16 %v3070
        %v3335 = vunpack.c.h.b16 %v3070
        %v3336 = vunpack.c.l.b16 %v3071
        %v3337 = vunpack.c.h.b16 %v3071
        %v3338 = vunpack.c.l.b16 %v3072
        %v3339 = vunpack.c.h.b16 %v3072
        %v3340 = vunpack.c.l.b16 %v3073
        %v3341 = vunpack.c.h.b16 %v3073
        %v3342 = vunpack.c.l.b16 %v3074
        %v3343 = vunpack.c.h.b16 %v3074
        %v3344 = vunpack.c.l.b16 %v3075
        %v3345 = vunpack.c.h.b16 %v3075
        %v3346 = vunpack.c.l.b16 %v3076
        %v3347 = vunpack.c.h.b16 %v3076
        %v3348 = vunpack.c.l.b16 %v3077
        %v3349 = vunpack.c.h.b16 %v3077
        %v3350 = vunpack.c.l.b16 %v3078
        %v3351 = vunpack.c.h.b16 %v3078
        %v3352 = vunpack.c.l.b16 %v3079
        %v3353 = vunpack.c.h.b16 %v3079
        %v3354 = vunpack.c.l.b16 %v3080
        %v3355 = vunpack.c.h.b16 %v3080
        %v3356 = vunpack.c.l.b16 %v3081
        %v3357 = vunpack.c.h.b16 %v3081
        %v3358 = vunpack.c.l.b16 %v3082
        %v3359 = vunpack.c.h.b16 %v3082
        %v3360 = vunpack.c.l.b16 %v3083
        %v3361 = vunpack.c.h.b16 %v3083
        %v3362 = vunpack.c.l.b16 %v3084
        %v3363 = vunpack.c.h.b16 %v3084
        %v3364 = vunpack.c.l.b16 %v3085
        %v3365 = vunpack.c.h.b16 %v3085
        %v3366 = vunpack.c.l.b16 %v3086
        %v3367 = vunpack.c.h.b16 %v3086
        %v3368 = vunpack.c.l.b16 %v3087
        %v3369 = vunpack.c.h.b16 %v3087
        %v3370 = vunpack.c.l.b16 %v3088
        %v3371 = vunpack.c.h.b16 %v3088
        %v3372 = vunpack.c.l.b16 %v3089
        %v3373 = vunpack.c.h.b16 %v3089
        %v3374 = vunpack.c.l.b16 %v3090
        %v3375 = vunpack.c.h.b16 %v3090
        %v3376 = vunpack.c.l.b16 %v3091
        %v3377 = vunpack.c.h.b16 %v3091
        %v3378 = vunpack.c.l.b16 %v3092
        %v3379 = vunpack.c.h.b16 %v3092
        %v3380 = vunpack.c.l.b16 %v3093
        %v3381 = vunpack.c.h.b16 %v3093
        %v3382 = vunpack.c.l.b16 %v3094
        %v3383 = vunpack.c.h.b16 %v3094
        %v3384 = vunpack.c.l.b16 %v3095
        %v3385 = vunpack.c.h.b16 %v3095
        %v3386 = vunpack.c.l.b16 %v3096
        %v3387 = vunpack.c.h.b16 %v3096
        %v3388 = vunpack.c.l.b16 %v3097
        %v3389 = vunpack.c.h.b16 %v3097
        %v3390 = vunpack.c.l.b16 %v3098
        %v3391 = vunpack.c.h.b16 %v3098
        %v3392 = vunpack.c.l.b16 %v3099
        %v3393 = vunpack.c.h.b16 %v3099
        %v3394 = vunpack.c.l.b16 %v3100
        %v3395 = vunpack.c.h.b16 %v3100
        %v3396 = vunpack.c.l.b16 %v3101
        %v3397 = vunpack.c.h.b16 %v3101
        %v3398 = vunpack.c.l.b16 %v3102
        %v3399 = vunpack.c.h.b16 %v3102
        %v3400 = vunpack.c.l.b16 %v3103
        %v3401 = vunpack.c.h.b16 %v3103
        %v3402 = vunpack.c.l.b16 %v3104
        %v3403 = vunpack.c.h.b16 %v3104
        %v3404 = vunpack.c.l.b16 %v3105
        %v3405 = vunpack.c.h.b16 %v3105
        %v3406 = vunpack.c.l.b16 %v3106
        %v3407 = vunpack.c.h.b16 %v3106
        %v3408 = vunpack.c.l.b16 %v3107
        %v3409 = vunpack.c.h.b16 %v3107
        %v3410 = vunpack.c.l.b16 %v3108
        %v3411 = vunpack.c.h.b16 %v3108
        %v3412 = vunpack.c.l.b16 %v3109
        %v3413 = vunpack.c.h.b16 %v3109
        %v3414 = vunpack.c.l.b16 %v3110
        %v3415 = vunpack.c.h.b16 %v3110
        %v3416 = vunpack.c.l.b16 %v3111
        %v3417 = vunpack.c.h.b16 %v3111
        %v3418 = vunpack.c.l.b16 %v3112
        %v3419 = vunpack.c.h.b16 %v3112
        %v3420 = vunpack.c.l.b16 %v3113
        %v3421 = vunpack.c.h.b16 %v3113
        %v3422 = vunpack.c.l.b16 %v3114
        %v3423 = vunpack.c.h.b16 %v3114
        %v3424 = vunpack.c.l.b16 %v3115
        %v3425 = vunpack.c.h.b16 %v3115
        %v3426 = vunpack.c.l.b16 %v3116
        %v3427 = vunpack.c.h.b16 %v3116
        %v3428 = vunpack.c.l.b16 %v3117
        %v3429 = vunpack.c.h.b16 %v3117
        %v3430 = vunpack.c.l.b16 %v3118
        %v3431 = vunpack.c.h.b16 %v3118
        %v3432 = vunpack.c.l.b16 %v3119
        %v3433 = vunpack.c.h.b16 %v3119
        %v3434 = vunpack.c.l.b16 %v3120
        %v3435 = vunpack.c.h.b16 %v3120
        %v3436 = vunpack.c.l.b16 %v3121
        %v3437 = vunpack.c.h.b16 %v3121
        %v3438 = vunpack.c.l.b16 %v3122
        %v3439 = vunpack.c.h.b16 %v3122
        %v3440 = vunpack.c.l.b16 %v3123
        %v3441 = vunpack.c.h.b16 %v3123
        %v3442 = vunpack.c.l.b16 %v3124
        %v3443 = vunpack.c.h.b16 %v3124
        %v3444 = vunpack.c.l.b16 %v3125
        %v3445 = vunpack.c.h.b16 %v3125
        %v3446 = vunpack.c.l.b16 %v3126
        %v3447 = vunpack.c.h.b16 %v3126
        %v3448 = vunpack.c.l.b16 %v3127
        %v3449 = vunpack.c.h.b16 %v3127
        %v3450 = vunpack.c.l.b16 %v3128
        %v3451 = vunpack.c.h.b16 %v3128
        %v3452 = vunpack.c.l.b16 %v3129
        %v3453 = vunpack.c.h.b16 %v3129
        %v3454 = vunpack.c.l.b16 %v3130
        %v3455 = vunpack.c.h.b16 %v3130
        %v3456 = vunpack.c.l.b16 %v3131
        %v3457 = vunpack.c.h.b16 %v3131
        %v3458 = vunpack.c.l.b16 %v3132
        %v3459 = vunpack.c.h.b16 %v3132
        %v3460 = vunpack.c.l.b16 %v3133
        %v3461 = vunpack.c.h.b16 %v3133
        %v3462 = vunpack.c.l.b16 %v3134
        %v3463 = vunpack.c.h.b16 %v3134
        %v3464 = vunpack.c.l.b16 %v3135
        %v3465 = vunpack.c.h.b16 %v3135
        %v3466 = vunpack.c.l.b16 %v3136
        %v3467 = vunpack.c.h.b16 %v3136
        %v3468 = vunpack.c.l.b16 %v3137
        %v3469 = vunpack.c.h.b16 %v3137
        %v3470 = vunpack.c.l.b16 %v3138
        %v3471 = vunpack.c.h.b16 %v3138
        %v3472 = vunpack.c.l.b16 %v3139
        %v3473 = vunpack.c.h.b16 %v3139
        %v3474 = vunpack.c.l.b16 %v3140
        %v3475 = vunpack.c.h.b16 %v3140
        %v3476 = vunpack.c.l.b16 %v3141
        %v3477 = vunpack.c.h.b16 %v3141
        %v3478 = vunpack.c.l.b16 %v3142
        %v3479 = vunpack.c.h.b16 %v3142
        %v3480 = vunpack.c.l.b16 %v3143
        %v3481 = vunpack.c.h.b16 %v3143
        %v3482 = vunpack.c.l.b16 %v3144
        %v3483 = vunpack.c.h.b16 %v3144
        %v3484 = vunpack.c.l.b16 %v3145
        %v3485 = vunpack.c.h.b16 %v3145
        %v3486 = vunpack.c.l.b16 %v3146
        %v3487 = vunpack.c.h.b16 %v3146
        %v3488 = vunpack.c.l.b16 %v3147
        %v3489 = vunpack.c.h.b16 %v3147
        %v3490 = vunpack.c.l.b16 %v3148
        %v3491 = vunpack.c.h.b16 %v3148
        %v3492 = vunpack.c.l.b16 %v3149
        %v3493 = vunpack.c.h.b16 %v3149
        %v3494 = vunpack.c.l.b16 %v3150
        %v3495 = vunpack.c.h.b16 %v3150
        %v3496 = vunpack.c.l.b16 %v3151
        %v3497 = vunpack.c.h.b16 %v3151
        %v3498 = vunpack.c.l.b16 %v3152
        %v3499 = vunpack.c.h.b16 %v3152
        %v3500 = vunpack.c.l.b16 %v3153
        %v3501 = vunpack.c.h.b16 %v3153
        %v3502 = vunpack.c.l.b16 %v3154
        %v3503 = vunpack.c.h.b16 %v3154
        %v3504 = vunpack.c.l.b16 %v3155
        %v3505 = vunpack.c.h.b16 %v3155
        %v3506 = vunpack.c.l.b16 %v3156
        %v3507 = vunpack.c.h.b16 %v3156
        %v3508 = vunpack.c.l.b16 %v3157
        %v3509 = vunpack.c.h.b16 %v3157
        %v3510 = vunpack.c.l.b16 %v3158
        %v3511 = vunpack.c.h.b16 %v3158
        %v3512 = vunpack.c.l.b16 %v3159
        %v3513 = vunpack.c.h.b16 %v3159
        %v3514 = vunpack.c.l.b16 %v3160
        %v3515 = vunpack.c.h.b16 %v3160
        %v3516 = vunpack.c.l.b16 %v3161
        %v3517 = vunpack.c.h.b16 %v3161
        %v3518 = vunpack.c.l.b16 %v3162
        %v3519 = vunpack.c.h.b16 %v3162
        %v3520 = vunpack.c.l.b16 %v3163
        %v3521 = vunpack.c.h.b16 %v3163
        %v3522 = vunpack.c.l.b16 %v3164
        %v3523 = vunpack.c.h.b16 %v3164
        %v3524 = vunpack.c.l.b16 %v3165
        %v3525 = vunpack.c.h.b16 %v3165
        %v3526 = vunpack.c.l.b16 %v3166
        %v3527 = vunpack.c.h.b16 %v3166
        %v3528 = vunpack.c.l.b16 %v3167
        %v3529 = vunpack.c.h.b16 %v3167
        %v3530 = vunpack.c.l.b16 %v3168
        %v3531 = vunpack.c.h.b16 %v3168
        %v3532 = vunpack.c.l.b16 %v3169
        %v3533 = vunpack.c.h.b16 %v3169
        %v3534 = vunpack.c.l.b16 %v3170
        %v3535 = vunpack.c.h.b16 %v3170
        %v3536 = vunpack.c.l.b16 %v3171
        %v3537 = vunpack.c.h.b16 %v3171
        %v3538 = vunpack.c.l.b16 %v3172
        %v3539 = vunpack.c.h.b16 %v3172
        %v3540 = vunpack.c.l.b16 %v3173
        %v3541 = vunpack.c.h.b16 %v3173
        %v3542 = vunpack.c.l.b16 %v3174
        %v3543 = vunpack.c.h.b16 %v3174
        %v3544 = vunpack.c.l.b16 %v3175
        %v3545 = vunpack.c.h.b16 %v3175
        %v3546 = vunpack.c.l.b16 %v3176
        %v3547 = vunpack.c.h.b16 %v3176
        %v3548 = vunpack.c.l.b16 %v3177
        %v3549 = vunpack.c.h.b16 %v3177
        %v3550 = vunpack.c.l.b16 %v3178
        %v3551 = vunpack.c.h.b16 %v3178
        %v3552 = vunpack.c.l.b16 %v3179
        %v3553 = vunpack.c.h.b16 %v3179
        %v3554 = vunpack.c.l.b16 %v3180
        %v3555 = vunpack.c.h.b16 %v3180
        %v3556 = vunpack.c.l.b16 %v3181
        %v3557 = vunpack.c.h.b16 %v3181
        %v3558 = vunpack.c.l.b16 %v3182
        %v3559 = vunpack.c.h.b16 %v3182
        %v3560 = vunpack.c.l.b16 %v3183
        %v3561 = vunpack.c.h.b16 %v3183
        %v3562 = vunpack.c.l.b16 %v3184
        %v3563 = vunpack.c.h.b16 %v3184
        %v3564 = vunpack.c.l.b16 %v3185
        %v3565 = vunpack.c.h.b16 %v3185
        %v3566 = vunpack.c.l.b16 %v3186
        %v3567 = vunpack.c.h.b16 %v3186
        %v3568 = vunpack.c.l.b16 %v3187
        %v3569 = vunpack.c.h.b16 %v3187
        %v3570 = vunpack.c.l.b16 %v3188
        %v3571 = vunpack.c.h.b16 %v3188
        %v3572 = vunpack.c.l.b16 %v3189
        %v3573 = vunpack.c.h.b16 %v3189
        %v3574 = vpack.c.b16 %v3322, %v3318
        %v3575 = vpack.c.b16 %v3323, %v3319
        %v3576 = vpack.c.b16 %v3324, %v3320
        %v3577 = vpack.c.b16 %v3325, %v3321
        %v3578 = vpack.c.b16 %v3330, %v3326
        %v3579 = vpack.c.b16 %v3331, %v3327
        %v3580 = vpack.c.b16 %v3332, %v3328
        %v3581 = vpack.c.b16 %v3333, %v3329
        %v3582 = vpack.c.b16 %v3338, %v3334
        %v3583 = vpack.c.b16 %v3339, %v3335
        %v3584 = vpack.c.b16 %v3340, %v3336
        %v3585 = vpack.c.b16 %v3341, %v3337
        %v3586 = vpack.c.b16 %v3346, %v3342
        %v3587 = vpack.c.b16 %v3347, %v3343
        %v3588 = vpack.c.b16 %v3348, %v3344
        %v3589 = vpack.c.b16 %v3349, %v3345
        %v3590 = vpack.c.b16 %v3354, %v3350
        %v3591 = vpack.c.b16 %v3355, %v3351
        %v3592 = vpack.c.b16 %v3356, %v3352
        %v3593 = vpack.c.b16 %v3357, %v3353
        %v3594 = vpack.c.b16 %v3362, %v3358
        %v3595 = vpack.c.b16 %v3363, %v3359
        %v3596 = vpack.c.b16 %v3364, %v3360
        %v3597 = vpack.c.b16 %v3365, %v3361
        %v3598 = vpack.c.b16 %v3370, %v3366
        %v3599 = vpack.c.b16 %v3371, %v3367
        %v3600 = vpack.c.b16 %v3372, %v3368
        %v3601 = vpack.c.b16 %v3373, %v3369
        %v3602 = vpack.c.b16 %v3378, %v3374
        %v3603 = vpack.c.b16 %v3379, %v3375
        %v3604 = vpack.c.b16 %v3380, %v3376
        %v3605 = vpack.c.b16 %v3381, %v3377
        %v3606 = vpack.c.b16 %v3386, %v3382
        %v3607 = vpack.c.b16 %v3387, %v3383
        %v3608 = vpack.c.b16 %v3388, %v3384
        %v3609 = vpack.c.b16 %v3389, %v3385
        %v3610 = vpack.c.b16 %v3394, %v3390
        %v3611 = vpack.c.b16 %v3395, %v3391
        %v3612 = vpack.c.b16 %v3396, %v3392
        %v3613 = vpack.c.b16 %v3397, %v3393
        %v3614 = vpack.c.b16 %v3402, %v3398
        %v3615 = vpack.c.b16 %v3403, %v3399
        %v3616 = vpack.c.b16 %v3404, %v3400
        %v3617 = vpack.c.b16 %v3405, %v3401
        %v3618 = vpack.c.b16 %v3410, %v3406
        %v3619 = vpack.c.b16 %v3411, %v3407
        %v3620 = vpack.c.b16 %v3412, %v3408
        %v3621 = vpack.c.b16 %v3413, %v3409
        %v3622 = vpack.c.b16 %v3418, %v3414
        %v3623 = vpack.c.b16 %v3419, %v3415
        %v3624 = vpack.c.b16 %v3420, %v3416
        %v3625 = vpack.c.b16 %v3421, %v3417
        %v3626 = vpack.c.b16 %v3426, %v3422
        %v3627 = vpack.c.b16 %v3427, %v3423
        %v3628 = vpack.c.b16 %v3428, %v3424
        %v3629 = vpack.c.b16 %v3429, %v3425
        %v3630 = vpack.c.b16 %v3434, %v3430
        %v3631 = vpack.c.b16 %v3435, %v3431
        %v3632 = vpack.c.b16 %v3436, %v3432
        %v3633 = vpack.c.b16 %v3437, %v3433
        %v3634 = vpack.c.b16 %v3442, %v3438
        %v3635 = vpack.c.b16 %v3443, %v3439
        %v3636 = vpack.c.b16 %v3444, %v3440
        %v3637 = vpack.c.b16 %v3445, %v3441
        %v3638 = vpack.c.b16 %v3450, %v3446
        %v3639 = vpack.c.b16 %v3451, %v3447
        %v3640 = vpack.c.b16 %v3452, %v3448
        %v3641 = vpack.c.b16 %v3453, %v3449
        %v3642 = vpack.c.b16 %v3458, %v3454
        %v3643 = vpack.c.b16 %v3459, %v3455
        %v3644 = vpack.c.b16 %v3460, %v3456
        %v3645 = vpack.c.b16 %v3461, %v3457
        %v3646 = vpack.c.b16 %v3466, %v3462
        %v3647 = vpack.c.b16 %v3467, %v3463
        %v3648 = vpack.c.b16 %v3468, %v3464
        %v3649 = vpack.c.b16 %v3469, %v3465
        %v3650 = vpack.c.b16 %v3474, %v3470
        %v3651 = vpack.c.b16 %v3475, %v3471
        %v3652 = vpack.c.b16 %v3476, %v3472
        %v3653 = vpack.c.b16 %v3477, %v3473
        %v3654 = vpack.c.b16 %v3482, %v3478
        %v3655 = vpack.c.b16 %v3483, %v3479
        %v3656 = vpack.c.b16 %v3484, %v3480
        %v3657 = vpack.c.b16 %v3485, %v3481
        %v3658 = vpack.c.b16 %v3490, %v3486
        %v3659 = vpack.c.b16 %v3491, %v3487
        %v3660 = vpack.c.b16 %v3492, %v3488
        %v3661 = vpack.c.b16 %v3493, %v3489
        %v3662 = vpack.c.b16 %v3498, %v3494
        %v3663 = vpack.c.b16 %v3499, %v3495
        %v3664 = vpack.c.b16 %v3500, %v3496
        %v3665 = vpack.c.b16 %v3501, %v3497
        %v3666 = vpack.c.b16 %v3506, %v3502
        %v3667 = vpack.c.b16 %v3507, %v3503
        %v3668 = vpack.c.b16 %v3508, %v3504
        %v3669 = vpack.c.b16 %v3509, %v3505
        %v3670 = vpack.c.b16 %v3514, %v3510
        %v3671 = vpack.c.b16 %v3515, %v3511
        %v3672 = vpack.c.b16 %v3516, %v3512
        %v3673 = vpack.c.b16 %v3517, %v3513
        %v3674 = vpack.c.b16 %v3522, %v3518
        %v3675 = vpack.c.b16 %v3523, %v3519
        %v3676 = vpack.c.b16 %v3524, %v3520
        %v3677 = vpack.c.b16 %v3525, %v3521
        %v3678 = vpack.c.b16 %v3530, %v3526
        %v3679 = vpack.c.b16 %v3531, %v3527
        %v3680 = vpack.c.b16 %v3532, %v3528
        %v3681 = vpack.c.b16 %v3533, %v3529
        %v3682 = vpack.c.b16 %v3538, %v3534
        %v3683 = vpack.c.b16 %v3539, %v3535
        %v3684 = vpack.c.b16 %v3540, %v3536
        %v3685 = vpack.c.b16 %v3541, %v3537
        %v3686 = vpack.c.b16 %v3546, %v3542
        %v3687 = vpack.c.b16 %v3547, %v3543
        %v3688 = vpack.c.b16 %v3548, %v3544
        %v3689 = vpack.c.b16 %v3549, %v3545
        %v3690 = vpack.c.b16 %v3554, %v3550
        %v3691 = vpack.c.b16 %v3555, %v3551
        %v3692 = vpack.c.b16 %v3556, %v3552
        %v3693 = vpack.c.b16 %v3557, %v3553
        %v3694 = vpack.c.b16 %v3562, %v3558
        %v3695 = vpack.c.b16 %v3563, %v3559
        %v3696 = vpack.c.b16 %v3564, %v3560
        %v3697 = vpack.c.b16 %v3565, %v3561
        %v3698 = vpack.c.b16 %v3570, %v3566
        %v3699 = vpack.c.b16 %v3571, %v3567
        %v3700 = vpack.c.b16 %v3572, %v3568
        %v3701 = vpack.c.b16 %v3573, %v3569
        %3830 = vmatprep.subr.bf16.mxu0 %v3575
        %3831 = vmatpush1.bf16.msra.mxu0 %v3574
        %3832 = vmatprep.subr.bf16.mxu0 %v3579
        %3833 = vmatpush1.bf16.msra.mxu0 %v3578
        %3834 = vmatprep.subr.bf16.mxu0 %v3583
        %3835 = vmatpush1.bf16.msra.mxu0 %v3582
        %3836 = vmatprep.subr.bf16.mxu0 %v3587
        %3837 = vmatpush1.bf16.msra.mxu0 %v3586
        %3838 = vmatprep.subr.bf16.mxu0 %v3591
        %3839 = vmatpush1.bf16.msra.mxu0 %v3590
        %3840 = vmatprep.subr.bf16.mxu0 %v3595
        %3841 = vmatpush1.bf16.msra.mxu0 %v3594
        %3842 = vmatprep.subr.bf16.mxu0 %v3599
        %3843 = vmatpush1.bf16.msra.mxu0 %v3598
        %3844 = vmatprep.subr.bf16.mxu0 %v3603
        %3845 = vmatpush1.bf16.msra.mxu0 %v3602
        %3846 = vmatprep.subr.bf16.mxu0 %v3607
        %3847 = vmatpush1.bf16.msra.mxu0 %v3606
        %3848 = vmatprep.subr.bf16.mxu0 %v3611
        %3849 = vmatpush1.bf16.msra.mxu0 %v3610
        %3850 = vmatprep.subr.bf16.mxu0 %v3615
        %3851 = vmatpush1.bf16.msra.mxu0 %v3614
        %3852 = vmatprep.subr.bf16.mxu0 %v3619
        %3853 = vmatpush1.bf16.msra.mxu0 %v3618
        %3854 = vmatprep.subr.bf16.mxu0 %v3623
        %3855 = vmatpush1.bf16.msra.mxu0 %v3622
        %3856 = vmatprep.subr.bf16.mxu0 %v3627
        %3857 = vmatpush1.bf16.msra.mxu0 %v3626
        %3858 = vmatprep.subr.bf16.mxu0 %v3631
        %3859 = vmatpush1.bf16.msra.mxu0 %v3630
        %3860 = vmatprep.subr.bf16.mxu0 %v3635
        %3861 = vmatpush1.bf16.msra.mxu0 %v3634
        %3862 = vmatprep.mubr.bf16.mxu0 %v2903
        %3863 = vmatmul.mubr.bf16.gmra.mrb[0].mxu0 %v2902
        %v3864 = vpop.f32.mrb[0].mxu0
        %v3865 = vadd.f32 0.0, %v3864
        %v3866 = vpop.f32.mrb[0].mxu0
        %v3867 = vadd.f32 0.0, %v3866
        %v3868 = vpop.f32.mrb[0].mxu0
        %v3869 = vadd.f32 0.0, %v3868
        %v3870 = vpop.f32.mrb[0].mxu0
        %v3871 = vadd.f32 0.0, %v3870
        %3872 = vmatprep.mubr.bf16.mxu0 %v2907
        %3873 = vmatmul.mubr.bf16.gmra.mrb[0].mxu0 %v2906
        %v3874 = vpop.f32.mrb[0].mxu0
        %v3875 = vadd.f32 0.0, %v3874
        %v3876 = vpop.f32.mrb[0].mxu0
        %v3877 = vadd.f32 0.0, %v3876
        %v3878 = vpop.f32.mrb[0].mxu0
        %v3879 = vadd.f32 0.0, %v3878
        %v3880 = vpop.f32.mrb[0].mxu0
        %v3881 = vadd.f32 0.0, %v3880
        %3882 = vmatprep.mubr.bf16.mxu0 %v2911
        %3883 = vmatmul.mubr.bf16.gmra.mrb[0].mxu0 %v2910
        %v3884 = vpop.f32.mrb[0].mxu0
        %v3885 = vadd.f32 0.0, %v3884
        %v3886 = vpop.f32.mrb[0].mxu0
        %v3887 = vadd.f32 0.0, %v3886
        %v3888 = vpop.f32.mrb[0].mxu0
        %v3889 = vadd.f32 0.0, %v3888
        %v3890 = vpop.f32.mrb[0].mxu0
        %v3891 = vadd.f32 0.0, %v3890
        %3892 = vmatprep.mubr.bf16.mxu0 %v2915
        %3893 = vmatmul.mubr.bf16.gmra.mrb[0].mxu0 %v2914
        %v3894 = vpop.f32.mrb[0].mxu0
        %v3895 = vadd.f32 0.0, %v3894
        %v3896 = vpop.f32.mrb[0].mxu0
        %v3897 = vadd.f32 0.0, %v3896
        %v3898 = vpop.f32.mrb[0].mxu0
        %v3899 = vadd.f32 0.0, %v3898
        %v3900 = vpop.f32.mrb[0].mxu0
        %v3901 = vadd.f32 0.0, %v3900
        %3902 = vmatprep.mubr.bf16.mxu0 %v2919
        %3903 = vmatmul.mubr.bf16.gmra.mrb[0].mxu0 %v2918
        %v3904 = vpop.f32.mrb[0].mxu0
        %v3905 = vadd.f32 0.0, %v3904
        %v3906 = vpop.f32.mrb[0].mxu0
        %v3907 = vadd.f32 0.0, %v3906
        %v3908 = vpop.f32.mrb[0].mxu0
        %v3909 = vadd.f32 0.0, %v3908
        %v3910 = vpop.f32.mrb[0].mxu0
        %v3911 = vadd.f32 0.0, %v3910
        %3912 = vmatprep.mubr.bf16.mxu0 %v2923
        %3913 = vmatmul.mubr.bf16.gmra.mrb[0].mxu0 %v2922
        %v3914 = vpop.f32.mrb[0].mxu0
        %v3915 = vadd.f32 0.0, %v3914
        %v3916 = vpop.f32.mrb[0].mxu0
        %v3917 = vadd.f32 0.0, %v3916
        %v3918 = vpop.f32.mrb[0].mxu0
        %v3919 = vadd.f32 0.0, %v3918
        %v3920 = vpop.f32.mrb[0].mxu0
        %v3921 = vadd.f32 0.0, %v3920
        %3922 = vmatprep.mubr.bf16.mxu0 %v2927
        %3923 = vmatmul.mubr.bf16.gmra.mrb[0].mxu0 %v2926
        %v3924 = vpop.f32.mrb[0].mxu0
        %v3925 = vadd.f32 0.0, %v3924
        %v3926 = vpop.f32.mrb[0].mxu0
        %v3927 = vadd.f32 0.0, %v3926
        %v3928 = vpop.f32.mrb[0].mxu0
        %v3929 = vadd.f32 0.0, %v3928
        %v3930 = vpop.f32.mrb[0].mxu0
        %v3931 = vadd.f32 0.0, %v3930
        %3932 = vmatprep.mubr.bf16.mxu0 %v2931
        %3933 = vmatmul.mubr.bf16.gmra.mrb[0].mxu0 %v2930
        %v3934 = vpop.f32.mrb[0].mxu0
        %v3935 = vadd.f32 0.0, %v3934
        %v3936 = vpop.f32.mrb[0].mxu0
        %v3937 = vadd.f32 0.0, %v3936
        %v3938 = vpop.f32.mrb[0].mxu0
        %v3939 = vadd.f32 0.0, %v3938
        %v3940 = vpop.f32.mrb[0].mxu0
        %v3941 = vadd.f32 0.0, %v3940
        %3942 = vdwg.mxu0
        %3943 = vmatprep.subr.bf16.mxu0 %v3639
        %3944 = vmatpush1.bf16.msra.mxu0 %v3638
        %3945 = vmatprep.subr.bf16.mxu0 %v3643
        %3946 = vmatpush1.bf16.msra.mxu0 %v3642
        %3947 = vmatprep.subr.bf16.mxu0 %v3647
        %3948 = vmatpush1.bf16.msra.mxu0 %v3646
        %3949 = vmatprep.subr.bf16.mxu0 %v3651
        %3950 = vmatpush1.bf16.msra.mxu0 %v3650
        %3951 = vmatprep.subr.bf16.mxu0 %v3655
        %3952 = vmatpush1.bf16.msra.mxu0 %v3654
        %3953 = vmatprep.subr.bf16.mxu0 %v3659
        %3954 = vmatpush1.bf16.msra.mxu0 %v3658
        %3955 = vmatprep.subr.bf16.mxu0 %v3663
        %3956 = vmatpush1.bf16.msra.mxu0 %v3662
        %3957 = vmatprep.subr.bf16.mxu0 %v3667
        %3958 = vmatpush1.bf16.msra.mxu0 %v3666
        %3959 = vmatprep.subr.bf16.mxu0 %v3671
        %3960 = vmatpush1.bf16.msra.mxu0 %v3670
        %3961 = vmatprep.subr.bf16.mxu0 %v3675
        %3962 = vmatpush1.bf16.msra.mxu0 %v3674
        %3963 = vmatprep.subr.bf16.mxu0 %v3679
        %3964 = vmatpush1.bf16.msra.mxu0 %v3678
        %3965 = vmatprep.subr.bf16.mxu0 %v3683
        %3966 = vmatpush1.bf16.msra.mxu0 %v3682
        %3967 = vmatprep.subr.bf16.mxu0 %v3687
        %3968 = vmatpush1.bf16.msra.mxu0 %v3686
        %3969 = vmatprep.subr.bf16.mxu0 %v3691
        %3970 = vmatpush1.bf16.msra.mxu0 %v3690
        %3971 = vmatprep.subr.bf16.mxu0 %v3695
        %3972 = vmatpush1.bf16.msra.mxu0 %v3694
        %3973 = vmatprep.subr.bf16.mxu0 %v3699
        %3974 = vmatpush1.bf16.msra.mxu0 %v3698
        %3975 = vmatprep.mubr.bf16.mxu0 %v2905
        %3976 = vmatmul.mubr.bf16.gmra.mrb[0].mxu0 %v2904
        %v3977 = vpop.f32.mrb[0].mxu0
        %v3978 = vadd.f32 %v3865, %v3977
        %v3979 = vpop.f32.mrb[0].mxu0
        %v3980 = vadd.f32 %v3867, %v3979
        %v3981 = vpop.f32.mrb[0].mxu0
        %v3982 = vadd.f32 %v3869, %v3981
        %v3983 = vpop.f32.mrb[0].mxu0
        %v3984 = vadd.f32 %v3871, %v3983
        %3985 = vmatprep.mubr.bf16.mxu0 %v2909
        %3986 = vmatmul.mubr.bf16.gmra.mrb[0].mxu0 %v2908
        %v3987 = vpop.f32.mrb[0].mxu0
        %v3988 = vadd.f32 %v3875, %v3987
        %v3989 = vpop.f32.mrb[0].mxu0
        %v3990 = vadd.f32 %v3877, %v3989
        %v3991 = vpop.f32.mrb[0].mxu0
        %v3992 = vadd.f32 %v3879, %v3991
        %v3993 = vpop.f32.mrb[0].mxu0
        %v3994 = vadd.f32 %v3881, %v3993
        %3995 = vmatprep.mubr.bf16.mxu0 %v2913
        %3996 = vmatmul.mubr.bf16.gmra.mrb[0].mxu0 %v2912
        %v3997 = vpop.f32.mrb[0].mxu0
        %v3998 = vadd.f32 %v3885, %v3997
        %v3999 = vpop.f32.mrb[0].mxu0
        %v4000 = vadd.f32 %v3887, %v3999
        %v4001 = vpop.f32.mrb[0].mxu0
        %v4002 = vadd.f32 %v3889, %v4001
        %v4003 = vpop.f32.mrb[0].mxu0
        %v4004 = vadd.f32 %v3891, %v4003
        %4005 = vmatprep.mubr.bf16.mxu0 %v2917
        %4006 = vmatmul.mubr.bf16.gmra.mrb[0].mxu0 %v2916
        %v4007 = vpop.f32.mrb[0].mxu0
        %v4008 = vadd.f32 %v3895, %v4007
        %v4009 = vpop.f32.mrb[0].mxu0
        %v4010 = vadd.f32 %v3897, %v4009
        %v4011 = vpop.f32.mrb[0].mxu0
        %v4012 = vadd.f32 %v3899, %v4011
        %v4013 = vpop.f32.mrb[0].mxu0
        %v4014 = vadd.f32 %v3901, %v4013
        %4015 = vmatprep.mubr.bf16.mxu0 %v2921
        %4016 = vmatmul.mubr.bf16.gmra.mrb[0].mxu0 %v2920
        %v4017 = vpop.f32.mrb[0].mxu0
        %v4018 = vadd.f32 %v3905, %v4017
        %v4019 = vpop.f32.mrb[0].mxu0
        %v4020 = vadd.f32 %v3907, %v4019
        %v4021 = vpop.f32.mrb[0].mxu0
        %v4022 = vadd.f32 %v3909, %v4021
        %v4023 = vpop.f32.mrb[0].mxu0
        %v4024 = vadd.f32 %v3911, %v4023
        %4025 = vmatprep.mubr.bf16.mxu0 %v2925
        %4026 = vmatmul.mubr.bf16.gmra.mrb[0].mxu0 %v2924
        %v4027 = vpop.f32.mrb[0].mxu0
        %v4028 = vadd.f32 %v3915, %v4027
        %v4029 = vpop.f32.mrb[0].mxu0
        %v4030 = vadd.f32 %v3917, %v4029
        %v4031 = vpop.f32.mrb[0].mxu0
        %v4032 = vadd.f32 %v3919, %v4031
        %v4033 = vpop.f32.mrb[0].mxu0
        %v4034 = vadd.f32 %v3921, %v4033
        %4035 = vmatprep.mubr.bf16.mxu0 %v2929
        %4036 = vmatmul.mubr.bf16.gmra.mrb[0].mxu0 %v2928
        %v4037 = vpop.f32.mrb[0].mxu0
        %v4038 = vadd.f32 %v3925, %v4037
        %v4039 = vpop.f32.mrb[0].mxu0
        %v4040 = vadd.f32 %v3927, %v4039
        %v4041 = vpop.f32.mrb[0].mxu0
        %v4042 = vadd.f32 %v3929, %v4041
        %v4043 = vpop.f32.mrb[0].mxu0
        %v4044 = vadd.f32 %v3931, %v4043
        %4045 = vmatprep.mubr.bf16.mxu0 %v2933
        %4046 = vmatmul.mubr.bf16.gmra.mrb[0].mxu0 %v2932
        %v4047 = vpop.f32.mrb[0].mxu0
        %v4048 = vadd.f32 %v3935, %v4047
        %v4049 = vpop.f32.mrb[0].mxu0
        %v4050 = vadd.f32 %v3937, %v4049
        %v4051 = vpop.f32.mrb[0].mxu0
        %v4052 = vadd.f32 %v3939, %v4051
        %v4053 = vpop.f32.mrb[0].mxu0
        %v4054 = vadd.f32 %v3941, %v4053
        %4055 = vdwg.mxu0
        %4056 = vmatprep.subr.bf16.mxu0 %v3577
        %4057 = vmatpush1.bf16.msra.mxu0 %v3576
        %4058 = vmatprep.subr.bf16.mxu0 %v3581
        %4059 = vmatpush1.bf16.msra.mxu0 %v3580
        %4060 = vmatprep.subr.bf16.mxu0 %v3585
        %4061 = vmatpush1.bf16.msra.mxu0 %v3584
        %4062 = vmatprep.subr.bf16.mxu0 %v3589
        %4063 = vmatpush1.bf16.msra.mxu0 %v3588
        %4064 = vmatprep.subr.bf16.mxu0 %v3593
        %4065 = vmatpush1.bf16.msra.mxu0 %v3592
        %4066 = vmatprep.subr.bf16.mxu0 %v3597
        %4067 = vmatpush1.bf16.msra.mxu0 %v3596
        %4068 = vmatprep.subr.bf16.mxu0 %v3601
        %4069 = vmatpush1.bf16.msra.mxu0 %v3600
        %4070 = vmatprep.subr.bf16.mxu0 %v3605
        %4071 = vmatpush1.bf16.msra.mxu0 %v3604
        %4072 = vmatprep.subr.bf16.mxu0 %v3609
        %4073 = vmatpush1.bf16.msra.mxu0 %v3608
        %4074 = vmatprep.subr.bf16.mxu0 %v3613
        %4075 = vmatpush1.bf16.msra.mxu0 %v3612
        %4076 = vmatprep.subr.bf16.mxu0 %v3617
        %4077 = vmatpush1.bf16.msra.mxu0 %v3616
        %4078 = vmatprep.subr.bf16.mxu0 %v3621
        %4079 = vmatpush1.bf16.msra.mxu0 %v3620
        %4080 = vmatprep.subr.bf16.mxu0 %v3625
        %4081 = vmatpush1.bf16.msra.mxu0 %v3624
        %4082 = vmatprep.subr.bf16.mxu0 %v3629
        %4083 = vmatpush1.bf16.msra.mxu0 %v3628
        %4084 = vmatprep.subr.bf16.mxu0 %v3633
        %4085 = vmatpush1.bf16.msra.mxu0 %v3632
        %4086 = vmatprep.subr.bf16.mxu0 %v3637
        %4087 = vmatpush1.bf16.msra.mxu0 %v3636
        %4088 = vmatprep.mubr.bf16.mxu0 %v2903
        %4089 = vmatmul.mubr.bf16.gmra.mrb[0].mxu0 %v2902
        %v4090 = vpop.f32.mrb[0].mxu0
        %v4091 = vadd.f32 0.0, %v4090
        %v4092 = vpop.f32.mrb[0].mxu0
        %v4093 = vadd.f32 0.0, %v4092
        %v4094 = vpop.f32.mrb[0].mxu0
        %v4095 = vadd.f32 0.0, %v4094
        %v4096 = vpop.f32.mrb[0].mxu0
        %v4097 = vadd.f32 0.0, %v4096
        %4098 = vmatprep.mubr.bf16.mxu0 %v2907
        %4099 = vmatmul.mubr.bf16.gmra.mrb[0].mxu0 %v2906
        %v4100 = vpop.f32.mrb[0].mxu0
        %v4101 = vadd.f32 0.0, %v4100
        %v4102 = vpop.f32.mrb[0].mxu0
        %v4103 = vadd.f32 0.0, %v4102
        %v4104 = vpop.f32.mrb[0].mxu0
        %v4105 = vadd.f32 0.0, %v4104
        %v4106 = vpop.f32.mrb[0].mxu0
        %v4107 = vadd.f32 0.0, %v4106
        %4108 = vmatprep.mubr.bf16.mxu0 %v2911
        %4109 = vmatmul.mubr.bf16.gmra.mrb[0].mxu0 %v2910
        %v4110 = vpop.f32.mrb[0].mxu0
        %v4111 = vadd.f32 0.0, %v4110
        %v4112 = vpop.f32.mrb[0].mxu0
        %v4113 = vadd.f32 0.0, %v4112
        %v4114 = vpop.f32.mrb[0].mxu0
        %v4115 = vadd.f32 0.0, %v4114
        %v4116 = vpop.f32.mrb[0].mxu0
        %v4117 = vadd.f32 0.0, %v4116
        %4118 = vmatprep.mubr.bf16.mxu0 %v2915
        %4119 = vmatmul.mubr.bf16.gmra.mrb[0].mxu0 %v2914
        %v4120 = vpop.f32.mrb[0].mxu0
        %v4121 = vadd.f32 0.0, %v4120
        %v4122 = vpop.f32.mrb[0].mxu0
        %v4123 = vadd.f32 0.0, %v4122
        %v4124 = vpop.f32.mrb[0].mxu0
        %v4125 = vadd.f32 0.0, %v4124
        %v4126 = vpop.f32.mrb[0].mxu0
        %v4127 = vadd.f32 0.0, %v4126
        %4128 = vmatprep.mubr.bf16.mxu0 %v2919
        %4129 = vmatmul.mubr.bf16.gmra.mrb[0].mxu0 %v2918
        %v4130 = vpop.f32.mrb[0].mxu0
        %v4131 = vadd.f32 0.0, %v4130
        %v4132 = vpop.f32.mrb[0].mxu0
        %v4133 = vadd.f32 0.0, %v4132
        %v4134 = vpop.f32.mrb[0].mxu0
        %v4135 = vadd.f32 0.0, %v4134
        %v4136 = vpop.f32.mrb[0].mxu0
        %v4137 = vadd.f32 0.0, %v4136
        %4138 = vmatprep.mubr.bf16.mxu0 %v2923
        %4139 = vmatmul.mubr.bf16.gmra.mrb[0].mxu0 %v2922
        %v4140 = vpop.f32.mrb[0].mxu0
        %v4141 = vadd.f32 0.0, %v4140
        %v4142 = vpop.f32.mrb[0].mxu0
        %v4143 = vadd.f32 0.0, %v4142
        %v4144 = vpop.f32.mrb[0].mxu0
        %v4145 = vadd.f32 0.0, %v4144
        %v4146 = vpop.f32.mrb[0].mxu0
        %v4147 = vadd.f32 0.0, %v4146
        %4148 = vmatprep.mubr.bf16.mxu0 %v2927
        %4149 = vmatmul.mubr.bf16.gmra.mrb[0].mxu0 %v2926
        %v4150 = vpop.f32.mrb[0].mxu0
        %v4151 = vadd.f32 0.0, %v4150
        %v4152 = vpop.f32.mrb[0].mxu0
        %v4153 = vadd.f32 0.0, %v4152
        %v4154 = vpop.f32.mrb[0].mxu0
        %v4155 = vadd.f32 0.0, %v4154
        %v4156 = vpop.f32.mrb[0].mxu0
        %v4157 = vadd.f32 0.0, %v4156
        %4158 = vmatprep.mubr.bf16.mxu0 %v2931
        %4159 = vmatmul.mubr.bf16.gmra.mrb[0].mxu0 %v2930
        %v4160 = vpop.f32.mrb[0].mxu0
        %v4161 = vadd.f32 0.0, %v4160
        %v4162 = vpop.f32.mrb[0].mxu0
        %v4163 = vadd.f32 0.0, %v4162
        %v4164 = vpop.f32.mrb[0].mxu0
        %v4165 = vadd.f32 0.0, %v4164
        %v4166 = vpop.f32.mrb[0].mxu0
        %v4167 = vadd.f32 0.0, %v4166
        %4168 = vdwg.mxu0
        %4169 = vmatprep.subr.bf16.mxu0 %v3641
        %4170 = vmatpush1.bf16.msra.mxu0 %v3640
        %4171 = vmatprep.subr.bf16.mxu0 %v3645
        %4172 = vmatpush1.bf16.msra.mxu0 %v3644
        %4173 = vmatprep.subr.bf16.mxu0 %v3649
        %4174 = vmatpush1.bf16.msra.mxu0 %v3648
        %4175 = vmatprep.subr.bf16.mxu0 %v3653
        %4176 = vmatpush1.bf16.msra.mxu0 %v3652
        %4177 = vmatprep.subr.bf16.mxu0 %v3657
        %4178 = vmatpush1.bf16.msra.mxu0 %v3656
        %4179 = vmatprep.subr.bf16.mxu0 %v3661
        %4180 = vmatpush1.bf16.msra.mxu0 %v3660
        %4181 = vmatprep.subr.bf16.mxu0 %v3665
        %4182 = vmatpush1.bf16.msra.mxu0 %v3664
        %4183 = vmatprep.subr.bf16.mxu0 %v3669
        %4184 = vmatpush1.bf16.msra.mxu0 %v3668
        %4185 = vmatprep.subr.bf16.mxu0 %v3673
        %4186 = vmatpush1.bf16.msra.mxu0 %v3672
        %4187 = vmatprep.subr.bf16.mxu0 %v3677
        %4188 = vmatpush1.bf16.msra.mxu0 %v3676
        %4189 = vmatprep.subr.bf16.mxu0 %v3681
        %4190 = vmatpush1.bf16.msra.mxu0 %v3680
        %4191 = vmatprep.subr.bf16.mxu0 %v3685
        %4192 = vmatpush1.bf16.msra.mxu0 %v3684
        %4193 = vmatprep.subr.bf16.mxu0 %v3689
        %4194 = vmatpush1.bf16.msra.mxu0 %v3688
        %4195 = vmatprep.subr.bf16.mxu0 %v3693
        %4196 = vmatpush1.bf16.msra.mxu0 %v3692
        %4197 = vmatprep.subr.bf16.mxu0 %v3697
        %4198 = vmatpush1.bf16.msra.mxu0 %v3696
        %4199 = vmatprep.subr.bf16.mxu0 %v3701
        %4200 = vmatpush1.bf16.msra.mxu0 %v3700
        %4201 = vmatprep.mubr.bf16.mxu0 %v2905
        %4202 = vmatmul.mubr.bf16.gmra.mrb[0].mxu0 %v2904
        %v4203 = vpop.f32.mrb[0].mxu0
        %v4204 = vadd.f32 %v4091, %v4203
        %v4205 = vpop.f32.mrb[0].mxu0
        %v4206 = vadd.f32 %v4093, %v4205
        %v4207 = vpop.f32.mrb[0].mxu0
        %v4208 = vadd.f32 %v4095, %v4207
        %v4209 = vpop.f32.mrb[0].mxu0
        %v4210 = vadd.f32 %v4097, %v4209
        %4211 = vmatprep.mubr.bf16.mxu0 %v2909
        %4212 = vmatmul.mubr.bf16.gmra.mrb[0].mxu0 %v2908
        %v4213 = vpop.f32.mrb[0].mxu0
        %v4214 = vadd.f32 %v4101, %v4213
        %v4215 = vpop.f32.mrb[0].mxu0
        %v4216 = vadd.f32 %v4103, %v4215
        %v4217 = vpop.f32.mrb[0].mxu0
        %v4218 = vadd.f32 %v4105, %v4217
        %v4219 = vpop.f32.mrb[0].mxu0
        %v4220 = vadd.f32 %v4107, %v4219
        %4221 = vmatprep.mubr.bf16.mxu0 %v2913
        %4222 = vmatmul.mubr.bf16.gmra.mrb[0].mxu0 %v2912
        %v4223 = vpop.f32.mrb[0].mxu0
        %v4224 = vadd.f32 %v4111, %v4223
        %v4225 = vpop.f32.mrb[0].mxu0
        %v4226 = vadd.f32 %v4113, %v4225
        %v4227 = vpop.f32.mrb[0].mxu0
        %v4228 = vadd.f32 %v4115, %v4227
        %v4229 = vpop.f32.mrb[0].mxu0
        %v4230 = vadd.f32 %v4117, %v4229
        %4231 = vmatprep.mubr.bf16.mxu0 %v2917
        %4232 = vmatmul.mubr.bf16.gmra.mrb[0].mxu0 %v2916
        %v4233 = vpop.f32.mrb[0].mxu0
        %v4234 = vadd.f32 %v4121, %v4233
        %v4235 = vpop.f32.mrb[0].mxu0
        %v4236 = vadd.f32 %v4123, %v4235
        %v4237 = vpop.f32.mrb[0].mxu0
        %v4238 = vadd.f32 %v4125, %v4237
        %v4239 = vpop.f32.mrb[0].mxu0
        %v4240 = vadd.f32 %v4127, %v4239
        %4241 = vmatprep.mubr.bf16.mxu0 %v2921
        %4242 = vmatmul.mubr.bf16.gmra.mrb[0].mxu0 %v2920
        %v4243 = vpop.f32.mrb[0].mxu0
        %v4244 = vadd.f32 %v4131, %v4243
        %v4245 = vpop.f32.mrb[0].mxu0
        %v4246 = vadd.f32 %v4133, %v4245
        %v4247 = vpop.f32.mrb[0].mxu0
        %v4248 = vadd.f32 %v4135, %v4247
        %v4249 = vpop.f32.mrb[0].mxu0
        %v4250 = vadd.f32 %v4137, %v4249
        %4251 = vmatprep.mubr.bf16.mxu0 %v2925
        %4252 = vmatmul.mubr.bf16.gmra.mrb[0].mxu0 %v2924
        %v4253 = vpop.f32.mrb[0].mxu0
        %v4254 = vadd.f32 %v4141, %v4253
        %v4255 = vpop.f32.mrb[0].mxu0
        %v4256 = vadd.f32 %v4143, %v4255
        %v4257 = vpop.f32.mrb[0].mxu0
        %v4258 = vadd.f32 %v4145, %v4257
        %v4259 = vpop.f32.mrb[0].mxu0
        %v4260 = vadd.f32 %v4147, %v4259
        %4261 = vmatprep.mubr.bf16.mxu0 %v2929
        %4262 = vmatmul.mubr.bf16.gmra.mrb[0].mxu0 %v2928
        %v4263 = vpop.f32.mrb[0].mxu0
        %v4264 = vadd.f32 %v4151, %v4263
        %v4265 = vpop.f32.mrb[0].mxu0
        %v4266 = vadd.f32 %v4153, %v4265
        %v4267 = vpop.f32.mrb[0].mxu0
        %v4268 = vadd.f32 %v4155, %v4267
        %v4269 = vpop.f32.mrb[0].mxu0
        %v4270 = vadd.f32 %v4157, %v4269
        %4271 = vmatprep.mubr.bf16.mxu0 %v2933
        %4272 = vmatmul.mubr.bf16.gmra.mrb[0].mxu0 %v2932
        %v4273 = vpop.f32.mrb[0].mxu0
        %v4274 = vadd.f32 %v4161, %v4273
        %v4275 = vpop.f32.mrb[0].mxu0
        %v4276 = vadd.f32 %v4163, %v4275
        %v4277 = vpop.f32.mrb[0].mxu0
        %v4278 = vadd.f32 %v4165, %v4277
        %v4279 = vpop.f32.mrb[0].mxu0
        %v4280 = vadd.f32 %v4167, %v4279
        %4281 = vdwg.mxu0
        %v4410 = vunpack.c.l.b16 %v2934
        %v4411 = vunpack.c.h.b16 %v2934
        %v4412 = vunpack.c.l.b16 %v2935
        %v4413 = vunpack.c.h.b16 %v2935
        %v4414 = vunpack.c.l.b16 %v2936
        %v4415 = vunpack.c.h.b16 %v2936
        %v4416 = vunpack.c.l.b16 %v2937
        %v4417 = vunpack.c.h.b16 %v2937
        %v4418 = vunpack.c.l.b16 %v2938
        %v4419 = vunpack.c.h.b16 %v2938
        %v4420 = vunpack.c.l.b16 %v2939
        %v4421 = vunpack.c.h.b16 %v2939
        %v4422 = vunpack.c.l.b16 %v2940
        %v4423 = vunpack.c.h.b16 %v2940
        %v4424 = vunpack.c.l.b16 %v2941
        %v4425 = vunpack.c.h.b16 %v2941
        %v4426 = vunpack.c.l.b16 %v2942
        %v4427 = vunpack.c.h.b16 %v2942
        %v4428 = vunpack.c.l.b16 %v2943
        %v4429 = vunpack.c.h.b16 %v2943
        %v4430 = vunpack.c.l.b16 %v2944
        %v4431 = vunpack.c.h.b16 %v2944
        %v4432 = vunpack.c.l.b16 %v2945
        %v4433 = vunpack.c.h.b16 %v2945
        %v4434 = vunpack.c.l.b16 %v2946
        %v4435 = vunpack.c.h.b16 %v2946
        %v4436 = vunpack.c.l.b16 %v2947
        %v4437 = vunpack.c.h.b16 %v2947
        %v4438 = vunpack.c.l.b16 %v2948
        %v4439 = vunpack.c.h.b16 %v2948
        %v4440 = vunpack.c.l.b16 %v2949
        %v4441 = vunpack.c.h.b16 %v2949
        %v4442 = vunpack.c.l.b16 %v2950
        %v4443 = vunpack.c.h.b16 %v2950
        %v4444 = vunpack.c.l.b16 %v2951
        %v4445 = vunpack.c.h.b16 %v2951
        %v4446 = vunpack.c.l.b16 %v2952
        %v4447 = vunpack.c.h.b16 %v2952
        %v4448 = vunpack.c.l.b16 %v2953
        %v4449 = vunpack.c.h.b16 %v2953
        %v4450 = vunpack.c.l.b16 %v2954
        %v4451 = vunpack.c.h.b16 %v2954
        %v4452 = vunpack.c.l.b16 %v2955
        %v4453 = vunpack.c.h.b16 %v2955
        %v4454 = vunpack.c.l.b16 %v2956
        %v4455 = vunpack.c.h.b16 %v2956
        %v4456 = vunpack.c.l.b16 %v2957
        %v4457 = vunpack.c.h.b16 %v2957
        %v4458 = vunpack.c.l.b16 %v2958
        %v4459 = vunpack.c.h.b16 %v2958
        %v4460 = vunpack.c.l.b16 %v2959
        %v4461 = vunpack.c.h.b16 %v2959
        %v4462 = vunpack.c.l.b16 %v2960
        %v4463 = vunpack.c.h.b16 %v2960
        %v4464 = vunpack.c.l.b16 %v2961
        %v4465 = vunpack.c.h.b16 %v2961
        %v4466 = vunpack.c.l.b16 %v2962
        %v4467 = vunpack.c.h.b16 %v2962
        %v4468 = vunpack.c.l.b16 %v2963
        %v4469 = vunpack.c.h.b16 %v2963
        %v4470 = vunpack.c.l.b16 %v2964
        %v4471 = vunpack.c.h.b16 %v2964
        %v4472 = vunpack.c.l.b16 %v2965
        %v4473 = vunpack.c.h.b16 %v2965
        %v4474 = vunpack.c.l.b16 %v2966
        %v4475 = vunpack.c.h.b16 %v2966
        %v4476 = vunpack.c.l.b16 %v2967
        %v4477 = vunpack.c.h.b16 %v2967
        %v4478 = vunpack.c.l.b16 %v2968
        %v4479 = vunpack.c.h.b16 %v2968
        %v4480 = vunpack.c.l.b16 %v2969
        %v4481 = vunpack.c.h.b16 %v2969
        %v4482 = vunpack.c.l.b16 %v2970
        %v4483 = vunpack.c.h.b16 %v2970
        %v4484 = vunpack.c.l.b16 %v2971
        %v4485 = vunpack.c.h.b16 %v2971
        %v4486 = vunpack.c.l.b16 %v2972
        %v4487 = vunpack.c.h.b16 %v2972
        %v4488 = vunpack.c.l.b16 %v2973
        %v4489 = vunpack.c.h.b16 %v2973
        %v4490 = vunpack.c.l.b16 %v2974
        %v4491 = vunpack.c.h.b16 %v2974
        %v4492 = vunpack.c.l.b16 %v2975
        %v4493 = vunpack.c.h.b16 %v2975
        %v4494 = vunpack.c.l.b16 %v2976
        %v4495 = vunpack.c.h.b16 %v2976
        %v4496 = vunpack.c.l.b16 %v2977
        %v4497 = vunpack.c.h.b16 %v2977
        %v4498 = vunpack.c.l.b16 %v2978
        %v4499 = vunpack.c.h.b16 %v2978
        %v4500 = vunpack.c.l.b16 %v2979
        %v4501 = vunpack.c.h.b16 %v2979
        %v4502 = vunpack.c.l.b16 %v2980
        %v4503 = vunpack.c.h.b16 %v2980
        %v4504 = vunpack.c.l.b16 %v2981
        %v4505 = vunpack.c.h.b16 %v2981
        %v4506 = vunpack.c.l.b16 %v2982
        %v4507 = vunpack.c.h.b16 %v2982
        %v4508 = vunpack.c.l.b16 %v2983
        %v4509 = vunpack.c.h.b16 %v2983
        %v4510 = vunpack.c.l.b16 %v2984
        %v4511 = vunpack.c.h.b16 %v2984
        %v4512 = vunpack.c.l.b16 %v2985
        %v4513 = vunpack.c.h.b16 %v2985
        %v4514 = vunpack.c.l.b16 %v2986
        %v4515 = vunpack.c.h.b16 %v2986
        %v4516 = vunpack.c.l.b16 %v2987
        %v4517 = vunpack.c.h.b16 %v2987
        %v4518 = vunpack.c.l.b16 %v2988
        %v4519 = vunpack.c.h.b16 %v2988
        %v4520 = vunpack.c.l.b16 %v2989
        %v4521 = vunpack.c.h.b16 %v2989
        %v4522 = vunpack.c.l.b16 %v2990
        %v4523 = vunpack.c.h.b16 %v2990
        %v4524 = vunpack.c.l.b16 %v2991
        %v4525 = vunpack.c.h.b16 %v2991
        %v4526 = vunpack.c.l.b16 %v2992
        %v4527 = vunpack.c.h.b16 %v2992
        %v4528 = vunpack.c.l.b16 %v2993
        %v4529 = vunpack.c.h.b16 %v2993
        %v4530 = vunpack.c.l.b16 %v2994
        %v4531 = vunpack.c.h.b16 %v2994
        %v4532 = vunpack.c.l.b16 %v2995
        %v4533 = vunpack.c.h.b16 %v2995
        %v4534 = vunpack.c.l.b16 %v2996
        %v4535 = vunpack.c.h.b16 %v2996
        %v4536 = vunpack.c.l.b16 %v2997
        %v4537 = vunpack.c.h.b16 %v2997
        %v4538 = vunpack.c.l.b16 %v2998
        %v4539 = vunpack.c.h.b16 %v2998
        %v4540 = vunpack.c.l.b16 %v2999
        %v4541 = vunpack.c.h.b16 %v2999
        %v4542 = vunpack.c.l.b16 %v3000
        %v4543 = vunpack.c.h.b16 %v3000
        %v4544 = vunpack.c.l.b16 %v3001
        %v4545 = vunpack.c.h.b16 %v3001
        %v4546 = vunpack.c.l.b16 %v3002
        %v4547 = vunpack.c.h.b16 %v3002
        %v4548 = vunpack.c.l.b16 %v3003
        %v4549 = vunpack.c.h.b16 %v3003
        %v4550 = vunpack.c.l.b16 %v3004
        %v4551 = vunpack.c.h.b16 %v3004
        %v4552 = vunpack.c.l.b16 %v3005
        %v4553 = vunpack.c.h.b16 %v3005
        %v4554 = vunpack.c.l.b16 %v3006
        %v4555 = vunpack.c.h.b16 %v3006
        %v4556 = vunpack.c.l.b16 %v3007
        %v4557 = vunpack.c.h.b16 %v3007
        %v4558 = vunpack.c.l.b16 %v3008
        %v4559 = vunpack.c.h.b16 %v3008
        %v4560 = vunpack.c.l.b16 %v3009
        %v4561 = vunpack.c.h.b16 %v3009
        %v4562 = vunpack.c.l.b16 %v3010
        %v4563 = vunpack.c.h.b16 %v3010
        %v4564 = vunpack.c.l.b16 %v3011
        %v4565 = vunpack.c.h.b16 %v3011
        %v4566 = vunpack.c.l.b16 %v3012
        %v4567 = vunpack.c.h.b16 %v3012
        %v4568 = vunpack.c.l.b16 %v3013
        %v4569 = vunpack.c.h.b16 %v3013
        %v4570 = vunpack.c.l.b16 %v3014
        %v4571 = vunpack.c.h.b16 %v3014
        %v4572 = vunpack.c.l.b16 %v3015
        %v4573 = vunpack.c.h.b16 %v3015
        %v4574 = vunpack.c.l.b16 %v3016
        %v4575 = vunpack.c.h.b16 %v3016
        %v4576 = vunpack.c.l.b16 %v3017
        %v4577 = vunpack.c.h.b16 %v3017
        %v4578 = vunpack.c.l.b16 %v3018
        %v4579 = vunpack.c.h.b16 %v3018
        %v4580 = vunpack.c.l.b16 %v3019
        %v4581 = vunpack.c.h.b16 %v3019
        %v4582 = vunpack.c.l.b16 %v3020
        %v4583 = vunpack.c.h.b16 %v3020
        %v4584 = vunpack.c.l.b16 %v3021
        %v4585 = vunpack.c.h.b16 %v3021
        %v4586 = vunpack.c.l.b16 %v3022
        %v4587 = vunpack.c.h.b16 %v3022
        %v4588 = vunpack.c.l.b16 %v3023
        %v4589 = vunpack.c.h.b16 %v3023
        %v4590 = vunpack.c.l.b16 %v3024
        %v4591 = vunpack.c.h.b16 %v3024
        %v4592 = vunpack.c.l.b16 %v3025
        %v4593 = vunpack.c.h.b16 %v3025
        %v4594 = vunpack.c.l.b16 %v3026
        %v4595 = vunpack.c.h.b16 %v3026
        %v4596 = vunpack.c.l.b16 %v3027
        %v4597 = vunpack.c.h.b16 %v3027
        %v4598 = vunpack.c.l.b16 %v3028
        %v4599 = vunpack.c.h.b16 %v3028
        %v4600 = vunpack.c.l.b16 %v3029
        %v4601 = vunpack.c.h.b16 %v3029
        %v4602 = vunpack.c.l.b16 %v3030
        %v4603 = vunpack.c.h.b16 %v3030
        %v4604 = vunpack.c.l.b16 %v3031
        %v4605 = vunpack.c.h.b16 %v3031
        %v4606 = vunpack.c.l.b16 %v3032
        %v4607 = vunpack.c.h.b16 %v3032
        %v4608 = vunpack.c.l.b16 %v3033
        %v4609 = vunpack.c.h.b16 %v3033
        %v4610 = vunpack.c.l.b16 %v3034
        %v4611 = vunpack.c.h.b16 %v3034
        %v4612 = vunpack.c.l.b16 %v3035
        %v4613 = vunpack.c.h.b16 %v3035
        %v4614 = vunpack.c.l.b16 %v3036
        %v4615 = vunpack.c.h.b16 %v3036
        %v4616 = vunpack.c.l.b16 %v3037
        %v4617 = vunpack.c.h.b16 %v3037
        %v4618 = vunpack.c.l.b16 %v3038
        %v4619 = vunpack.c.h.b16 %v3038
        %v4620 = vunpack.c.l.b16 %v3039
        %v4621 = vunpack.c.h.b16 %v3039
        %v4622 = vunpack.c.l.b16 %v3040
        %v4623 = vunpack.c.h.b16 %v3040
        %v4624 = vunpack.c.l.b16 %v3041
        %v4625 = vunpack.c.h.b16 %v3041
        %v4626 = vunpack.c.l.b16 %v3042
        %v4627 = vunpack.c.h.b16 %v3042
        %v4628 = vunpack.c.l.b16 %v3043
        %v4629 = vunpack.c.h.b16 %v3043
        %v4630 = vunpack.c.l.b16 %v3044
        %v4631 = vunpack.c.h.b16 %v3044
        %v4632 = vunpack.c.l.b16 %v3045
        %v4633 = vunpack.c.h.b16 %v3045
        %v4634 = vunpack.c.l.b16 %v3046
        %v4635 = vunpack.c.h.b16 %v3046
        %v4636 = vunpack.c.l.b16 %v3047
        %v4637 = vunpack.c.h.b16 %v3047
        %v4638 = vunpack.c.l.b16 %v3048
        %v4639 = vunpack.c.h.b16 %v3048
        %v4640 = vunpack.c.l.b16 %v3049
        %v4641 = vunpack.c.h.b16 %v3049
        %v4642 = vunpack.c.l.b16 %v3050
        %v4643 = vunpack.c.h.b16 %v3050
        %v4644 = vunpack.c.l.b16 %v3051
        %v4645 = vunpack.c.h.b16 %v3051
        %v4646 = vunpack.c.l.b16 %v3052
        %v4647 = vunpack.c.h.b16 %v3052
        %v4648 = vunpack.c.l.b16 %v3053
        %v4649 = vunpack.c.h.b16 %v3053
        %v4650 = vunpack.c.l.b16 %v3054
        %v4651 = vunpack.c.h.b16 %v3054
        %v4652 = vunpack.c.l.b16 %v3055
        %v4653 = vunpack.c.h.b16 %v3055
        %v4654 = vunpack.c.l.b16 %v3056
        %v4655 = vunpack.c.h.b16 %v3056
        %v4656 = vunpack.c.l.b16 %v3057
        %v4657 = vunpack.c.h.b16 %v3057
        %v4658 = vunpack.c.l.b16 %v3058
        %v4659 = vunpack.c.h.b16 %v3058
        %v4660 = vunpack.c.l.b16 %v3059
        %v4661 = vunpack.c.h.b16 %v3059
        %v4662 = vunpack.c.l.b16 %v3060
        %v4663 = vunpack.c.h.b16 %v3060
        %v4664 = vunpack.c.l.b16 %v3061
        %v4665 = vunpack.c.h.b16 %v3061
        %v4666 = vpack.c.b16 %v4414, %v4410
        %v4667 = vpack.c.b16 %v4415, %v4411
        %v4668 = vpack.c.b16 %v4416, %v4412
        %v4669 = vpack.c.b16 %v4417, %v4413
        %v4670 = vpack.c.b16 %v4422, %v4418
        %v4671 = vpack.c.b16 %v4423, %v4419
        %v4672 = vpack.c.b16 %v4424, %v4420
        %v4673 = vpack.c.b16 %v4425, %v4421
        %v4674 = vpack.c.b16 %v4430, %v4426
        %v4675 = vpack.c.b16 %v4431, %v4427
        %v4676 = vpack.c.b16 %v4432, %v4428
        %v4677 = vpack.c.b16 %v4433, %v4429
        %v4678 = vpack.c.b16 %v4438, %v4434
        %v4679 = vpack.c.b16 %v4439, %v4435
        %v4680 = vpack.c.b16 %v4440, %v4436
        %v4681 = vpack.c.b16 %v4441, %v4437
        %v4682 = vpack.c.b16 %v4446, %v4442
        %v4683 = vpack.c.b16 %v4447, %v4443
        %v4684 = vpack.c.b16 %v4448, %v4444
        %v4685 = vpack.c.b16 %v4449, %v4445
        %v4686 = vpack.c.b16 %v4454, %v4450
        %v4687 = vpack.c.b16 %v4455, %v4451
        %v4688 = vpack.c.b16 %v4456, %v4452
        %v4689 = vpack.c.b16 %v4457, %v4453
        %v4690 = vpack.c.b16 %v4462, %v4458
        %v4691 = vpack.c.b16 %v4463, %v4459
        %v4692 = vpack.c.b16 %v4464, %v4460
        %v4693 = vpack.c.b16 %v4465, %v4461
        %v4694 = vpack.c.b16 %v4470, %v4466
        %v4695 = vpack.c.b16 %v4471, %v4467
        %v4696 = vpack.c.b16 %v4472, %v4468
        %v4697 = vpack.c.b16 %v4473, %v4469
        %v4698 = vpack.c.b16 %v4478, %v4474
        %v4699 = vpack.c.b16 %v4479, %v4475
        %v4700 = vpack.c.b16 %v4480, %v4476
        %v4701 = vpack.c.b16 %v4481, %v4477
        %v4702 = vpack.c.b16 %v4486, %v4482
        %v4703 = vpack.c.b16 %v4487, %v4483
        %v4704 = vpack.c.b16 %v4488, %v4484
        %v4705 = vpack.c.b16 %v4489, %v4485
        %v4706 = vpack.c.b16 %v4494, %v4490
        %v4707 = vpack.c.b16 %v4495, %v4491
        %v4708 = vpack.c.b16 %v4496, %v4492
        %v4709 = vpack.c.b16 %v4497, %v4493
        %v4710 = vpack.c.b16 %v4502, %v4498
        %v4711 = vpack.c.b16 %v4503, %v4499
        %v4712 = vpack.c.b16 %v4504, %v4500
        %v4713 = vpack.c.b16 %v4505, %v4501
        %v4714 = vpack.c.b16 %v4510, %v4506
        %v4715 = vpack.c.b16 %v4511, %v4507
        %v4716 = vpack.c.b16 %v4512, %v4508
        %v4717 = vpack.c.b16 %v4513, %v4509
        %v4718 = vpack.c.b16 %v4518, %v4514
        %v4719 = vpack.c.b16 %v4519, %v4515
        %v4720 = vpack.c.b16 %v4520, %v4516
        %v4721 = vpack.c.b16 %v4521, %v4517
        %v4722 = vpack.c.b16 %v4526, %v4522
        %v4723 = vpack.c.b16 %v4527, %v4523
        %v4724 = vpack.c.b16 %v4528, %v4524
        %v4725 = vpack.c.b16 %v4529, %v4525
        %v4726 = vpack.c.b16 %v4534, %v4530
        %v4727 = vpack.c.b16 %v4535, %v4531
        %v4728 = vpack.c.b16 %v4536, %v4532
        %v4729 = vpack.c.b16 %v4537, %v4533
        %v4730 = vpack.c.b16 %v4542, %v4538
        %v4731 = vpack.c.b16 %v4543, %v4539
        %v4732 = vpack.c.b16 %v4544, %v4540
        %v4733 = vpack.c.b16 %v4545, %v4541
        %v4734 = vpack.c.b16 %v4550, %v4546
        %v4735 = vpack.c.b16 %v4551, %v4547
        %v4736 = vpack.c.b16 %v4552, %v4548
        %v4737 = vpack.c.b16 %v4553, %v4549
        %v4738 = vpack.c.b16 %v4558, %v4554
        %v4739 = vpack.c.b16 %v4559, %v4555
        %v4740 = vpack.c.b16 %v4560, %v4556
        %v4741 = vpack.c.b16 %v4561, %v4557
        %v4742 = vpack.c.b16 %v4566, %v4562
        %v4743 = vpack.c.b16 %v4567, %v4563
        %v4744 = vpack.c.b16 %v4568, %v4564
        %v4745 = vpack.c.b16 %v4569, %v4565
        %v4746 = vpack.c.b16 %v4574, %v4570
        %v4747 = vpack.c.b16 %v4575, %v4571
        %v4748 = vpack.c.b16 %v4576, %v4572
        %v4749 = vpack.c.b16 %v4577, %v4573
        %v4750 = vpack.c.b16 %v4582, %v4578
        %v4751 = vpack.c.b16 %v4583, %v4579
        %v4752 = vpack.c.b16 %v4584, %v4580
        %v4753 = vpack.c.b16 %v4585, %v4581
        %v4754 = vpack.c.b16 %v4590, %v4586
        %v4755 = vpack.c.b16 %v4591, %v4587
        %v4756 = vpack.c.b16 %v4592, %v4588
        %v4757 = vpack.c.b16 %v4593, %v4589
        %v4758 = vpack.c.b16 %v4598, %v4594
        %v4759 = vpack.c.b16 %v4599, %v4595
        %v4760 = vpack.c.b16 %v4600, %v4596
        %v4761 = vpack.c.b16 %v4601, %v4597
        %v4762 = vpack.c.b16 %v4606, %v4602
        %v4763 = vpack.c.b16 %v4607, %v4603
        %v4764 = vpack.c.b16 %v4608, %v4604
        %v4765 = vpack.c.b16 %v4609, %v4605
        %v4766 = vpack.c.b16 %v4614, %v4610
        %v4767 = vpack.c.b16 %v4615, %v4611
        %v4768 = vpack.c.b16 %v4616, %v4612
        %v4769 = vpack.c.b16 %v4617, %v4613
        %v4770 = vpack.c.b16 %v4622, %v4618
        %v4771 = vpack.c.b16 %v4623, %v4619
        %v4772 = vpack.c.b16 %v4624, %v4620
        %v4773 = vpack.c.b16 %v4625, %v4621
        %v4774 = vpack.c.b16 %v4630, %v4626
        %v4775 = vpack.c.b16 %v4631, %v4627
        %v4776 = vpack.c.b16 %v4632, %v4628
        %v4777 = vpack.c.b16 %v4633, %v4629
        %v4778 = vpack.c.b16 %v4638, %v4634
        %v4779 = vpack.c.b16 %v4639, %v4635
        %v4780 = vpack.c.b16 %v4640, %v4636
        %v4781 = vpack.c.b16 %v4641, %v4637
        %v4782 = vpack.c.b16 %v4646, %v4642
        %v4783 = vpack.c.b16 %v4647, %v4643
        %v4784 = vpack.c.b16 %v4648, %v4644
        %v4785 = vpack.c.b16 %v4649, %v4645
        %v4786 = vpack.c.b16 %v4654, %v4650
        %v4787 = vpack.c.b16 %v4655, %v4651
        %v4788 = vpack.c.b16 %v4656, %v4652
        %v4789 = vpack.c.b16 %v4657, %v4653
        %v4790 = vpack.c.b16 %v4662, %v4658
        %v4791 = vpack.c.b16 %v4663, %v4659
        %v4792 = vpack.c.b16 %v4664, %v4660
        %v4793 = vpack.c.b16 %v4665, %v4661
        %4922 = vmatprep.subr.bf16.mxu0 %v4667
        %4923 = vmatpush1.bf16.msra.mxu0 %v4666
        %4924 = vmatprep.subr.bf16.mxu0 %v4671
        %4925 = vmatpush1.bf16.msra.mxu0 %v4670
        %4926 = vmatprep.subr.bf16.mxu0 %v4675
        %4927 = vmatpush1.bf16.msra.mxu0 %v4674
        %4928 = vmatprep.subr.bf16.mxu0 %v4679
        %4929 = vmatpush1.bf16.msra.mxu0 %v4678
        %4930 = vmatprep.subr.bf16.mxu0 %v4683
        %4931 = vmatpush1.bf16.msra.mxu0 %v4682
        %4932 = vmatprep.subr.bf16.mxu0 %v4687
        %4933 = vmatpush1.bf16.msra.mxu0 %v4686
        %4934 = vmatprep.subr.bf16.mxu0 %v4691
        %4935 = vmatpush1.bf16.msra.mxu0 %v4690
        %4936 = vmatprep.subr.bf16.mxu0 %v4695
        %4937 = vmatpush1.bf16.msra.mxu0 %v4694
        %4938 = vmatprep.subr.bf16.mxu0 %v4699
        %4939 = vmatpush1.bf16.msra.mxu0 %v4698
        %4940 = vmatprep.subr.bf16.mxu0 %v4703
        %4941 = vmatpush1.bf16.msra.mxu0 %v4702
        %4942 = vmatprep.subr.bf16.mxu0 %v4707
        %4943 = vmatpush1.bf16.msra.mxu0 %v4706
        %4944 = vmatprep.subr.bf16.mxu0 %v4711
        %4945 = vmatpush1.bf16.msra.mxu0 %v4710
        %4946 = vmatprep.subr.bf16.mxu0 %v4715
        %4947 = vmatpush1.bf16.msra.mxu0 %v4714
        %4948 = vmatprep.subr.bf16.mxu0 %v4719
        %4949 = vmatpush1.bf16.msra.mxu0 %v4718
        %4950 = vmatprep.subr.bf16.mxu0 %v4723
        %4951 = vmatpush1.bf16.msra.mxu0 %v4722
        %4952 = vmatprep.subr.bf16.mxu0 %v4727
        %4953 = vmatpush1.bf16.msra.mxu0 %v4726
        %4954 = vmatprep.mubr.bf16.mxu0 %v2807
        %4955 = vmatmul.mubr.bf16.gmra.mrb[0].mxu0 %v2806
        %v4956 = vpop.f32.mrb[0].mxu0
        %v4957 = vadd.f32 %v3978, %v4956
        %v4958 = vpop.f32.mrb[0].mxu0
        %v4959 = vadd.f32 %v3980, %v4958
        %v4960 = vpop.f32.mrb[0].mxu0
        %v4961 = vadd.f32 %v3982, %v4960
        %v4962 = vpop.f32.mrb[0].mxu0
        %v4963 = vadd.f32 %v3984, %v4962
        %4964 = vmatprep.mubr.bf16.mxu0 %v2811
        %4965 = vmatmul.mubr.bf16.gmra.mrb[0].mxu0 %v2810
        %v4966 = vpop.f32.mrb[0].mxu0
        %v4967 = vadd.f32 %v3988, %v4966
        %v4968 = vpop.f32.mrb[0].mxu0
        %v4969 = vadd.f32 %v3990, %v4968
        %v4970 = vpop.f32.mrb[0].mxu0
        %v4971 = vadd.f32 %v3992, %v4970
        %v4972 = vpop.f32.mrb[0].mxu0
        %v4973 = vadd.f32 %v3994, %v4972
        %4974 = vmatprep.mubr.bf16.mxu0 %v2815
        %4975 = vmatmul.mubr.bf16.gmra.mrb[0].mxu0 %v2814
        %v4976 = vpop.f32.mrb[0].mxu0
        %v4977 = vadd.f32 %v3998, %v4976
        %v4978 = vpop.f32.mrb[0].mxu0
        %v4979 = vadd.f32 %v4000, %v4978
        %v4980 = vpop.f32.mrb[0].mxu0
        %v4981 = vadd.f32 %v4002, %v4980
        %v4982 = vpop.f32.mrb[0].mxu0
        %v4983 = vadd.f32 %v4004, %v4982
        %4984 = vmatprep.mubr.bf16.mxu0 %v2819
        %4985 = vmatmul.mubr.bf16.gmra.mrb[0].mxu0 %v2818
        %v4986 = vpop.f32.mrb[0].mxu0
        %v4987 = vadd.f32 %v4008, %v4986
        %v4988 = vpop.f32.mrb[0].mxu0
        %v4989 = vadd.f32 %v4010, %v4988
        %v4990 = vpop.f32.mrb[0].mxu0
        %v4991 = vadd.f32 %v4012, %v4990
        %v4992 = vpop.f32.mrb[0].mxu0
        %v4993 = vadd.f32 %v4014, %v4992
        %4994 = vmatprep.mubr.bf16.mxu0 %v2823
        %4995 = vmatmul.mubr.bf16.gmra.mrb[0].mxu0 %v2822
        %v4996 = vpop.f32.mrb[0].mxu0
        %v4997 = vadd.f32 %v4018, %v4996
        %v4998 = vpop.f32.mrb[0].mxu0
        %v4999 = vadd.f32 %v4020, %v4998
        %v5000 = vpop.f32.mrb[0].mxu0
        %v5001 = vadd.f32 %v4022, %v5000
        %v5002 = vpop.f32.mrb[0].mxu0
        %v5003 = vadd.f32 %v4024, %v5002
        %5004 = vmatprep.mubr.bf16.mxu0 %v2827
        %5005 = vmatmul.mubr.bf16.gmra.mrb[0].mxu0 %v2826
        %v5006 = vpop.f32.mrb[0].mxu0
        %v5007 = vadd.f32 %v4028, %v5006
        %v5008 = vpop.f32.mrb[0].mxu0
        %v5009 = vadd.f32 %v4030, %v5008
        %v5010 = vpop.f32.mrb[0].mxu0
        %v5011 = vadd.f32 %v4032, %v5010
        %v5012 = vpop.f32.mrb[0].mxu0
        %v5013 = vadd.f32 %v4034, %v5012
        %5014 = vmatprep.mubr.bf16.mxu0 %v2831
        %5015 = vmatmul.mubr.bf16.gmra.mrb[0].mxu0 %v2830
        %v5016 = vpop.f32.mrb[0].mxu0
        %v5017 = vadd.f32 %v4038, %v5016
        %v5018 = vpop.f32.mrb[0].mxu0
        %v5019 = vadd.f32 %v4040, %v5018
        %v5020 = vpop.f32.mrb[0].mxu0
        %v5021 = vadd.f32 %v4042, %v5020
        %v5022 = vpop.f32.mrb[0].mxu0
        %v5023 = vadd.f32 %v4044, %v5022
        %5024 = vmatprep.mubr.bf16.mxu0 %v2835
        %5025 = vmatmul.mubr.bf16.gmra.mrb[0].mxu0 %v2834
        %v5026 = vpop.f32.mrb[0].mxu0
        %v5027 = vadd.f32 %v4048, %v5026
        %v5028 = vpop.f32.mrb[0].mxu0
        %v5029 = vadd.f32 %v4050, %v5028
        %v5030 = vpop.f32.mrb[0].mxu0
        %v5031 = vadd.f32 %v4052, %v5030
        %v5032 = vpop.f32.mrb[0].mxu0
        %v5033 = vadd.f32 %v4054, %v5032
        %5034 = vdwg.mxu0
        %5035 = vmatprep.subr.bf16.mxu0 %v4731
        %5036 = vmatpush1.bf16.msra.mxu0 %v4730
        %5037 = vmatprep.subr.bf16.mxu0 %v4735
        %5038 = vmatpush1.bf16.msra.mxu0 %v4734
        %5039 = vmatprep.subr.bf16.mxu0 %v4739
        %5040 = vmatpush1.bf16.msra.mxu0 %v4738
        %5041 = vmatprep.subr.bf16.mxu0 %v4743
        %5042 = vmatpush1.bf16.msra.mxu0 %v4742
        %5043 = vmatprep.subr.bf16.mxu0 %v4747
        %5044 = vmatpush1.bf16.msra.mxu0 %v4746
        %5045 = vmatprep.subr.bf16.mxu0 %v4751
        %5046 = vmatpush1.bf16.msra.mxu0 %v4750
        %5047 = vmatprep.subr.bf16.mxu0 %v4755
        %5048 = vmatpush1.bf16.msra.mxu0 %v4754
        %5049 = vmatprep.subr.bf16.mxu0 %v4759
        %5050 = vmatpush1.bf16.msra.mxu0 %v4758
        %5051 = vmatprep.subr.bf16.mxu0 %v4763
        %5052 = vmatpush1.bf16.msra.mxu0 %v4762
        %5053 = vmatprep.subr.bf16.mxu0 %v4767
        %5054 = vmatpush1.bf16.msra.mxu0 %v4766
        %5055 = vmatprep.subr.bf16.mxu0 %v4771
        %5056 = vmatpush1.bf16.msra.mxu0 %v4770
        %5057 = vmatprep.subr.bf16.mxu0 %v4775
        %5058 = vmatpush1.bf16.msra.mxu0 %v4774
        %5059 = vmatprep.subr.bf16.mxu0 %v4779
        %5060 = vmatpush1.bf16.msra.mxu0 %v4778
        %5061 = vmatprep.subr.bf16.mxu0 %v4783
        %5062 = vmatpush1.bf16.msra.mxu0 %v4782
        %5063 = vmatprep.subr.bf16.mxu0 %v4787
        %5064 = vmatpush1.bf16.msra.mxu0 %v4786
        %5065 = vmatprep.subr.bf16.mxu0 %v4791
        %5066 = vmatpush1.bf16.msra.mxu0 %v4790
        %5067 = vmatprep.mubr.bf16.mxu0 %v2809
        %5068 = vmatmul.mubr.bf16.gmra.mrb[0].mxu0 %v2808
        %v5069 = vpop.f32.mrb[0].mxu0
        %v5070 = vadd.f32 %v4957, %v5069
        %v5071 = vpop.f32.mrb[0].mxu0
        %v5072 = vadd.f32 %v4959, %v5071
        %v5073 = vpop.f32.mrb[0].mxu0
        %v5074 = vadd.f32 %v4961, %v5073
        %v5075 = vpop.f32.mrb[0].mxu0
        %v5076 = vadd.f32 %v4963, %v5075
        %5077 = vmatprep.mubr.bf16.mxu0 %v2813
        %5078 = vmatmul.mubr.bf16.gmra.mrb[0].mxu0 %v2812
        %v5079 = vpop.f32.mrb[0].mxu0
        %v5080 = vadd.f32 %v4967, %v5079
        %v5081 = vpop.f32.mrb[0].mxu0
        %v5082 = vadd.f32 %v4969, %v5081
        %v5083 = vpop.f32.mrb[0].mxu0
        %v5084 = vadd.f32 %v4971, %v5083
        %v5085 = vpop.f32.mrb[0].mxu0
        %v5086 = vadd.f32 %v4973, %v5085
        %5087 = vmatprep.mubr.bf16.mxu0 %v2817
        %5088 = vmatmul.mubr.bf16.gmra.mrb[0].mxu0 %v2816
        %v5089 = vpop.f32.mrb[0].mxu0
        %v5090 = vadd.f32 %v4977, %v5089
        %v5091 = vpop.f32.mrb[0].mxu0
        %v5092 = vadd.f32 %v4979, %v5091
        %v5093 = vpop.f32.mrb[0].mxu0
        %v5094 = vadd.f32 %v4981, %v5093
        %v5095 = vpop.f32.mrb[0].mxu0
        %v5096 = vadd.f32 %v4983, %v5095
        %5097 = vmatprep.mubr.bf16.mxu0 %v2821
        %5098 = vmatmul.mubr.bf16.gmra.mrb[0].mxu0 %v2820
        %v5099 = vpop.f32.mrb[0].mxu0
        %v5100 = vadd.f32 %v4987, %v5099
        %v5101 = vpop.f32.mrb[0].mxu0
        %v5102 = vadd.f32 %v4989, %v5101
        %v5103 = vpop.f32.mrb[0].mxu0
        %v5104 = vadd.f32 %v4991, %v5103
        %v5105 = vpop.f32.mrb[0].mxu0
        %v5106 = vadd.f32 %v4993, %v5105
        %5107 = vmatprep.mubr.bf16.mxu0 %v2825
        %5108 = vmatmul.mubr.bf16.gmra.mrb[0].mxu0 %v2824
        %v5109 = vpop.f32.mrb[0].mxu0
        %v5110 = vadd.f32 %v4997, %v5109
        %v5111 = vpop.f32.mrb[0].mxu0
        %v5112 = vadd.f32 %v4999, %v5111
        %v5113 = vpop.f32.mrb[0].mxu0
        %v5114 = vadd.f32 %v5001, %v5113
        %v5115 = vpop.f32.mrb[0].mxu0
        %v5116 = vadd.f32 %v5003, %v5115
        %5117 = vmatprep.mubr.bf16.mxu0 %v2829
        %5118 = vmatmul.mubr.bf16.gmra.mrb[0].mxu0 %v2828
        %v5119 = vpop.f32.mrb[0].mxu0
        %v5120 = vadd.f32 %v5007, %v5119
        %v5121 = vpop.f32.mrb[0].mxu0
        %v5122 = vadd.f32 %v5009, %v5121
        %v5123 = vpop.f32.mrb[0].mxu0
        %v5124 = vadd.f32 %v5011, %v5123
        %v5125 = vpop.f32.mrb[0].mxu0
        %v5126 = vadd.f32 %v5013, %v5125
        %5127 = vmatprep.mubr.bf16.mxu0 %v2833
        %5128 = vmatmul.mubr.bf16.gmra.mrb[0].mxu0 %v2832
        %v5129 = vpop.f32.mrb[0].mxu0
        %v5130 = vadd.f32 %v5017, %v5129
        %v5131 = vpop.f32.mrb[0].mxu0
        %v5132 = vadd.f32 %v5019, %v5131
        %v5133 = vpop.f32.mrb[0].mxu0
        %v5134 = vadd.f32 %v5021, %v5133
        %v5135 = vpop.f32.mrb[0].mxu0
        %v5136 = vadd.f32 %v5023, %v5135
        %5137 = vmatprep.mubr.bf16.mxu0 %v2837
        %5138 = vmatmul.mubr.bf16.gmra.mrb[0].mxu0 %v2836
        %v5139 = vpop.f32.mrb[0].mxu0
        %v5140 = vadd.f32 %v5027, %v5139
        %v5141 = vpop.f32.mrb[0].mxu0
        %v5142 = vadd.f32 %v5029, %v5141
        %v5143 = vpop.f32.mrb[0].mxu0
        %v5144 = vadd.f32 %v5031, %v5143
        %v5145 = vpop.f32.mrb[0].mxu0
        %v5146 = vadd.f32 %v5033, %v5145
        %5147 = vdwg.mxu0
        %5148 = vmatprep.subr.bf16.mxu0 %v4669
        %5149 = vmatpush1.bf16.msra.mxu0 %v4668
        %5150 = vmatprep.subr.bf16.mxu0 %v4673
        %5151 = vmatpush1.bf16.msra.mxu0 %v4672
        %5152 = vmatprep.subr.bf16.mxu0 %v4677
        %5153 = vmatpush1.bf16.msra.mxu0 %v4676
        %5154 = vmatprep.subr.bf16.mxu0 %v4681
        %5155 = vmatpush1.bf16.msra.mxu0 %v4680
        %5156 = vmatprep.subr.bf16.mxu0 %v4685
        %5157 = vmatpush1.bf16.msra.mxu0 %v4684
        %5158 = vmatprep.subr.bf16.mxu0 %v4689
        %5159 = vmatpush1.bf16.msra.mxu0 %v4688
        %5160 = vmatprep.subr.bf16.mxu0 %v4693
        %5161 = vmatpush1.bf16.msra.mxu0 %v4692
        %5162 = vmatprep.subr.bf16.mxu0 %v4697
        %5163 = vmatpush1.bf16.msra.mxu0 %v4696
        %5164 = vmatprep.subr.bf16.mxu0 %v4701
        %5165 = vmatpush1.bf16.msra.mxu0 %v4700
        %5166 = vmatprep.subr.bf16.mxu0 %v4705
        %5167 = vmatpush1.bf16.msra.mxu0 %v4704
        %5168 = vmatprep.subr.bf16.mxu0 %v4709
        %5169 = vmatpush1.bf16.msra.mxu0 %v4708
        %5170 = vmatprep.subr.bf16.mxu0 %v4713
        %5171 = vmatpush1.bf16.msra.mxu0 %v4712
        %5172 = vmatprep.subr.bf16.mxu0 %v4717
        %5173 = vmatpush1.bf16.msra.mxu0 %v4716
        %5174 = vmatprep.subr.bf16.mxu0 %v4721
        %5175 = vmatpush1.bf16.msra.mxu0 %v4720
        %5176 = vmatprep.subr.bf16.mxu0 %v4725
        %5177 = vmatpush1.bf16.msra.mxu0 %v4724
        %5178 = vmatprep.subr.bf16.mxu0 %v4729
        %5179 = vmatpush1.bf16.msra.mxu0 %v4728
        %5180 = vmatprep.mubr.bf16.mxu0 %v2807
        %5181 = vmatmul.mubr.bf16.gmra.mrb[0].mxu0 %v2806
        %v5182 = vpop.f32.mrb[0].mxu0
        %v5183 = vadd.f32 %v4204, %v5182
        %v5184 = vpop.f32.mrb[0].mxu0
        %v5185 = vadd.f32 %v4206, %v5184
        %v5186 = vpop.f32.mrb[0].mxu0
        %v5187 = vadd.f32 %v4208, %v5186
        %v5188 = vpop.f32.mrb[0].mxu0
        %v5189 = vadd.f32 %v4210, %v5188
        %5190 = vmatprep.mubr.bf16.mxu0 %v2811
        %5191 = vmatmul.mubr.bf16.gmra.mrb[0].mxu0 %v2810
        %v5192 = vpop.f32.mrb[0].mxu0
        %v5193 = vadd.f32 %v4214, %v5192
        %v5194 = vpop.f32.mrb[0].mxu0
        %v5195 = vadd.f32 %v4216, %v5194
        %v5196 = vpop.f32.mrb[0].mxu0
        %v5197 = vadd.f32 %v4218, %v5196
        %v5198 = vpop.f32.mrb[0].mxu0
        %v5199 = vadd.f32 %v4220, %v5198
        %5200 = vmatprep.mubr.bf16.mxu0 %v2815
        %5201 = vmatmul.mubr.bf16.gmra.mrb[0].mxu0 %v2814
        %v5202 = vpop.f32.mrb[0].mxu0
        %v5203 = vadd.f32 %v4224, %v5202
        %v5204 = vpop.f32.mrb[0].mxu0
        %v5205 = vadd.f32 %v4226, %v5204
        %v5206 = vpop.f32.mrb[0].mxu0
        %v5207 = vadd.f32 %v4228, %v5206
        %v5208 = vpop.f32.mrb[0].mxu0
        %v5209 = vadd.f32 %v4230, %v5208
        %5210 = vmatprep.mubr.bf16.mxu0 %v2819
        %5211 = vmatmul.mubr.bf16.gmra.mrb[0].mxu0 %v2818
        %v5212 = vpop.f32.mrb[0].mxu0
        %v5213 = vadd.f32 %v4234, %v5212
        %v5214 = vpop.f32.mrb[0].mxu0
        %v5215 = vadd.f32 %v4236, %v5214
        %v5216 = vpop.f32.mrb[0].mxu0
        %v5217 = vadd.f32 %v4238, %v5216
        %v5218 = vpop.f32.mrb[0].mxu0
        %v5219 = vadd.f32 %v4240, %v5218
        %5220 = vmatprep.mubr.bf16.mxu0 %v2823
        %5221 = vmatmul.mubr.bf16.gmra.mrb[0].mxu0 %v2822
        %v5222 = vpop.f32.mrb[0].mxu0
        %v5223 = vadd.f32 %v4244, %v5222
        %v5224 = vpop.f32.mrb[0].mxu0
        %v5225 = vadd.f32 %v4246, %v5224
        %v5226 = vpop.f32.mrb[0].mxu0
        %v5227 = vadd.f32 %v4248, %v5226
        %v5228 = vpop.f32.mrb[0].mxu0
        %v5229 = vadd.f32 %v4250, %v5228
        %5230 = vmatprep.mubr.bf16.mxu0 %v2827
        %5231 = vmatmul.mubr.bf16.gmra.mrb[0].mxu0 %v2826
        %v5232 = vpop.f32.mrb[0].mxu0
        %v5233 = vadd.f32 %v4254, %v5232
        %v5234 = vpop.f32.mrb[0].mxu0
        %v5235 = vadd.f32 %v4256, %v5234
        %v5236 = vpop.f32.mrb[0].mxu0
        %v5237 = vadd.f32 %v4258, %v5236
        %v5238 = vpop.f32.mrb[0].mxu0
        %v5239 = vadd.f32 %v4260, %v5238
        %5240 = vmatprep.mubr.bf16.mxu0 %v2831
        %5241 = vmatmul.mubr.bf16.gmra.mrb[0].mxu0 %v2830
        %v5242 = vpop.f32.mrb[0].mxu0
        %v5243 = vadd.f32 %v4264, %v5242
        %v5244 = vpop.f32.mrb[0].mxu0
        %v5245 = vadd.f32 %v4266, %v5244
        %v5246 = vpop.f32.mrb[0].mxu0
        %v5247 = vadd.f32 %v4268, %v5246
        %v5248 = vpop.f32.mrb[0].mxu0
        %v5249 = vadd.f32 %v4270, %v5248
        %5250 = vmatprep.mubr.bf16.mxu0 %v2835
        %5251 = vmatmul.mubr.bf16.gmra.mrb[0].mxu0 %v2834
        %v5252 = vpop.f32.mrb[0].mxu0
        %v5253 = vadd.f32 %v4274, %v5252
        %v5254 = vpop.f32.mrb[0].mxu0
        %v5255 = vadd.f32 %v4276, %v5254
        %v5256 = vpop.f32.mrb[0].mxu0
        %v5257 = vadd.f32 %v4278, %v5256
        %v5258 = vpop.f32.mrb[0].mxu0
        %v5259 = vadd.f32 %v4280, %v5258
        %5260 = vdwg.mxu0
        %5261 = vmatprep.subr.bf16.mxu0 %v4733
        %5262 = vmatpush1.bf16.msra.mxu0 %v4732
        %5263 = vmatprep.subr.bf16.mxu0 %v4737
        %5264 = vmatpush1.bf16.msra.mxu0 %v4736
        %5265 = vmatprep.subr.bf16.mxu0 %v4741
        %5266 = vmatpush1.bf16.msra.mxu0 %v4740
        %5267 = vmatprep.subr.bf16.mxu0 %v4745
        %5268 = vmatpush1.bf16.msra.mxu0 %v4744
        %5269 = vmatprep.subr.bf16.mxu0 %v4749
        %5270 = vmatpush1.bf16.msra.mxu0 %v4748
        %5271 = vmatprep.subr.bf16.mxu0 %v4753
        %5272 = vmatpush1.bf16.msra.mxu0 %v4752
        %5273 = vmatprep.subr.bf16.mxu0 %v4757
        %5274 = vmatpush1.bf16.msra.mxu0 %v4756
        %5275 = vmatprep.subr.bf16.mxu0 %v4761
        %5276 = vmatpush1.bf16.msra.mxu0 %v4760
        %5277 = vmatprep.subr.bf16.mxu0 %v4765
        %5278 = vmatpush1.bf16.msra.mxu0 %v4764
        %5279 = vmatprep.subr.bf16.mxu0 %v4769
        %5280 = vmatpush1.bf16.msra.mxu0 %v4768
        %5281 = vmatprep.subr.bf16.mxu0 %v4773
        %5282 = vmatpush1.bf16.msra.mxu0 %v4772
        %5283 = vmatprep.subr.bf16.mxu0 %v4777
        %5284 = vmatpush1.bf16.msra.mxu0 %v4776
        %5285 = vmatprep.subr.bf16.mxu0 %v4781
        %5286 = vmatpush1.bf16.msra.mxu0 %v4780
        %5287 = vmatprep.subr.bf16.mxu0 %v4785
        %5288 = vmatpush1.bf16.msra.mxu0 %v4784
        %5289 = vmatprep.subr.bf16.mxu0 %v4789
        %5290 = vmatpush1.bf16.msra.mxu0 %v4788
        %5291 = vmatprep.subr.bf16.mxu0 %v4793
        %5292 = vmatpush1.bf16.msra.mxu0 %v4792
        %5293 = vmatprep.mubr.bf16.mxu0 %v2809
        %5294 = vmatmul.mubr.bf16.gmra.mrb[0].mxu0 %v2808
        %v5295 = vpop.f32.mrb[0].mxu0
        %v5296 = vadd.f32 %v5183, %v5295
        %v5297 = vpop.f32.mrb[0].mxu0
        %v5298 = vadd.f32 %v5185, %v5297
        %v5299 = vpop.f32.mrb[0].mxu0
        %v5300 = vadd.f32 %v5187, %v5299
        %v5301 = vpop.f32.mrb[0].mxu0
        %v5302 = vadd.f32 %v5189, %v5301
        %5303 = vmatprep.mubr.bf16.mxu0 %v2813
        %5304 = vmatmul.mubr.bf16.gmra.mrb[0].mxu0 %v2812
        %v5305 = vpop.f32.mrb[0].mxu0
        %v5306 = vadd.f32 %v5193, %v5305
        %v5307 = vpop.f32.mrb[0].mxu0
        %v5308 = vadd.f32 %v5195, %v5307
        %v5309 = vpop.f32.mrb[0].mxu0
        %v5310 = vadd.f32 %v5197, %v5309
        %v5311 = vpop.f32.mrb[0].mxu0
        %v5312 = vadd.f32 %v5199, %v5311
        %5313 = vmatprep.mubr.bf16.mxu0 %v2817
        %5314 = vmatmul.mubr.bf16.gmra.mrb[0].mxu0 %v2816
        %v5315 = vpop.f32.mrb[0].mxu0
        %v5316 = vadd.f32 %v5203, %v5315
        %v5317 = vpop.f32.mrb[0].mxu0
        %v5318 = vadd.f32 %v5205, %v5317
        %v5319 = vpop.f32.mrb[0].mxu0
        %v5320 = vadd.f32 %v5207, %v5319
        %v5321 = vpop.f32.mrb[0].mxu0
        %v5322 = vadd.f32 %v5209, %v5321
        %5323 = vmatprep.mubr.bf16.mxu0 %v2821
        %5324 = vmatmul.mubr.bf16.gmra.mrb[0].mxu0 %v2820
        %v5325 = vpop.f32.mrb[0].mxu0
        %v5326 = vadd.f32 %v5213, %v5325
        %v5327 = vpop.f32.mrb[0].mxu0
        %v5328 = vadd.f32 %v5215, %v5327
        %v5329 = vpop.f32.mrb[0].mxu0
        %v5330 = vadd.f32 %v5217, %v5329
        %v5331 = vpop.f32.mrb[0].mxu0
        %v5332 = vadd.f32 %v5219, %v5331
        %5333 = vmatprep.mubr.bf16.mxu0 %v2825
        %5334 = vmatmul.mubr.bf16.gmra.mrb[0].mxu0 %v2824
        %v5335 = vpop.f32.mrb[0].mxu0
        %v5336 = vadd.f32 %v5223, %v5335
        %v5337 = vpop.f32.mrb[0].mxu0
        %v5338 = vadd.f32 %v5225, %v5337
        %v5339 = vpop.f32.mrb[0].mxu0
        %v5340 = vadd.f32 %v5227, %v5339
        %v5341 = vpop.f32.mrb[0].mxu0
        %v5342 = vadd.f32 %v5229, %v5341
        %5343 = vmatprep.mubr.bf16.mxu0 %v2829
        %5344 = vmatmul.mubr.bf16.gmra.mrb[0].mxu0 %v2828
        %v5345 = vpop.f32.mrb[0].mxu0
        %v5346 = vadd.f32 %v5233, %v5345
        %v5347 = vpop.f32.mrb[0].mxu0
        %v5348 = vadd.f32 %v5235, %v5347
        %v5349 = vpop.f32.mrb[0].mxu0
        %v5350 = vadd.f32 %v5237, %v5349
        %v5351 = vpop.f32.mrb[0].mxu0
        %v5352 = vadd.f32 %v5239, %v5351
        %5353 = vmatprep.mubr.bf16.mxu0 %v2833
        %5354 = vmatmul.mubr.bf16.gmra.mrb[0].mxu0 %v2832
        %v5355 = vpop.f32.mrb[0].mxu0
        %v5356 = vadd.f32 %v5243, %v5355
        %v5357 = vpop.f32.mrb[0].mxu0
        %v5358 = vadd.f32 %v5245, %v5357
        %v5359 = vpop.f32.mrb[0].mxu0
        %v5360 = vadd.f32 %v5247, %v5359
        %v5361 = vpop.f32.mrb[0].mxu0
        %v5362 = vadd.f32 %v5249, %v5361
        %5363 = vmatprep.mubr.bf16.mxu0 %v2837
        %5364 = vmatmul.mubr.bf16.gmra.mrb[0].mxu0 %v2836
        %v5365 = vpop.f32.mrb[0].mxu0
        %v5366 = vadd.f32 %v5253, %v5365
        %v5367 = vpop.f32.mrb[0].mxu0
        %v5368 = vadd.f32 %v5255, %v5367
        %v5369 = vpop.f32.mrb[0].mxu0
        %v5370 = vadd.f32 %v5257, %v5369
        %v5371 = vpop.f32.mrb[0].mxu0
        %v5372 = vadd.f32 %v5259, %v5371
        %5373 = vdwg.mxu0
        %v5374 = vld [vmem:[%s8] sm:$0xf]
        %v5376 = vlaneseq
        %v5377 = vshrl.u32 %v5376, 7
        %v5378 = vsub.s32 0, %v5377
        %v5379 = vrot.slane %v5374, %v5378
        %v5380 = vlaneseq
        %v5381 = vshrl.u32 %v5380, 7
        %v5382 = vsub.s32 1, %v5381
        %v5383 = vrot.slane %v5374, %v5382
        %v5384 = vlaneseq
        %v5385 = vshrl.u32 %v5384, 7
        %v5386 = vsub.s32 2, %v5385
        %v5387 = vrot.slane %v5374, %v5386
        %v5388 = vlaneseq
        %v5389 = vshrl.u32 %v5388, 7
        %v5390 = vsub.s32 3, %v5389
        %v5391 = vrot.slane %v5374, %v5390
        %v5396 = vadd.f32 %v5070, %v5379
        %v5397 = vadd.f32 %v5072, %v5383
        %v5398 = vadd.f32 %v5296, %v5387
        %v5399 = vadd.f32 %v5298, %v5391
        %v5400 = vadd.f32 %v5074, %v5379
        %v5401 = vadd.f32 %v5076, %v5383
        %v5402 = vadd.f32 %v5300, %v5387
        %v5403 = vadd.f32 %v5302, %v5391
        %v5404 = vadd.f32 %v5080, %v5379
        %v5405 = vadd.f32 %v5082, %v5383
        %v5406 = vadd.f32 %v5306, %v5387
        %v5407 = vadd.f32 %v5308, %v5391
        %v5408 = vadd.f32 %v5084, %v5379
        %v5409 = vadd.f32 %v5086, %v5383
        %v5410 = vadd.f32 %v5310, %v5387
        %v5411 = vadd.f32 %v5312, %v5391
        %v5412 = vadd.f32 %v5090, %v5379
        %v5413 = vadd.f32 %v5092, %v5383
        %v5414 = vadd.f32 %v5316, %v5387
        %v5415 = vadd.f32 %v5318, %v5391
        %v5416 = vadd.f32 %v5094, %v5379
        %v5417 = vadd.f32 %v5096, %v5383
        %v5418 = vadd.f32 %v5320, %v5387
        %v5419 = vadd.f32 %v5322, %v5391
        %v5420 = vadd.f32 %v5100, %v5379
        %v5421 = vadd.f32 %v5102, %v5383
        %v5422 = vadd.f32 %v5326, %v5387
        %v5423 = vadd.f32 %v5328, %v5391
        %v5424 = vadd.f32 %v5104, %v5379
        %v5425 = vadd.f32 %v5106, %v5383
        %v5426 = vadd.f32 %v5330, %v5387
        %v5427 = vadd.f32 %v5332, %v5391
        %v5428 = vadd.f32 %v5110, %v5379
        %v5429 = vadd.f32 %v5112, %v5383
        %v5430 = vadd.f32 %v5336, %v5387
        %v5431 = vadd.f32 %v5338, %v5391
        %v5432 = vadd.f32 %v5114, %v5379
        %v5433 = vadd.f32 %v5116, %v5383
        %v5434 = vadd.f32 %v5340, %v5387
        %v5435 = vadd.f32 %v5342, %v5391
        %v5436 = vadd.f32 %v5120, %v5379
        %v5437 = vadd.f32 %v5122, %v5383
        %v5438 = vadd.f32 %v5346, %v5387
        %v5439 = vadd.f32 %v5348, %v5391
        %v5440 = vadd.f32 %v5124, %v5379
        %v5441 = vadd.f32 %v5126, %v5383
        %v5442 = vadd.f32 %v5350, %v5387
        %v5443 = vadd.f32 %v5352, %v5391
        %v5444 = vadd.f32 %v5130, %v5379
        %v5445 = vadd.f32 %v5132, %v5383
        %v5446 = vadd.f32 %v5356, %v5387
        %v5447 = vadd.f32 %v5358, %v5391
        %v5448 = vadd.f32 %v5134, %v5379
        %v5449 = vadd.f32 %v5136, %v5383
        %v5450 = vadd.f32 %v5360, %v5387
        %v5451 = vadd.f32 %v5362, %v5391
        %v5452 = vadd.f32 %v5140, %v5379
        %v5453 = vadd.f32 %v5142, %v5383
        %v5454 = vadd.f32 %v5366, %v5387
        %v5455 = vadd.f32 %v5368, %v5391
        %v5456 = vadd.f32 %v5144, %v5379
        %v5457 = vadd.f32 %v5146, %v5383
        %v5458 = vadd.f32 %v5370, %v5387
        %v5459 = vadd.f32 %v5372, %v5391
        %v5460 = vmax.f32 %v5396, 0.0
        %v5461 = vmax.f32 %v5397, 0.0
        %v5462 = vmax.f32 %v5398, 0.0
        %v5463 = vmax.f32 %v5399, 0.0
        %v5464 = vmax.f32 %v5400, 0.0
        %v5465 = vmax.f32 %v5401, 0.0
        %v5466 = vmax.f32 %v5402, 0.0
        %v5467 = vmax.f32 %v5403, 0.0
        %v5468 = vmax.f32 %v5404, 0.0
        %v5469 = vmax.f32 %v5405, 0.0
        %v5470 = vmax.f32 %v5406, 0.0
        %v5471 = vmax.f32 %v5407, 0.0
        %v5472 = vmax.f32 %v5408, 0.0
        %v5473 = vmax.f32 %v5409, 0.0
        %v5474 = vmax.f32 %v5410, 0.0
        %v5475 = vmax.f32 %v5411, 0.0
        %v5476 = vmax.f32 %v5412, 0.0
        %v5477 = vmax.f32 %v5413, 0.0
        %v5478 = vmax.f32 %v5414, 0.0
        %v5479 = vmax.f32 %v5415, 0.0
        %v5480 = vmax.f32 %v5416, 0.0
        %v5481 = vmax.f32 %v5417, 0.0
        %v5482 = vmax.f32 %v5418, 0.0
        %v5483 = vmax.f32 %v5419, 0.0
        %v5484 = vmax.f32 %v5420, 0.0
        %v5485 = vmax.f32 %v5421, 0.0
        %v5486 = vmax.f32 %v5422, 0.0
        %v5487 = vmax.f32 %v5423, 0.0
        %v5488 = vmax.f32 %v5424, 0.0
        %v5489 = vmax.f32 %v5425, 0.0
        %v5490 = vmax.f32 %v5426, 0.0
        %v5491 = vmax.f32 %v5427, 0.0
        %v5492 = vmax.f32 %v5428, 0.0
        %v5493 = vmax.f32 %v5429, 0.0
        %v5494 = vmax.f32 %v5430, 0.0
        %v5495 = vmax.f32 %v5431, 0.0
        %v5496 = vmax.f32 %v5432, 0.0
        %v5497 = vmax.f32 %v5433, 0.0
        %v5498 = vmax.f32 %v5434, 0.0
        %v5499 = vmax.f32 %v5435, 0.0
        %v5500 = vmax.f32 %v5436, 0.0
        %v5501 = vmax.f32 %v5437, 0.0
        %v5502 = vmax.f32 %v5438, 0.0
        %v5503 = vmax.f32 %v5439, 0.0
        %v5504 = vmax.f32 %v5440, 0.0
        %v5505 = vmax.f32 %v5441, 0.0
        %v5506 = vmax.f32 %v5442, 0.0
        %v5507 = vmax.f32 %v5443, 0.0
        %v5508 = vmax.f32 %v5444, 0.0
        %v5509 = vmax.f32 %v5445, 0.0
        %v5510 = vmax.f32 %v5446, 0.0
        %v5511 = vmax.f32 %v5447, 0.0
        %v5512 = vmax.f32 %v5448, 0.0
        %v5513 = vmax.f32 %v5449, 0.0
        %v5514 = vmax.f32 %v5450, 0.0
        %v5515 = vmax.f32 %v5451, 0.0
        %v5516 = vmax.f32 %v5452, 0.0
        %v5517 = vmax.f32 %v5453, 0.0
        %v5518 = vmax.f32 %v5454, 0.0
        %v5519 = vmax.f32 %v5455, 0.0
        %v5520 = vmax.f32 %v5456, 0.0
        %v5521 = vmax.f32 %v5457, 0.0
        %v5522 = vmax.f32 %v5458, 0.0
        %v5523 = vmax.f32 %v5459, 0.0
        %v5524 = vpack.c.bf16 %v5464, %v5460
        %v5525 = vpack.c.bf16 %v5465, %v5461
        %v5526 = vpack.c.bf16 %v5466, %v5462
        %v5527 = vpack.c.bf16 %v5467, %v5463
        %v5528 = vpack.c.bf16 %v5472, %v5468
        %v5529 = vpack.c.bf16 %v5473, %v5469
        %v5530 = vpack.c.bf16 %v5474, %v5470
        %v5531 = vpack.c.bf16 %v5475, %v5471
        %v5532 = vpack.c.bf16 %v5480, %v5476
        %v5533 = vpack.c.bf16 %v5481, %v5477
        %v5534 = vpack.c.bf16 %v5482, %v5478
        %v5535 = vpack.c.bf16 %v5483, %v5479
        %v5536 = vpack.c.bf16 %v5488, %v5484
        %v5537 = vpack.c.bf16 %v5489, %v5485
        %v5538 = vpack.c.bf16 %v5490, %v5486
        %v5539 = vpack.c.bf16 %v5491, %v5487
        %v5540 = vpack.c.bf16 %v5496, %v5492
        %v5541 = vpack.c.bf16 %v5497, %v5493
        %v5542 = vpack.c.bf16 %v5498, %v5494
        %v5543 = vpack.c.bf16 %v5499, %v5495
        %v5544 = vpack.c.bf16 %v5504, %v5500
        %v5545 = vpack.c.bf16 %v5505, %v5501
        %v5546 = vpack.c.bf16 %v5506, %v5502
        %v5547 = vpack.c.bf16 %v5507, %v5503
        %v5548 = vpack.c.bf16 %v5512, %v5508
        %v5549 = vpack.c.bf16 %v5513, %v5509
        %v5550 = vpack.c.bf16 %v5514, %v5510
        %v5551 = vpack.c.bf16 %v5515, %v5511
        %v5552 = vpack.c.bf16 %v5520, %v5516
        %v5553 = vpack.c.bf16 %v5521, %v5517
        %v5554 = vpack.c.bf16 %v5522, %v5518
        %v5555 = vpack.c.bf16 %v5523, %v5519
        %v5556 = vld [vmem:[#allocation13] sm:$0xff]
        %v5557 = vld [vmem:[#allocation13 + $0x8] sm:$0xff]
        %v5558 = vld [vmem:[#allocation13 + $0x10] sm:$0xff]
        %v5559 = vld [vmem:[#allocation13 + $0x18] sm:$0xff]
        %v5560 = vld [vmem:[#allocation13 + $0x20] sm:$0xff]
        %v5561 = vld [vmem:[#allocation13 + $0x28] sm:$0xff]
        %v5562 = vld [vmem:[#allocation13 + $0x30] sm:$0xff]
        %v5563 = vld [vmem:[#allocation13 + $0x38] sm:$0xff]
        %v5564 = vld [vmem:[#allocation13 + $0x40] sm:$0xff]
        %v5565 = vld [vmem:[#allocation13 + $0x48] sm:$0xff]
        %v5566 = vld [vmem:[#allocation13 + $0x50] sm:$0xff]
        %v5567 = vld [vmem:[#allocation13 + $0x58] sm:$0xff]
        %v5568 = vld [vmem:[#allocation13 + $0x60] sm:$0xff]
        %v5569 = vld [vmem:[#allocation13 + $0x68] sm:$0xff]
        %v5570 = vld [vmem:[#allocation13 + $0x70] sm:$0xff]
        %v5571 = vld [vmem:[#allocation13 + $0x78] sm:$0xff]
        %v5572 = vld [vmem:[#allocation13 + $0x80] sm:$0xff]
        %v5573 = vld [vmem:[#allocation13 + $0x88] sm:$0xff]
        %v5574 = vld [vmem:[#allocation13 + $0x90] sm:$0xff]
        %v5575 = vld [vmem:[#allocation13 + $0x98] sm:$0xff]
        %v5576 = vld [vmem:[#allocation13 + $0xa0] sm:$0xff]
        %v5577 = vld [vmem:[#allocation13 + $0xa8] sm:$0xff]
        %v5578 = vld [vmem:[#allocation13 + $0xb0] sm:$0xff]
        %v5579 = vld [vmem:[#allocation13 + $0xb8] sm:$0xff]
        %v5580 = vld [vmem:[#allocation13 + $0xc0] sm:$0xff]
        %v5581 = vld [vmem:[#allocation13 + $0xc8] sm:$0xff]
        %v5582 = vld [vmem:[#allocation13 + $0xd0] sm:$0xff]
        %v5583 = vld [vmem:[#allocation13 + $0xd8] sm:$0xff]
        %v5584 = vld [vmem:[#allocation13 + $0xe0] sm:$0xff]
        %v5585 = vld [vmem:[#allocation13 + $0xe8] sm:$0xff]
        %v5586 = vld [vmem:[#allocation13 + $0xf0] sm:$0xff]
        %v5587 = vld [vmem:[#allocation13 + $0xf8] sm:$0xff]
        %v5588 = vld [vmem:[#allocation13 + $0x100] sm:$0xff]
        %v5589 = vld [vmem:[#allocation13 + $0x108] sm:$0xff]
        %v5590 = vld [vmem:[#allocation13 + $0x110] sm:$0xff]
        %v5591 = vld [vmem:[#allocation13 + $0x118] sm:$0xff]
        %v5592 = vld [vmem:[#allocation13 + $0x120] sm:$0xff]
        %v5593 = vld [vmem:[#allocation13 + $0x128] sm:$0xff]
        %v5594 = vld [vmem:[#allocation13 + $0x130] sm:$0xff]
        %v5595 = vld [vmem:[#allocation13 + $0x138] sm:$0xff]
        %v5596 = vld [vmem:[#allocation13 + $0x140] sm:$0xff]
        %v5597 = vld [vmem:[#allocation13 + $0x148] sm:$0xff]
        %v5598 = vld [vmem:[#allocation13 + $0x150] sm:$0xff]
        %v5599 = vld [vmem:[#allocation13 + $0x158] sm:$0xff]
        %v5600 = vld [vmem:[#allocation13 + $0x160] sm:$0xff]
        %v5601 = vld [vmem:[#allocation13 + $0x168] sm:$0xff]
        %v5602 = vld [vmem:[#allocation13 + $0x170] sm:$0xff]
        %v5603 = vld [vmem:[#allocation13 + $0x178] sm:$0xff]
        %v5604 = vld [vmem:[#allocation13 + $0x180] sm:$0xff]
        %v5605 = vld [vmem:[#allocation13 + $0x188] sm:$0xff]
        %v5606 = vld [vmem:[#allocation13 + $0x190] sm:$0xff]
        %v5607 = vld [vmem:[#allocation13 + $0x198] sm:$0xff]
        %v5608 = vld [vmem:[#allocation13 + $0x1a0] sm:$0xff]
        %v5609 = vld [vmem:[#allocation13 + $0x1a8] sm:$0xff]
        %v5610 = vld [vmem:[#allocation13 + $0x1b0] sm:$0xff]
        %v5611 = vld [vmem:[#allocation13 + $0x1b8] sm:$0xff]
        %v5612 = vld [vmem:[#allocation13 + $0x1c0] sm:$0xff]
        %v5613 = vld [vmem:[#allocation13 + $0x1c8] sm:$0xff]
        %v5614 = vld [vmem:[#allocation13 + $0x1d0] sm:$0xff]
        %v5615 = vld [vmem:[#allocation13 + $0x1d8] sm:$0xff]
        %v5616 = vld [vmem:[#allocation13 + $0x1e0] sm:$0xff]
        %v5617 = vld [vmem:[#allocation13 + $0x1e8] sm:$0xff]
        %v5618 = vld [vmem:[#allocation13 + $0x1f0] sm:$0xff]
        %v5619 = vld [vmem:[#allocation13 + $0x1f8] sm:$0xff]
        %v5620 = vld [vmem:[%s10] sm:$0x3]
        %v5622 = vlaneseq
        %v5623 = vshrl.u32 %v5622, 7
        %v5624 = vsub.s32 0, %v5623
        %v5625 = vrot.slane %v5620, %v5624
        %v5626 = vlaneseq
        %v5627 = vshrl.u32 %v5626, 7
        %v5628 = vsub.s32 1, %v5627
        %v5629 = vrot.slane %v5620, %v5628
        %v5696 = vunpack.c.l.b16 %v5556
        %v5697 = vunpack.c.h.b16 %v5556
        %v5698 = vunpack.c.l.b16 %v5557
        %v5699 = vunpack.c.h.b16 %v5557
        %v5700 = vunpack.c.l.b16 %v5558
        %v5701 = vunpack.c.h.b16 %v5558
        %v5702 = vunpack.c.l.b16 %v5559
        %v5703 = vunpack.c.h.b16 %v5559
        %v5704 = vunpack.c.l.b16 %v5560
        %v5705 = vunpack.c.h.b16 %v5560
        %v5706 = vunpack.c.l.b16 %v5561
        %v5707 = vunpack.c.h.b16 %v5561
        %v5708 = vunpack.c.l.b16 %v5562
        %v5709 = vunpack.c.h.b16 %v5562
        %v5710 = vunpack.c.l.b16 %v5563
        %v5711 = vunpack.c.h.b16 %v5563
        %v5712 = vunpack.c.l.b16 %v5564
        %v5713 = vunpack.c.h.b16 %v5564
        %v5714 = vunpack.c.l.b16 %v5565
        %v5715 = vunpack.c.h.b16 %v5565
        %v5716 = vunpack.c.l.b16 %v5566
        %v5717 = vunpack.c.h.b16 %v5566
        %v5718 = vunpack.c.l.b16 %v5567
        %v5719 = vunpack.c.h.b16 %v5567
        %v5720 = vunpack.c.l.b16 %v5568
        %v5721 = vunpack.c.h.b16 %v5568
        %v5722 = vunpack.c.l.b16 %v5569
        %v5723 = vunpack.c.h.b16 %v5569
        %v5724 = vunpack.c.l.b16 %v5570
        %v5725 = vunpack.c.h.b16 %v5570
        %v5726 = vunpack.c.l.b16 %v5571
        %v5727 = vunpack.c.h.b16 %v5571
        %v5728 = vunpack.c.l.b16 %v5572
        %v5729 = vunpack.c.h.b16 %v5572
        %v5730 = vunpack.c.l.b16 %v5573
        %v5731 = vunpack.c.h.b16 %v5573
        %v5732 = vunpack.c.l.b16 %v5574
        %v5733 = vunpack.c.h.b16 %v5574
        %v5734 = vunpack.c.l.b16 %v5575
        %v5735 = vunpack.c.h.b16 %v5575
        %v5736 = vunpack.c.l.b16 %v5576
        %v5737 = vunpack.c.h.b16 %v5576
        %v5738 = vunpack.c.l.b16 %v5577
        %v5739 = vunpack.c.h.b16 %v5577
        %v5740 = vunpack.c.l.b16 %v5578
        %v5741 = vunpack.c.h.b16 %v5578
        %v5742 = vunpack.c.l.b16 %v5579
        %v5743 = vunpack.c.h.b16 %v5579
        %v5744 = vunpack.c.l.b16 %v5580
        %v5745 = vunpack.c.h.b16 %v5580
        %v5746 = vunpack.c.l.b16 %v5581
        %v5747 = vunpack.c.h.b16 %v5581
        %v5748 = vunpack.c.l.b16 %v5582
        %v5749 = vunpack.c.h.b16 %v5582
        %v5750 = vunpack.c.l.b16 %v5583
        %v5751 = vunpack.c.h.b16 %v5583
        %v5752 = vunpack.c.l.b16 %v5584
        %v5753 = vunpack.c.h.b16 %v5584
        %v5754 = vunpack.c.l.b16 %v5585
        %v5755 = vunpack.c.h.b16 %v5585
        %v5756 = vunpack.c.l.b16 %v5586
        %v5757 = vunpack.c.h.b16 %v5586
        %v5758 = vunpack.c.l.b16 %v5587
        %v5759 = vunpack.c.h.b16 %v5587
        %v5760 = vunpack.c.l.b16 %v5588
        %v5761 = vunpack.c.h.b16 %v5588
        %v5762 = vunpack.c.l.b16 %v5589
        %v5763 = vunpack.c.h.b16 %v5589
        %v5764 = vunpack.c.l.b16 %v5590
        %v5765 = vunpack.c.h.b16 %v5590
        %v5766 = vunpack.c.l.b16 %v5591
        %v5767 = vunpack.c.h.b16 %v5591
        %v5768 = vunpack.c.l.b16 %v5592
        %v5769 = vunpack.c.h.b16 %v5592
        %v5770 = vunpack.c.l.b16 %v5593
        %v5771 = vunpack.c.h.b16 %v5593
        %v5772 = vunpack.c.l.b16 %v5594
        %v5773 = vunpack.c.h.b16 %v5594
        %v5774 = vunpack.c.l.b16 %v5595
        %v5775 = vunpack.c.h.b16 %v5595
        %v5776 = vunpack.c.l.b16 %v5596
        %v5777 = vunpack.c.h.b16 %v5596
        %v5778 = vunpack.c.l.b16 %v5597
        %v5779 = vunpack.c.h.b16 %v5597
        %v5780 = vunpack.c.l.b16 %v5598
        %v5781 = vunpack.c.h.b16 %v5598
        %v5782 = vunpack.c.l.b16 %v5599
        %v5783 = vunpack.c.h.b16 %v5599
        %v5784 = vunpack.c.l.b16 %v5600
        %v5785 = vunpack.c.h.b16 %v5600
        %v5786 = vunpack.c.l.b16 %v5601
        %v5787 = vunpack.c.h.b16 %v5601
        %v5788 = vunpack.c.l.b16 %v5602
        %v5789 = vunpack.c.h.b16 %v5602
        %v5790 = vunpack.c.l.b16 %v5603
        %v5791 = vunpack.c.h.b16 %v5603
        %v5792 = vunpack.c.l.b16 %v5604
        %v5793 = vunpack.c.h.b16 %v5604
        %v5794 = vunpack.c.l.b16 %v5605
        %v5795 = vunpack.c.h.b16 %v5605
        %v5796 = vunpack.c.l.b16 %v5606
        %v5797 = vunpack.c.h.b16 %v5606
        %v5798 = vunpack.c.l.b16 %v5607
        %v5799 = vunpack.c.h.b16 %v5607
        %v5800 = vunpack.c.l.b16 %v5608
        %v5801 = vunpack.c.h.b16 %v5608
        %v5802 = vunpack.c.l.b16 %v5609
        %v5803 = vunpack.c.h.b16 %v5609
        %v5804 = vunpack.c.l.b16 %v5610
        %v5805 = vunpack.c.h.b16 %v5610
        %v5806 = vunpack.c.l.b16 %v5611
        %v5807 = vunpack.c.h.b16 %v5611
        %v5808 = vunpack.c.l.b16 %v5612
        %v5809 = vunpack.c.h.b16 %v5612
        %v5810 = vunpack.c.l.b16 %v5613
        %v5811 = vunpack.c.h.b16 %v5613
        %v5812 = vunpack.c.l.b16 %v5614
        %v5813 = vunpack.c.h.b16 %v5614
        %v5814 = vunpack.c.l.b16 %v5615
        %v5815 = vunpack.c.h.b16 %v5615
        %v5816 = vunpack.c.l.b16 %v5616
        %v5817 = vunpack.c.h.b16 %v5616
        %v5818 = vunpack.c.l.b16 %v5617
        %v5819 = vunpack.c.h.b16 %v5617
        %v5820 = vunpack.c.l.b16 %v5618
        %v5821 = vunpack.c.h.b16 %v5618
        %v5822 = vunpack.c.l.b16 %v5619
        %v5823 = vunpack.c.h.b16 %v5619
        %v5824 = vpack.c.b16 %v5698, %v5696
        %v5825 = vpack.c.b16 %v5699, %v5697
        %v5826 = vpack.c.b16 %v5702, %v5700
        %v5827 = vpack.c.b16 %v5703, %v5701
        %v5828 = vpack.c.b16 %v5706, %v5704
        %v5829 = vpack.c.b16 %v5707, %v5705
        %v5830 = vpack.c.b16 %v5710, %v5708
        %v5831 = vpack.c.b16 %v5711, %v5709
        %v5832 = vpack.c.b16 %v5714, %v5712
        %v5833 = vpack.c.b16 %v5715, %v5713
        %v5834 = vpack.c.b16 %v5718, %v5716
        %v5835 = vpack.c.b16 %v5719, %v5717
        %v5836 = vpack.c.b16 %v5722, %v5720
        %v5837 = vpack.c.b16 %v5723, %v5721
        %v5838 = vpack.c.b16 %v5726, %v5724
        %v5839 = vpack.c.b16 %v5727, %v5725
        %v5840 = vpack.c.b16 %v5730, %v5728
        %v5841 = vpack.c.b16 %v5731, %v5729
        %v5842 = vpack.c.b16 %v5734, %v5732
        %v5843 = vpack.c.b16 %v5735, %v5733
        %v5844 = vpack.c.b16 %v5738, %v5736
        %v5845 = vpack.c.b16 %v5739, %v5737
        %v5846 = vpack.c.b16 %v5742, %v5740
        %v5847 = vpack.c.b16 %v5743, %v5741
        %v5848 = vpack.c.b16 %v5746, %v5744
        %v5849 = vpack.c.b16 %v5747, %v5745
        %v5850 = vpack.c.b16 %v5750, %v5748
        %v5851 = vpack.c.b16 %v5751, %v5749
        %v5852 = vpack.c.b16 %v5754, %v5752
        %v5853 = vpack.c.b16 %v5755, %v5753
        %v5854 = vpack.c.b16 %v5758, %v5756
        %v5855 = vpack.c.b16 %v5759, %v5757
        %v5856 = vpack.c.b16 %v5762, %v5760
        %v5857 = vpack.c.b16 %v5763, %v5761
        %v5858 = vpack.c.b16 %v5766, %v5764
        %v5859 = vpack.c.b16 %v5767, %v5765
        %v5860 = vpack.c.b16 %v5770, %v5768
        %v5861 = vpack.c.b16 %v5771, %v5769
        %v5862 = vpack.c.b16 %v5774, %v5772
        %v5863 = vpack.c.b16 %v5775, %v5773
        %v5864 = vpack.c.b16 %v5778, %v5776
        %v5865 = vpack.c.b16 %v5779, %v5777
        %v5866 = vpack.c.b16 %v5782, %v5780
        %v5867 = vpack.c.b16 %v5783, %v5781
        %v5868 = vpack.c.b16 %v5786, %v5784
        %v5869 = vpack.c.b16 %v5787, %v5785
        %v5870 = vpack.c.b16 %v5790, %v5788
        %v5871 = vpack.c.b16 %v5791, %v5789
        %v5872 = vpack.c.b16 %v5794, %v5792
        %v5873 = vpack.c.b16 %v5795, %v5793
        %v5874 = vpack.c.b16 %v5798, %v5796
        %v5875 = vpack.c.b16 %v5799, %v5797
        %v5876 = vpack.c.b16 %v5802, %v5800
        %v5877 = vpack.c.b16 %v5803, %v5801
        %v5878 = vpack.c.b16 %v5806, %v5804
        %v5879 = vpack.c.b16 %v5807, %v5805
        %v5880 = vpack.c.b16 %v5810, %v5808
        %v5881 = vpack.c.b16 %v5811, %v5809
        %v5882 = vpack.c.b16 %v5814, %v5812
        %v5883 = vpack.c.b16 %v5815, %v5813
        %v5884 = vpack.c.b16 %v5818, %v5816
        %v5885 = vpack.c.b16 %v5819, %v5817
        %v5886 = vpack.c.b16 %v5822, %v5820
        %v5887 = vpack.c.b16 %v5823, %v5821
        %5952 = vmatprep.subr.bf16.mxu0 %v5825
        %5953 = vmatpush1.bf16.msra.mxu0 %v5824
        %5954 = vmatprep.subr.bf16.mxu0 %v5827
        %5955 = vmatpush1.bf16.msra.mxu0 %v5826
        %5956 = vmatprep.subr.bf16.mxu0 %v5829
        %5957 = vmatpush1.bf16.msra.mxu0 %v5828
        %5958 = vmatprep.subr.bf16.mxu0 %v5831
        %5959 = vmatpush1.bf16.msra.mxu0 %v5830
        %5960 = vmatprep.subr.bf16.mxu0 %v5833
        %5961 = vmatpush1.bf16.msra.mxu0 %v5832
        %5962 = vmatprep.subr.bf16.mxu0 %v5835
        %5963 = vmatpush1.bf16.msra.mxu0 %v5834
        %5964 = vmatprep.subr.bf16.mxu0 %v5837
        %5965 = vmatpush1.bf16.msra.mxu0 %v5836
        %5966 = vmatprep.subr.bf16.mxu0 %v5839
        %5967 = vmatpush1.bf16.msra.mxu0 %v5838
        %5968 = vmatprep.subr.bf16.mxu0 %v5841
        %5969 = vmatpush1.bf16.msra.mxu0 %v5840
        %5970 = vmatprep.subr.bf16.mxu0 %v5843
        %5971 = vmatpush1.bf16.msra.mxu0 %v5842
        %5972 = vmatprep.subr.bf16.mxu0 %v5845
        %5973 = vmatpush1.bf16.msra.mxu0 %v5844
        %5974 = vmatprep.subr.bf16.mxu0 %v5847
        %5975 = vmatpush1.bf16.msra.mxu0 %v5846
        %5976 = vmatprep.subr.bf16.mxu0 %v5849
        %5977 = vmatpush1.bf16.msra.mxu0 %v5848
        %5978 = vmatprep.subr.bf16.mxu0 %v5851
        %5979 = vmatpush1.bf16.msra.mxu0 %v5850
        %5980 = vmatprep.subr.bf16.mxu0 %v5853
        %5981 = vmatpush1.bf16.msra.mxu0 %v5852
        %5982 = vmatprep.subr.bf16.mxu0 %v5855
        %5983 = vmatpush1.bf16.msra.mxu0 %v5854
        %5984 = vmatprep.mubr.bf16.mxu0 %v5525
        %5985 = vmatmul.mubr.bf16.gmra.mrb[0].mxu0 %v5524
        %v5986 = vpop.f32.mrb[0].mxu0
        %v5987 = vadd.f32 %v5625, %v5986
        %v5988 = vpop.f32.mrb[0].mxu0
        %v5989 = vadd.f32 %v5629, %v5988
        %v5990 = vpop.f32.mrb[0].mxu0
        %v5991 = vadd.f32 %v5625, %v5990
        %v5992 = vpop.f32.mrb[0].mxu0
        %v5993 = vadd.f32 %v5629, %v5992
        %5994 = vmatprep.mubr.bf16.mxu0 %v5529
        %5995 = vmatmul.mubr.bf16.gmra.mrb[0].mxu0 %v5528
        %v5996 = vpop.f32.mrb[0].mxu0
        %v5997 = vadd.f32 %v5625, %v5996
        %v5998 = vpop.f32.mrb[0].mxu0
        %v5999 = vadd.f32 %v5629, %v5998
        %v6000 = vpop.f32.mrb[0].mxu0
        %v6001 = vadd.f32 %v5625, %v6000
        %v6002 = vpop.f32.mrb[0].mxu0
        %v6003 = vadd.f32 %v5629, %v6002
        %6004 = vmatprep.mubr.bf16.mxu0 %v5533
        %6005 = vmatmul.mubr.bf16.gmra.mrb[0].mxu0 %v5532
        %v6006 = vpop.f32.mrb[0].mxu0
        %v6007 = vadd.f32 %v5625, %v6006
        %v6008 = vpop.f32.mrb[0].mxu0
        %v6009 = vadd.f32 %v5629, %v6008
        %v6010 = vpop.f32.mrb[0].mxu0
        %v6011 = vadd.f32 %v5625, %v6010
        %v6012 = vpop.f32.mrb[0].mxu0
        %v6013 = vadd.f32 %v5629, %v6012
        %6014 = vmatprep.mubr.bf16.mxu0 %v5537
        %6015 = vmatmul.mubr.bf16.gmra.mrb[0].mxu0 %v5536
        %v6016 = vpop.f32.mrb[0].mxu0
        %v6017 = vadd.f32 %v5625, %v6016
        %v6018 = vpop.f32.mrb[0].mxu0
        %v6019 = vadd.f32 %v5629, %v6018
        %v6020 = vpop.f32.mrb[0].mxu0
        %v6021 = vadd.f32 %v5625, %v6020
        %v6022 = vpop.f32.mrb[0].mxu0
        %v6023 = vadd.f32 %v5629, %v6022
        %6024 = vmatprep.mubr.bf16.mxu0 %v5541
        %6025 = vmatmul.mubr.bf16.gmra.mrb[0].mxu0 %v5540
        %v6026 = vpop.f32.mrb[0].mxu0
        %v6027 = vadd.f32 %v5625, %v6026
        %v6028 = vpop.f32.mrb[0].mxu0
        %v6029 = vadd.f32 %v5629, %v6028
        %v6030 = vpop.f32.mrb[0].mxu0
        %v6031 = vadd.f32 %v5625, %v6030
        %v6032 = vpop.f32.mrb[0].mxu0
        %v6033 = vadd.f32 %v5629, %v6032
        %6034 = vmatprep.mubr.bf16.mxu0 %v5545
        %6035 = vmatmul.mubr.bf16.gmra.mrb[0].mxu0 %v5544
        %v6036 = vpop.f32.mrb[0].mxu0
        %v6037 = vadd.f32 %v5625, %v6036
        %v6038 = vpop.f32.mrb[0].mxu0
        %v6039 = vadd.f32 %v5629, %v6038
        %v6040 = vpop.f32.mrb[0].mxu0
        %v6041 = vadd.f32 %v5625, %v6040
        %v6042 = vpop.f32.mrb[0].mxu0
        %v6043 = vadd.f32 %v5629, %v6042
        %6044 = vmatprep.mubr.bf16.mxu0 %v5549
        %6045 = vmatmul.mubr.bf16.gmra.mrb[0].mxu0 %v5548
        %v6046 = vpop.f32.mrb[0].mxu0
        %v6047 = vadd.f32 %v5625, %v6046
        %v6048 = vpop.f32.mrb[0].mxu0
        %v6049 = vadd.f32 %v5629, %v6048
        %v6050 = vpop.f32.mrb[0].mxu0
        %v6051 = vadd.f32 %v5625, %v6050
        %v6052 = vpop.f32.mrb[0].mxu0
        %v6053 = vadd.f32 %v5629, %v6052
        %6054 = vmatprep.mubr.bf16.mxu0 %v5553
        %6055 = vmatmul.mubr.bf16.gmra.mrb[0].mxu0 %v5552
        %v6056 = vpop.f32.mrb[0].mxu0
        %v6057 = vadd.f32 %v5625, %v6056
        %v6058 = vpop.f32.mrb[0].mxu0
        %v6059 = vadd.f32 %v5629, %v6058
        %v6060 = vpop.f32.mrb[0].mxu0
        %v6061 = vadd.f32 %v5625, %v6060
        %v6062 = vpop.f32.mrb[0].mxu0
        %v6063 = vadd.f32 %v5629, %v6062
        %6064 = vdwg.mxu0
        %6065 = vmatprep.subr.bf16.mxu0 %v5857
        %6066 = vmatpush1.bf16.msra.mxu0 %v5856
        %6067 = vmatprep.subr.bf16.mxu0 %v5859
        %6068 = vmatpush1.bf16.msra.mxu0 %v5858
        %6069 = vmatprep.subr.bf16.mxu0 %v5861
        %6070 = vmatpush1.bf16.msra.mxu0 %v5860
        %6071 = vmatprep.subr.bf16.mxu0 %v5863
        %6072 = vmatpush1.bf16.msra.mxu0 %v5862
        %6073 = vmatprep.subr.bf16.mxu0 %v5865
        %6074 = vmatpush1.bf16.msra.mxu0 %v5864
        %6075 = vmatprep.subr.bf16.mxu0 %v5867
        %6076 = vmatpush1.bf16.msra.mxu0 %v5866
        %6077 = vmatprep.subr.bf16.mxu0 %v5869
        %6078 = vmatpush1.bf16.msra.mxu0 %v5868
        %6079 = vmatprep.subr.bf16.mxu0 %v5871
        %6080 = vmatpush1.bf16.msra.mxu0 %v5870
        %6081 = vmatprep.subr.bf16.mxu0 %v5873
        %6082 = vmatpush1.bf16.msra.mxu0 %v5872
        %6083 = vmatprep.subr.bf16.mxu0 %v5875
        %6084 = vmatpush1.bf16.msra.mxu0 %v5874
        %6085 = vmatprep.subr.bf16.mxu0 %v5877
        %6086 = vmatpush1.bf16.msra.mxu0 %v5876
        %6087 = vmatprep.subr.bf16.mxu0 %v5879
        %6088 = vmatpush1.bf16.msra.mxu0 %v5878
        %6089 = vmatprep.subr.bf16.mxu0 %v5881
        %6090 = vmatpush1.bf16.msra.mxu0 %v5880
        %6091 = vmatprep.subr.bf16.mxu0 %v5883
        %6092 = vmatpush1.bf16.msra.mxu0 %v5882
        %6093 = vmatprep.subr.bf16.mxu0 %v5885
        %6094 = vmatpush1.bf16.msra.mxu0 %v5884
        %6095 = vmatprep.subr.bf16.mxu0 %v5887
        %6096 = vmatpush1.bf16.msra.mxu0 %v5886
        %6097 = vmatprep.mubr.bf16.mxu0 %v5527
        %6098 = vmatmul.mubr.bf16.gmra.mrb[0].mxu0 %v5526
        %v6099 = vpop.f32.mrb[0].mxu0
        %v6100 = vadd.f32 %v5987, %v6099
        %v6101 = vpop.f32.mrb[0].mxu0
        %v6102 = vadd.f32 %v5989, %v6101
        %v6103 = vpop.f32.mrb[0].mxu0
        %v6104 = vadd.f32 %v5991, %v6103
        %v6105 = vpop.f32.mrb[0].mxu0
        %v6106 = vadd.f32 %v5993, %v6105
        %6107 = vmatprep.mubr.bf16.mxu0 %v5531
        %6108 = vmatmul.mubr.bf16.gmra.mrb[0].mxu0 %v5530
        %v6109 = vpop.f32.mrb[0].mxu0
        %v6110 = vadd.f32 %v5997, %v6109
        %v6111 = vpop.f32.mrb[0].mxu0
        %v6112 = vadd.f32 %v5999, %v6111
        %v6113 = vpop.f32.mrb[0].mxu0
        %v6114 = vadd.f32 %v6001, %v6113
        %v6115 = vpop.f32.mrb[0].mxu0
        %v6116 = vadd.f32 %v6003, %v6115
        %6117 = vmatprep.mubr.bf16.mxu0 %v5535
        %6118 = vmatmul.mubr.bf16.gmra.mrb[0].mxu0 %v5534
        %v6119 = vpop.f32.mrb[0].mxu0
        %v6120 = vadd.f32 %v6007, %v6119
        %v6121 = vpop.f32.mrb[0].mxu0
        %v6122 = vadd.f32 %v6009, %v6121
        %v6123 = vpop.f32.mrb[0].mxu0
        %v6124 = vadd.f32 %v6011, %v6123
        %v6125 = vpop.f32.mrb[0].mxu0
        %v6126 = vadd.f32 %v6013, %v6125
        %6127 = vmatprep.mubr.bf16.mxu0 %v5539
        %6128 = vmatmul.mubr.bf16.gmra.mrb[0].mxu0 %v5538
        %v6129 = vpop.f32.mrb[0].mxu0
        %v6130 = vadd.f32 %v6017, %v6129
        %v6131 = vpop.f32.mrb[0].mxu0
        %v6132 = vadd.f32 %v6019, %v6131
        %v6133 = vpop.f32.mrb[0].mxu0
        %v6134 = vadd.f32 %v6021, %v6133
        %v6135 = vpop.f32.mrb[0].mxu0
        %v6136 = vadd.f32 %v6023, %v6135
        %6137 = vmatprep.mubr.bf16.mxu0 %v5543
        %6138 = vmatmul.mubr.bf16.gmra.mrb[0].mxu0 %v5542
        %v6139 = vpop.f32.mrb[0].mxu0
        %v6140 = vadd.f32 %v6027, %v6139
        %v6141 = vpop.f32.mrb[0].mxu0
        %v6142 = vadd.f32 %v6029, %v6141
        %v6143 = vpop.f32.mrb[0].mxu0
        %v6144 = vadd.f32 %v6031, %v6143
        %v6145 = vpop.f32.mrb[0].mxu0
        %v6146 = vadd.f32 %v6033, %v6145
        %6147 = vmatprep.mubr.bf16.mxu0 %v5547
        %6148 = vmatmul.mubr.bf16.gmra.mrb[0].mxu0 %v5546
        %v6149 = vpop.f32.mrb[0].mxu0
        %v6150 = vadd.f32 %v6037, %v6149
        %v6151 = vpop.f32.mrb[0].mxu0
        %v6152 = vadd.f32 %v6039, %v6151
        %v6153 = vpop.f32.mrb[0].mxu0
        %v6154 = vadd.f32 %v6041, %v6153
        %v6155 = vpop.f32.mrb[0].mxu0
        %v6156 = vadd.f32 %v6043, %v6155
        %6157 = vmatprep.mubr.bf16.mxu0 %v5551
        %6158 = vmatmul.mubr.bf16.gmra.mrb[0].mxu0 %v5550
        %v6159 = vpop.f32.mrb[0].mxu0
        %v6160 = vadd.f32 %v6047, %v6159
        %v6161 = vpop.f32.mrb[0].mxu0
        %v6162 = vadd.f32 %v6049, %v6161
        %v6163 = vpop.f32.mrb[0].mxu0
        %v6164 = vadd.f32 %v6051, %v6163
        %v6165 = vpop.f32.mrb[0].mxu0
        %v6166 = vadd.f32 %v6053, %v6165
        %6167 = vmatprep.mubr.bf16.mxu0 %v5555
        %6168 = vmatmul.mubr.bf16.gmra.mrb[0].mxu0 %v5554
        %v6169 = vpop.f32.mrb[0].mxu0
        %v6170 = vadd.f32 %v6057, %v6169
        %v6171 = vpop.f32.mrb[0].mxu0
        %v6172 = vadd.f32 %v6059, %v6171
        %v6173 = vpop.f32.mrb[0].mxu0
        %v6174 = vadd.f32 %v6061, %v6173
        %v6175 = vpop.f32.mrb[0].mxu0
        %v6176 = vadd.f32 %v6063, %v6175
        %6177 = vdwg.mxu0
        %v6178 = vmax.f32 %v6100, 0.0
        %v6179 = vmax.f32 %v6102, 0.0
        %v6180 = vmax.f32 %v6104, 0.0
        %v6181 = vmax.f32 %v6106, 0.0
        %v6182 = vmax.f32 %v6110, 0.0
        %v6183 = vmax.f32 %v6112, 0.0
        %v6184 = vmax.f32 %v6114, 0.0
        %v6185 = vmax.f32 %v6116, 0.0
        %v6186 = vmax.f32 %v6120, 0.0
        %v6187 = vmax.f32 %v6122, 0.0
        %v6188 = vmax.f32 %v6124, 0.0
        %v6189 = vmax.f32 %v6126, 0.0
        %v6190 = vmax.f32 %v6130, 0.0
        %v6191 = vmax.f32 %v6132, 0.0
        %v6192 = vmax.f32 %v6134, 0.0
        %v6193 = vmax.f32 %v6136, 0.0
        %v6194 = vmax.f32 %v6140, 0.0
        %v6195 = vmax.f32 %v6142, 0.0
        %v6196 = vmax.f32 %v6144, 0.0
        %v6197 = vmax.f32 %v6146, 0.0
        %v6198 = vmax.f32 %v6150, 0.0
        %v6199 = vmax.f32 %v6152, 0.0
        %v6200 = vmax.f32 %v6154, 0.0
        %v6201 = vmax.f32 %v6156, 0.0
        %v6202 = vmax.f32 %v6160, 0.0
        %v6203 = vmax.f32 %v6162, 0.0
        %v6204 = vmax.f32 %v6164, 0.0
        %v6205 = vmax.f32 %v6166, 0.0
        %v6206 = vmax.f32 %v6170, 0.0
        %v6207 = vmax.f32 %v6172, 0.0
        %v6208 = vmax.f32 %v6174, 0.0
        %v6209 = vmax.f32 %v6176, 0.0
        %6210 = vst [vmem:[%s518] sm:$0xff] %v6178
        %6211 = vst [vmem:[%s518 + $0x8] sm:$0xff] %v6179
        %6212 = vst [vmem:[%s518 + $0x10] sm:$0xff] %v6180
        %6213 = vst [vmem:[%s518 + $0x18] sm:$0xff] %v6181
        %6214 = vst [vmem:[%s518 + $0x20] sm:$0xff] %v6182
        %6215 = vst [vmem:[%s518 + $0x28] sm:$0xff] %v6183
        %6216 = vst [vmem:[%s518 + $0x30] sm:$0xff] %v6184
        %6217 = vst [vmem:[%s518 + $0x38] sm:$0xff] %v6185
        %6218 = vst [vmem:[%s518 + $0x40] sm:$0xff] %v6186
        %6219 = vst [vmem:[%s518 + $0x48] sm:$0xff] %v6187
        %6220 = vst [vmem:[%s518 + $0x50] sm:$0xff] %v6188
        %6221 = vst [vmem:[%s518 + $0x58] sm:$0xff] %v6189
        %6222 = vst [vmem:[%s518 + $0x60] sm:$0xff] %v6190
        %6223 = vst [vmem:[%s518 + $0x68] sm:$0xff] %v6191
        %6224 = vst [vmem:[%s518 + $0x70] sm:$0xff] %v6192
        %6225 = vst [vmem:[%s518 + $0x78] sm:$0xff] %v6193
        %6226 = vst [vmem:[%s518 + $0x80] sm:$0xff] %v6194
        %6227 = vst [vmem:[%s518 + $0x88] sm:$0xff] %v6195
        %6228 = vst [vmem:[%s518 + $0x90] sm:$0xff] %v6196
        %6229 = vst [vmem:[%s518 + $0x98] sm:$0xff] %v6197
        %6230 = vst [vmem:[%s518 + $0xa0] sm:$0xff] %v6198
        %6231 = vst [vmem:[%s518 + $0xa8] sm:$0xff] %v6199
        %6232 = vst [vmem:[%s518 + $0xb0] sm:$0xff] %v6200
        %6233 = vst [vmem:[%s518 + $0xb8] sm:$0xff] %v6201
        %6234 = vst [vmem:[%s518 + $0xc0] sm:$0xff] %v6202
        %6235 = vst [vmem:[%s518 + $0xc8] sm:$0xff] %v6203
        %6236 = vst [vmem:[%s518 + $0xd0] sm:$0xff] %v6204
        %6237 = vst [vmem:[%s518 + $0xd8] sm:$0xff] %v6205
        %6238 = vst [vmem:[%s518 + $0xe0] sm:$0xff] %v6206
        %6239 = vst [vmem:[%s518 + $0xe8] sm:$0xff] %v6207
        %6240 = vst [vmem:[%s518 + $0xf0] sm:$0xff] %v6208
        %6241 = vst [vmem:[%s518 + $0xf8] sm:$0xff] %v6209
        %s6242 = sand.u32 %s282, 1
        %s6243 = scalar_lea.sflag [#allocation4], %s6242
        %s6244 = sand.u32 %s282, 1
        %s6245 = smul.addr %s6244, 256
        %s6246 = scalar_lea.vmem [#allocation14], %s6245
        // Predicated region
        $region93: #{tpu_custom_call.1} parent=63 // pred_check
          %p6247 = pneg %p292
        $region94: #{tpu_custom_call.1} parent=63 // pred_check_branch
          %6249 = sbr.rel (%p6247) target = $region96
        $region95: #{tpu_custom_call.1} parent=63 // pred_region
          %s6250 = smul.u32 16, %s33
          %s6252 = ssub.s32 4096, 4096
          %6253 = vsyncadd %s6243, %s6252
          %s6254 = smul.addr %s6250, 2
          %s6255 = smul.addr %s6254, 128
          %s6256 = scalar_lea.hbm %s11, %s6255
          %s6257 = sshll.u32 %s6246, 4
          %s6258 = int_to_ptr.vmem [resolvable:$true] %s6257
          %6263 = dma.vmem_to_hbm [thread:$0]  %s6258, 4096, %s6256, %s6243, 256, 256, 16
        $region96: #{tpu_custom_call.1} parent=63 // pred_fallthru
          _
      $region64: #{tpu_custom_call.1} parent=5 // pred_fallthru
        _
      %p6264 = scmp.le.s32.totalorder 2, %s28
      // Predicated region
      $region97: #{tpu_custom_call.1} parent=5 // pred_check
        %p6265 = pneg %p6264
      $region98: #{tpu_custom_call.1} parent=5 // pred_check_branch
        %6267 = sbr.rel (%p6265) target = $region100
      $region99: #{tpu_custom_call.1} parent=5 // pred_region
        %s6268 = ssub.s32 %s28, 2
        // Predicated region
        $region101: #{tpu_custom_call.1} parent=99 // pred_check
          %p6269 = pneg %p298
        $region102: #{tpu_custom_call.1} parent=99 // pred_check_branch
          %6271 = sbr.rel (%p6269) target = $region104
        $region103: #{tpu_custom_call.1} parent=99 // pred_region
          %s6272 = sand.u32 %s283, 1
          %s6273 = scalar_lea.sflag [#allocation4], %s6272
          %s6274 = sand.u32 %s283, 1
          %s6275 = smul.addr %s6274, 256
          %s6276 = scalar_lea.vmem [#allocation14], %s6275
          %6277 = dma.done %s6273, 4096
        $region104: #{tpu_custom_call.1} parent=99 // pred_fallthru
          _
      $region100: #{tpu_custom_call.1} parent=5 // pred_fallthru
        _
    $region6: #{tpu_custom_call.1} parent=1 // loop_footer
      %s32 = sadd.s32 1, %s28
    $region7: #{tpu_custom_call.1} parent=1 // loop_footer_branch
      %27 = sbr.rel target = $region3
    $region8: #{tpu_custom_call.1} parent=1 // loop_exit
      _
    %6278 = vsyncpa [#allocation3], 1
    %s6279 = scalar_lea.sflag [#allocation3], 1
    %6280 = vsyncpa %s6279, 1
    %6281 = vsyncpa [#allocation6], 1
    %s6282 = scalar_lea.sflag [#allocation6], 1
    %6283 = vsyncpa %s6282, 1
    %6284 = vsyncpa [#allocation9], 1
    %6285 = vsyncpa [#allocation12], 1
    %6286 = vsyncpa [#allocation4], 1
    %s6287 = scalar_lea.sflag [#allocation4], 1
    %6288 = vsyncpa %s6287, 1

</llo_original>
